<compile_context>
chip_gen: v5e
topology: v5e:2x2
jax: 0.10.0
libtpu: 0.0.40
codegen_flags: <defaults>
</compile_context>

<pallas_src>
import functools

import jax
import jax.numpy as jnp
from jax.experimental import pallas as pl
from jax.experimental.pallas import tpu as pltpu


# ----------------------------------------------------------------------------
# Shared gate math (PyTorch gate order i, f, g, o; f32 elementwise)
# ----------------------------------------------------------------------------
def _lstm_gates(pre, c_prev, H):
    i = jax.nn.sigmoid(pre[:, 0 * H:1 * H])
    f = jax.nn.sigmoid(pre[:, 1 * H:2 * H])
    g = jnp.tanh(pre[:, 2 * H:3 * H])
    o = jax.nn.sigmoid(pre[:, 3 * H:4 * H])
    c = f * c_prev + i * g
    h = o * jnp.tanh(c)
    return h, c


# ----------------------------------------------------------------------------
# Pallas kernels
# ----------------------------------------------------------------------------
def _bilstm_layer_kernel(T, B, H, x_ref, wih_ref, whh_ref, b_ref, out_ref,
                         xgf_ref, xgb_ref, st_ref):
    """One bidirectional LSTM layer, both directions fused.

    x_ref   : (T*B, Din)            time-major flattened input (f32 or bf16)
    wih_ref : (Din, 8H) bf16        [fwd gates 4H | bwd gates 4H]
    whh_ref : (2H, 8H) bf16         block-diag [[whh_f, 0], [0, whh_b]]
    b_ref   : (1, 8H) f32           combined b_ih + b_hh, fwd|bwd
    out_ref : (T*B, 2H) bf16        fwd hidden in lanes [:H], bwd in [H:]
    scratch : xg_f (T*B, 4H) f32, xg_b (T*B, 4H) f32, st (T*B, 2H) f32
    """
    G = 4 * H

    # (1) Hoisted input->gate projection for BOTH directions: one big bf16 MXU
    #     matmul over all timesteps, bias folded in.  Split into two lane-dense
    #     scratches so the recurrence never load-then-slices.
    xg = (jnp.dot(x_ref[...].astype(jnp.bfloat16), wih_ref[...],
                  preferred_element_type=jnp.float32) + b_ref[...])
    xgf_ref[...] = xg[:, :G]
    xgb_ref[...] = xg[:, G:]

    whh = whh_ref[...]          # hoisted; stays vreg/VMEM resident

    h_f = jnp.zeros((B, H), jnp.float32)
    c_f = jnp.zeros((B, H), jnp.float32)
    h_b = jnp.zeros((B, H), jnp.float32)
    c_b = jnp.zeros((B, H), jnp.float32)

    # (2) Interleaved fwd+bwd recurrence, fully unrolled (T static, small).
    #     One fused block-diagonal matmul per step replaces two small ones.
    for t in range(T):
        tb = T - 1 - t
        h_cat = jnp.concatenate([h_f, h_b], axis=-1).astype(jnp.bfloat16)
        r = jnp.dot(h_cat, whh, preferred_element_type=jnp.float32)   # (B, 8H)
        pre_f = xgf_ref[pl.ds(t * B, B), :] + r[:, :G]
        pre_b = xgb_ref[pl.ds(tb * B, B), :] + r[:, G:]
        h_f, c_f = _lstm_gates(pre_f, c_f, H)
        h_b, c_b = _lstm_gates(pre_b, c_b, H)
        st_ref[pl.ds(t * B, B), pl.ds(0, H)] = h_f
        st_ref[pl.ds(tb * B, B), pl.ds(H, H)] = h_b

    # (3) Single dense bf16 write of the whole layer output (done once, off the
    #     latency-critical recurrence).
    out_ref[...] = st_ref[...].astype(jnp.bfloat16)


def _bilstm_head_kernel(T, B, H, x_ref, wihf_ref, wihb_ref, whhf_ref,
                        bf_ref, bb_ref, fcw_ref, fcb_ref, out_ref, xgf_ref):
    """Last bidirectional LSTM layer fused with the Linear head.

    Only out[:, -1, :] is needed downstream, so:
      * forward direction: full recurrence, keep the final hidden state only,
      * backward direction: ONE step (its output at t=T-1 sees only x[T-1] and
        h_prev = c_prev = 0), so only x[T-1] gets the backward projection,
      * FC head applied in-kernel (bf16 matmul), lane-dense (B, Cpad) output.
    """
    x = x_ref[...].astype(jnp.bfloat16)

    # Hoisted forward input->gate projection (bias folded in).
    xgf_ref[...] = (jnp.dot(x, wihf_ref[...],
                            preferred_element_type=jnp.float32) + bf_ref[...])

    whh_f = whhf_ref[...]
    h_f = jnp.zeros((B, H), jnp.float32)
    c_f = jnp.zeros((B, H), jnp.float32)
    for t in range(T):                                   # fully unrolled
        pre_f = (xgf_ref[pl.ds(t * B, B), :]
                 + jnp.dot(h_f.astype(jnp.bfloat16), whh_f,
                           preferred_element_type=jnp.float32))
        h_f, c_f = _lstm_gates(pre_f, c_f, H)

    # Backward direction at the last timestep: single step from zero state
    # (valid only because h0 = c0 = 0, as in the PyTorch module).
    x_last = x[(T - 1) * B:, :]
    pre_b = (jnp.dot(x_last, wihb_ref[...],
                     preferred_element_type=jnp.float32) + bb_ref[...])
    h_b, _ = _lstm_gates(pre_b, jnp.zeros((B, H), jnp.float32), H)

    # Fused FC head: one bf16 matmul into a lane-dense 128-padded block.
    h_cat = jnp.concatenate([h_f, h_b], axis=-1).astype(jnp.bfloat16)
    out_ref[...] = (jnp.dot(h_cat, fcw_ref[...],
                            preferred_element_type=jnp.float32) + fcb_ref[...])


# ----------------------------------------------------------------------------
# pallas_call wrappers (no grid -> whole arrays VMEM-resident, single-buffered)
# ----------------------------------------------------------------------------
def _bilstm_layer(x, lp, T, B, H):
    kernel = functools.partial(_bilstm_layer_kernel, T, B, H)
    return pl.pallas_call(
        kernel,
        out_shape=jax.ShapeDtypeStruct((T * B, 2 * H), jnp.bfloat16),
        scratch_shapes=[pltpu.VMEM((T * B, 4 * H), jnp.float32),
                        pltpu.VMEM((T * B, 4 * H), jnp.float32),
                        pltpu.VMEM((T * B, 2 * H), jnp.float32)],
    )(x, lp["wih"], lp["whh_block"], lp["b"])


def _bilstm_head(x, lp, fc_w, fc_b, T, B, H):
    c_pad = fc_w.shape[1]
    kernel = functools.partial(_bilstm_head_kernel, T, B, H)
    return pl.pallas_call(
        kernel,
        out_shape=jax.ShapeDtypeStruct((B, c_pad), jnp.float32),
        scratch_shapes=[pltpu.VMEM((T * B, 4 * H), jnp.float32)],
    )(x, lp["wih_f"], lp["wih_b"], lp["whh_f"], lp["b_f"], lp["b_b"],
      fc_w, fc_b)


# ----------------------------------------------------------------------------
# Full BiLSTM forward (matches the PyTorch module semantics)
# ----------------------------------------------------------------------------
def bilstm_forward(x, params, *, num_classes):
    """x: (batch, seq, input_size) -> (batch, num_classes)."""
    B, T, Din = x.shape
    H = params["layers"][0]["whh_f"].shape[0]
    cur = jnp.transpose(x, (1, 0, 2)).reshape(T * B, Din)   # time-major, flat
    for lp in params["layers"][:-1]:
        cur = _bilstm_layer(cur, lp, T, B, H)                # (T*B, 2H) bf16
    logits = _bilstm_head(cur, params["layers"][-1],
                          params["fc_w"], params["fc_b"], T, B, H)
    return logits[:, :num_classes]


# ----------------------------------------------------------------------------
# Parameter init (PyTorch-style uniform(-1/sqrt(H), 1/sqrt(H)))
# ----------------------------------------------------------------------------
def init_params(key, input_size, hidden_size, num_layers, num_classes):
    H = hidden_size
    G = 4 * H
    bound = 1.0 / float(H) ** 0.5
    layers = []
    for layer in range(num_layers):
        d_in = input_size if layer == 0 else 2 * H
        key, *ks = jax.random.split(key, 9)

        def u(k, shape):
            return jax.random.uniform(k, shape, jnp.float32, -bound, bound)

        w_ih_f, w_hh_f = u(ks[0], (G, d_in)), u(ks[1], (G, H))
        b_ih_f, b_hh_f = u(ks[2], (G,)), u(ks[3], (G,))
        w_ih_b, w_hh_b = u(ks[4], (G, d_in)), u(ks[5], (G, H))
        b_ih_b, b_hh_b = u(ks[6], (G,)), u(ks[7], (G,))

        wih_f = w_ih_f.T.astype(jnp.bfloat16)                # (d_in, 4H)
        wih_b = w_ih_b.T.astype(jnp.bfloat16)
        whh_f = w_hh_f.T.astype(jnp.bfloat16)                # (H, 4H)
        whh_b = w_hh_b.T.astype(jnp.bfloat16)
        b_f = (b_ih_f + b_hh_f)[None, :]                     # (1, 4H) f32
        b_b = (b_ih_b + b_hh_b)[None, :]

        # Block-diagonal recurrent weight for the fused per-step matmul.
        whh_block = jnp.zeros((2 * H, 2 * G), jnp.float32)
        whh_block = whh_block.at[:H, :G].set(w_hh_f.T)
        whh_block = whh_block.at[H:, G:].set(w_hh_b.T)

        layers.append({
            "wih": jnp.concatenate([wih_f, wih_b], axis=1),  # (d_in, 8H) bf16
            "whh_block": whh_block.astype(jnp.bfloat16),     # (2H, 8H) bf16
            "b": jnp.concatenate([b_f, b_b], axis=1),        # (1, 8H) f32
            # pieces used by the fused head kernel / reference:
            "wih_f": wih_f, "wih_b": wih_b,
            "whh_f": whh_f, "whh_b": whh_b,
            "b_f": b_f, "b_b": b_b,
        })

    key, k1, k2 = jax.random.split(key, 3)
    fc_bound = 1.0 / float(2 * H) ** 0.5
    w_fc = jax.random.uniform(k1, (num_classes, 2 * H), jnp.float32,
                              -fc_bound, fc_bound)
    b_fc = jax.random.uniform(k2, (num_classes,), jnp.float32,
                              -fc_bound, fc_bound)
    c_pad = ((num_classes + 127) // 128) * 128               # lane-dense head
    fc_w = (jnp.zeros((2 * H, c_pad), jnp.float32)
            .at[:, :num_classes].set(w_fc.T)).astype(jnp.bfloat16)
    fc_b = jnp.zeros((1, c_pad), jnp.float32).at[:, :num_classes].set(b_fc)
    return {"layers": layers, "fc_w": fc_w, "fc_b": fc_b}


# ----------------------------------------------------------------------------
# Pure-JAX reference (full bidirectional computation, mirrors bf16 matmuls)
# ----------------------------------------------------------------------------
def _ref_forward(x, params, num_classes):
    H = params["layers"][0]["whh_f"].shape[0]

    def run_dir(seq, wih, whh, b, reverse):
        T, B, _ = seq.shape
        h = jnp.zeros((B, H), jnp.float32)
        c = jnp.zeros((B, H), jnp.float32)
        outs = [None] * T
        order = range(T - 1, -1, -1) if reverse else range(T)
        for t in order:
            g = (jnp.dot(seq[t].astype(jnp.bfloat16), wih,
                         preferred_element_type=jnp.float32)
                 + jnp.dot(h.astype(jnp.bfloat16), whh,
                           preferred_element_type=jnp.float32)
                 + b)
            i = jax.nn.sigmoid(g[:, :H])
            f = jax.nn.sigmoid(g[:, H:2 * H])
            gg = jnp.tanh(g[:, 2 * H:3 * H])
            o = jax.nn.sigmoid(g[:, 3 * H:])
            c = f * c + i * gg
            h = o * jnp.tanh(c)
            outs[t] = h
        return jnp.stack(outs, axis=0)

    cur = jnp.transpose(x, (1, 0, 2))
    for lp in params["layers"]:
        hf = run_dir(cur, lp["wih_f"], lp["whh_f"], lp["b_f"], False)
        hb = run_dir(cur, lp["wih_b"], lp["whh_b"], lp["b_b"], True)
        cur = jnp.concatenate([hf, hb], axis=-1)
    last = cur[-1]
    logits = (jnp.dot(last.astype(jnp.bfloat16), params["fc_w"],
                      preferred_element_type=jnp.float32) + params["fc_b"])
    return logits[:, :num_classes]


if __name__ == "__main__":
    # Small shapes consistent with the module (MNIST-row style sequences).
    batch, seq_len = 8, 8
    input_size, hidden_size, num_layers, num_classes = 28, 32, 2, 10

    key = jax.random.PRNGKey(0)
    key, xk = jax.random.split(key)
    x = jax.random.normal(xk, (batch, seq_len, input_size), jnp.float32)

    params = init_params(key, input_size, hidden_size, num_layers, num_classes)

    fwd = jax.jit(functools.partial(bilstm_forward, num_classes=num_classes))
    out = jax.block_until_ready(fwd(x, params))
    assert out.shape == (batch, num_classes), out.shape

    ref = _ref_forward(x, params, num_classes)
    max_err = float(jnp.max(jnp.abs(out - ref)))
    assert jnp.allclose(out, ref, rtol=2e-2, atol=2e-2), f"max |diff| = {max_err}"

    print("KERNEL_OK")
</pallas_src>

<mosaic_0001>
module attributes {stable_mosaic.version = 11 : i64} {
  func.func @_bilstm_head_kernel(%arg0: memref<64x64xbf16, #tpu.memory_space<vmem>>, %arg1: memref<64x128xbf16, #tpu.memory_space<vmem>>, %arg2: memref<64x128xbf16, #tpu.memory_space<vmem>>, %arg3: memref<32x128xbf16, #tpu.memory_space<vmem>>, %arg4: memref<1x128xf32, #tpu.memory_space<vmem>>, %arg5: memref<1x128xf32, #tpu.memory_space<vmem>>, %arg6: memref<64x128xbf16, #tpu.memory_space<vmem>>, %arg7: memref<1x128xf32, #tpu.memory_space<vmem>>, %arg8: memref<8x128xf32, #tpu.memory_space<vmem>>, %arg9: memref<64x128xf32, #tpu.memory_space<vmem>>) attributes {dimension_semantics = [], scalar_prefetch = 0 : i64, scratch_operands = 1 : i64, tpu.core_type = #tpu.core_type<tc>} {
    %c0 = arith.constant 0 : index
    %c0_0 = arith.constant 0 : index
    %0 = vector.load %arg0[%c0, %c0_0] : memref<64x64xbf16, #tpu.memory_space<vmem>>, vector<64x64xbf16>
    %c0_1 = arith.constant 0 : index
    %c0_2 = arith.constant 0 : index
    %1 = vector.load %arg1[%c0_1, %c0_2] : memref<64x128xbf16, #tpu.memory_space<vmem>>, vector<64x128xbf16>
    %cst = arith.constant dense<0.000000e+00> : vector<64x128xf32>
    %2 = tpu.matmul %0, %1, %cst {dimension_numbers = #tpu.dot_dimension_numbers<[1], [0], [0], [1], [0, 0, 1, 1], [], []>} : vector<64x64xbf16>, vector<64x128xbf16>, vector<64x128xf32> -> vector<64x128xf32>
    %c0_3 = arith.constant 0 : index
    %c0_4 = arith.constant 0 : index
    %3 = vector.load %arg4[%c0_3, %c0_4] : memref<1x128xf32, #tpu.memory_space<vmem>>, vector<1x128xf32>
    %4 = vector.broadcast %3 : vector<1x128xf32> to vector<64x128xf32>
    %5 = arith.addf %2, %4 : vector<64x128xf32>
    %c0_5 = arith.constant 0 : index
    %c0_6 = arith.constant 0 : index
    %6 = vector.load %arg9[%c0_5, %c0_6] : memref<64x128xf32, #tpu.memory_space<vmem>>, vector<64x128xf32>
    tpu.vector_store %arg9[%c0_5, %c0_6], %5 {strides = array<i32>} : memref<64x128xf32, #tpu.memory_space<vmem>>, vector<64x128xf32>,
    %c0_7 = arith.constant 0 : index
    %c0_8 = arith.constant 0 : index
    %7 = vector.load %arg3[%c0_7, %c0_8] : memref<32x128xbf16, #tpu.memory_space<vmem>>, vector<32x128xbf16>
    %cst_9 = arith.constant 0.000000e+00 : f32
    %8 = vector.broadcast %cst_9 : f32 to vector<8x32xf32>
    %cst_10 = arith.constant 0.000000e+00 : f32
    %9 = vector.broadcast %cst_10 : f32 to vector<8x32xf32>
    %c0_11 = arith.constant 0 : index
    %c0_12 = arith.constant 0 : index
    %10 = vector.load %arg9[%c0_11, %c0_12] : memref<64x128xf32, #tpu.memory_space<vmem>>, vector<8x128xf32>
    %11 = arith.truncf %8 : vector<8x32xf32> to vector<8x32xbf16>
    %cst_13 = arith.constant dense<0.000000e+00> : vector<8x128xf32>
    %12 = tpu.matmul %11, %7, %cst_13 {dimension_numbers = #tpu.dot_dimension_numbers<[1], [0], [0], [1], [0, 0, 1, 1], [], []>} : vector<8x32xbf16>, vector<32x128xbf16>, vector<8x128xf32> -> vector<8x128xf32>
    %13 = arith.addf %10, %12 : vector<8x128xf32>
    %14 = vector.extract_strided_slice %13 {offsets = [0, 0], sizes = [8, 32], strides = [1, 1]} : vector<8x128xf32> to vector<8x32xf32>
    %15 = arith.negf %14 : vector<8x32xf32>
    %16 = math.exp %15 : vector<8x32xf32>
    %cst_14 = arith.constant 1.000000e+00 : f32
    %17 = vector.broadcast %cst_14 : f32 to vector<8x32xf32>
    %18 = arith.addf %17, %16 : vector<8x32xf32>
    %19 = arith.divf %17, %18 : vector<8x32xf32>
    %20 = vector.extract_strided_slice %13 {offsets = [0, 32], sizes = [8, 32], strides = [1, 1]} : vector<8x128xf32> to vector<8x32xf32>
    %21 = arith.negf %20 : vector<8x32xf32>
    %22 = math.exp %21 : vector<8x32xf32>
    %cst_15 = arith.constant 1.000000e+00 : f32
    %23 = vector.broadcast %cst_15 : f32 to vector<8x32xf32>
    %24 = arith.addf %23, %22 : vector<8x32xf32>
    %25 = arith.divf %23, %24 : vector<8x32xf32>
    %26 = vector.extract_strided_slice %13 {offsets = [0, 64], sizes = [8, 32], strides = [1, 1]} : vector<8x128xf32> to vector<8x32xf32>
    %27 = math.tanh %26 : vector<8x32xf32>
    %28 = vector.extract_strided_slice %13 {offsets = [0, 96], sizes = [8, 32], strides = [1, 1]} : vector<8x128xf32> to vector<8x32xf32>
    %29 = arith.negf %28 : vector<8x32xf32>
    %30 = math.exp %29 : vector<8x32xf32>
    %cst_16 = arith.constant 1.000000e+00 : f32
    %31 = vector.broadcast %cst_16 : f32 to vector<8x32xf32>
    %32 = arith.addf %31, %30 : vector<8x32xf32>
    %33 = arith.divf %31, %32 : vector<8x32xf32>
    %34 = arith.mulf %25, %9 : vector<8x32xf32>
    %35 = arith.mulf %19, %27 : vector<8x32xf32>
    %36 = arith.addf %34, %35 : vector<8x32xf32>
    %37 = math.tanh %36 : vector<8x32xf32>
    %38 = arith.mulf %33, %37 : vector<8x32xf32>
    %c8 = arith.constant 8 : index
    %c0_17 = arith.constant 0 : index
    %39 = vector.load %arg9[%c8, %c0_17] : memref<64x128xf32, #tpu.memory_space<vmem>>, vector<8x128xf32>
    %40 = arith.truncf %38 : vector<8x32xf32> to vector<8x32xbf16>
    %cst_18 = arith.constant dense<0.000000e+00> : vector<8x128xf32>
    %41 = tpu.matmul %40, %7, %cst_18 {dimension_numbers = #tpu.dot_dimension_numbers<[1], [0], [0], [1], [0, 0, 1, 1], [], []>} : vector<8x32xbf16>, vector<32x128xbf16>, vector<8x128xf32> -> vector<8x128xf32>
    %42 = arith.addf %39, %41 : vector<8x128xf32>
    %43 = vector.extract_strided_slice %42 {offsets = [0, 0], sizes = [8, 32], strides = [1, 1]} : vector<8x128xf32> to vector<8x32xf32>
    %44 = arith.negf %43 : vector<8x32xf32>
    %45 = math.exp %44 : vector<8x32xf32>
    %cst_19 = arith.constant 1.000000e+00 : f32
    %46 = vector.broadcast %cst_19 : f32 to vector<8x32xf32>
    %47 = arith.addf %46, %45 : vector<8x32xf32>
    %48 = arith.divf %46, %47 : vector<8x32xf32>
    %49 = vector.extract_strided_slice %42 {offsets = [0, 32], sizes = [8, 32], strides = [1, 1]} : vector<8x128xf32> to vector<8x32xf32>
    %50 = arith.negf %49 : vector<8x32xf32>
    %51 = math.exp %50 : vector<8x32xf32>
    %cst_20 = arith.constant 1.000000e+00 : f32
    %52 = vector.broadcast %cst_20 : f32 to vector<8x32xf32>
    %53 = arith.addf %52, %51 : vector<8x32xf32>
    %54 = arith.divf %52, %53 : vector<8x32xf32>
    %55 = vector.extract_strided_slice %42 {offsets = [0, 64], sizes = [8, 32], strides = [1, 1]} : vector<8x128xf32> to vector<8x32xf32>
    %56 = math.tanh %55 : vector<8x32xf32>
    %57 = vector.extract_strided_slice %42 {offsets = [0, 96], sizes = [8, 32], strides = [1, 1]} : vector<8x128xf32> to vector<8x32xf32>
    %58 = arith.negf %57 : vector<8x32xf32>
    %59 = math.exp %58 : vector<8x32xf32>
    %cst_21 = arith.constant 1.000000e+00 : f32
    %60 = vector.broadcast %cst_21 : f32 to vector<8x32xf32>
    %61 = arith.addf %60, %59 : vector<8x32xf32>
    %62 = arith.divf %60, %61 : vector<8x32xf32>
    %63 = arith.mulf %54, %36 : vector<8x32xf32>
    %64 = arith.mulf %48, %56 : vector<8x32xf32>
    %65 = arith.addf %63, %64 : vector<8x32xf32>
    %66 = math.tanh %65 : vector<8x32xf32>
    %67 = arith.mulf %62, %66 : vector<8x32xf32>
    %c16 = arith.constant 16 : index
    %c0_22 = arith.constant 0 : index
    %68 = vector.load %arg9[%c16, %c0_22] : memref<64x128xf32, #tpu.memory_space<vmem>>, vector<8x128xf32>
    %69 = arith.truncf %67 : vector<8x32xf32> to vector<8x32xbf16>
    %cst_23 = arith.constant dense<0.000000e+00> : vector<8x128xf32>
    %70 = tpu.matmul %69, %7, %cst_23 {dimension_numbers = #tpu.dot_dimension_numbers<[1], [0], [0], [1], [0, 0, 1, 1], [], []>} : vector<8x32xbf16>, vector<32x128xbf16>, vector<8x128xf32> -> vector<8x128xf32>
    %71 = arith.addf %68, %70 : vector<8x128xf32>
    %72 = vector.extract_strided_slice %71 {offsets = [0, 0], sizes = [8, 32], strides = [1, 1]} : vector<8x128xf32> to vector<8x32xf32>
    %73 = arith.negf %72 : vector<8x32xf32>
    %74 = math.exp %73 : vector<8x32xf32>
    %cst_24 = arith.constant 1.000000e+00 : f32
    %75 = vector.broadcast %cst_24 : f32 to vector<8x32xf32>
    %76 = arith.addf %75, %74 : vector<8x32xf32>
    %77 = arith.divf %75, %76 : vector<8x32xf32>
    %78 = vector.extract_strided_slice %71 {offsets = [0, 32], sizes = [8, 32], strides = [1, 1]} : vector<8x128xf32> to vector<8x32xf32>
    %79 = arith.negf %78 : vector<8x32xf32>
    %80 = math.exp %79 : vector<8x32xf32>
    %cst_25 = arith.constant 1.000000e+00 : f32
    %81 = vector.broadcast %cst_25 : f32 to vector<8x32xf32>
    %82 = arith.addf %81, %80 : vector<8x32xf32>
    %83 = arith.divf %81, %82 : vector<8x32xf32>
    %84 = vector.extract_strided_slice %71 {offsets = [0, 64], sizes = [8, 32], strides = [1, 1]} : vector<8x128xf32> to vector<8x32xf32>
    %85 = math.tanh %84 : vector<8x32xf32>
    %86 = vector.extract_strided_slice %71 {offsets = [0, 96], sizes = [8, 32], strides = [1, 1]} : vector<8x128xf32> to vector<8x32xf32>
    %87 = arith.negf %86 : vector<8x32xf32>
    %88 = math.exp %87 : vector<8x32xf32>
    %cst_26 = arith.constant 1.000000e+00 : f32
    %89 = vector.broadcast %cst_26 : f32 to vector<8x32xf32>
    %90 = arith.addf %89, %88 : vector<8x32xf32>
    %91 = arith.divf %89, %90 : vector<8x32xf32>
    %92 = arith.mulf %83, %65 : vector<8x32xf32>
    %93 = arith.mulf %77, %85 : vector<8x32xf32>
    %94 = arith.addf %92, %93 : vector<8x32xf32>
    %95 = math.tanh %94 : vector<8x32xf32>
    %96 = arith.mulf %91, %95 : vector<8x32xf32>
    %c24 = arith.constant 24 : index
    %c0_27 = arith.constant 0 : index
    %97 = vector.load %arg9[%c24, %c0_27] : memref<64x128xf32, #tpu.memory_space<vmem>>, vector<8x128xf32>
    %98 = arith.truncf %96 : vector<8x32xf32> to vector<8x32xbf16>
    %cst_28 = arith.constant dense<0.000000e+00> : vector<8x128xf32>
    %99 = tpu.matmul %98, %7, %cst_28 {dimension_numbers = #tpu.dot_dimension_numbers<[1], [0], [0], [1], [0, 0, 1, 1], [], []>} : vector<8x32xbf16>, vector<32x128xbf16>, vector<8x128xf32> -> vector<8x128xf32>
    %100 = arith.addf %97, %99 : vector<8x128xf32>
    %101 = vector.extract_strided_slice %100 {offsets = [0, 0], sizes = [8, 32], strides = [1, 1]} : vector<8x128xf32> to vector<8x32xf32>
    %102 = arith.negf %101 : vector<8x32xf32>
    %103 = math.exp %102 : vector<8x32xf32>
    %cst_29 = arith.constant 1.000000e+00 : f32
    %104 = vector.broadcast %cst_29 : f32 to vector<8x32xf32>
    %105 = arith.addf %104, %103 : vector<8x32xf32>
    %106 = arith.divf %104, %105 : vector<8x32xf32>
    %107 = vector.extract_strided_slice %100 {offsets = [0, 32], sizes = [8, 32], strides = [1, 1]} : vector<8x128xf32> to vector<8x32xf32>
    %108 = arith.negf %107 : vector<8x32xf32>
    %109 = math.exp %108 : vector<8x32xf32>
    %cst_30 = arith.constant 1.000000e+00 : f32
    %110 = vector.broadcast %cst_30 : f32 to vector<8x32xf32>
    %111 = arith.addf %110, %109 : vector<8x32xf32>
    %112 = arith.divf %110, %111 : vector<8x32xf32>
    %113 = vector.extract_strided_slice %100 {offsets = [0, 64], sizes = [8, 32], strides = [1, 1]} : vector<8x128xf32> to vector<8x32xf32>
    %114 = math.tanh %113 : vector<8x32xf32>
    %115 = vector.extract_strided_slice %100 {offsets = [0, 96], sizes = [8, 32], strides = [1, 1]} : vector<8x128xf32> to vector<8x32xf32>
    %116 = arith.negf %115 : vector<8x32xf32>
    %117 = math.exp %116 : vector<8x32xf32>
    %cst_31 = arith.constant 1.000000e+00 : f32
    %118 = vector.broadcast %cst_31 : f32 to vector<8x32xf32>
    %119 = arith.addf %118, %117 : vector<8x32xf32>
    %120 = arith.divf %118, %119 : vector<8x32xf32>
    %121 = arith.mulf %112, %94 : vector<8x32xf32>
    %122 = arith.mulf %106, %114 : vector<8x32xf32>
    %123 = arith.addf %121, %122 : vector<8x32xf32>
    %124 = math.tanh %123 : vector<8x32xf32>
    %125 = arith.mulf %120, %124 : vector<8x32xf32>
    %c32 = arith.constant 32 : index
    %c0_32 = arith.constant 0 : index
    %126 = vector.load %arg9[%c32, %c0_32] : memref<64x128xf32, #tpu.memory_space<vmem>>, vector<8x128xf32>
    %127 = arith.truncf %125 : vector<8x32xf32> to vector<8x32xbf16>
    %cst_33 = arith.constant dense<0.000000e+00> : vector<8x128xf32>
    %128 = tpu.matmul %127, %7, %cst_33 {dimension_numbers = #tpu.dot_dimension_numbers<[1], [0], [0], [1], [0, 0, 1, 1], [], []>} : vector<8x32xbf16>, vector<32x128xbf16>, vector<8x128xf32> -> vector<8x128xf32>
    %129 = arith.addf %126, %128 : vector<8x128xf32>
    %130 = vector.extract_strided_slice %129 {offsets = [0, 0], sizes = [8, 32], strides = [1, 1]} : vector<8x128xf32> to vector<8x32xf32>
    %131 = arith.negf %130 : vector<8x32xf32>
    %132 = math.exp %131 : vector<8x32xf32>
    %cst_34 = arith.constant 1.000000e+00 : f32
    %133 = vector.broadcast %cst_34 : f32 to vector<8x32xf32>
    %134 = arith.addf %133, %132 : vector<8x32xf32>
    %135 = arith.divf %133, %134 : vector<8x32xf32>
    %136 = vector.extract_strided_slice %129 {offsets = [0, 32], sizes = [8, 32], strides = [1, 1]} : vector<8x128xf32> to vector<8x32xf32>
    %137 = arith.negf %136 : vector<8x32xf32>
    %138 = math.exp %137 : vector<8x32xf32>
    %cst_35 = arith.constant 1.000000e+00 : f32
    %139 = vector.broadcast %cst_35 : f32 to vector<8x32xf32>
    %140 = arith.addf %139, %138 : vector<8x32xf32>
    %141 = arith.divf %139, %140 : vector<8x32xf32>
    %142 = vector.extract_strided_slice %129 {offsets = [0, 64], sizes = [8, 32], strides = [1, 1]} : vector<8x128xf32> to vector<8x32xf32>
    %143 = math.tanh %142 : vector<8x32xf32>
    %144 = vector.extract_strided_slice %129 {offsets = [0, 96], sizes = [8, 32], strides = [1, 1]} : vector<8x128xf32> to vector<8x32xf32>
    %145 = arith.negf %144 : vector<8x32xf32>
    %146 = math.exp %145 : vector<8x32xf32>
    %cst_36 = arith.constant 1.000000e+00 : f32
    %147 = vector.broadcast %cst_36 : f32 to vector<8x32xf32>
    %148 = arith.addf %147, %146 : vector<8x32xf32>
    %149 = arith.divf %147, %148 : vector<8x32xf32>
    %150 = arith.mulf %141, %123 : vector<8x32xf32>
    %151 = arith.mulf %135, %143 : vector<8x32xf32>
    %152 = arith.addf %150, %151 : vector<8x32xf32>
    %153 = math.tanh %152 : vector<8x32xf32>
    %154 = arith.mulf %149, %153 : vector<8x32xf32>
    %c40 = arith.constant 40 : index
    %c0_37 = arith.constant 0 : index
    %155 = vector.load %arg9[%c40, %c0_37] : memref<64x128xf32, #tpu.memory_space<vmem>>, vector<8x128xf32>
    %156 = arith.truncf %154 : vector<8x32xf32> to vector<8x32xbf16>
    %cst_38 = arith.constant dense<0.000000e+00> : vector<8x128xf32>
    %157 = tpu.matmul %156, %7, %cst_38 {dimension_numbers = #tpu.dot_dimension_numbers<[1], [0], [0], [1], [0, 0, 1, 1], [], []>} : vector<8x32xbf16>, vector<32x128xbf16>, vector<8x128xf32> -> vector<8x128xf32>
    %158 = arith.addf %155, %157 : vector<8x128xf32>
    %159 = vector.extract_strided_slice %158 {offsets = [0, 0], sizes = [8, 32], strides = [1, 1]} : vector<8x128xf32> to vector<8x32xf32>
    %160 = arith.negf %159 : vector<8x32xf32>
    %161 = math.exp %160 : vector<8x32xf32>
    %cst_39 = arith.constant 1.000000e+00 : f32
    %162 = vector.broadcast %cst_39 : f32 to vector<8x32xf32>
    %163 = arith.addf %162, %161 : vector<8x32xf32>
    %164 = arith.divf %162, %163 : vector<8x32xf32>
    %165 = vector.extract_strided_slice %158 {offsets = [0, 32], sizes = [8, 32], strides = [1, 1]} : vector<8x128xf32> to vector<8x32xf32>
    %166 = arith.negf %165 : vector<8x32xf32>
    %167 = math.exp %166 : vector<8x32xf32>
    %cst_40 = arith.constant 1.000000e+00 : f32
    %168 = vector.broadcast %cst_40 : f32 to vector<8x32xf32>
    %169 = arith.addf %168, %167 : vector<8x32xf32>
    %170 = arith.divf %168, %169 : vector<8x32xf32>
    %171 = vector.extract_strided_slice %158 {offsets = [0, 64], sizes = [8, 32], strides = [1, 1]} : vector<8x128xf32> to vector<8x32xf32>
    %172 = math.tanh %171 : vector<8x32xf32>
    %173 = vector.extract_strided_slice %158 {offsets = [0, 96], sizes = [8, 32], strides = [1, 1]} : vector<8x128xf32> to vector<8x32xf32>
    %174 = arith.negf %173 : vector<8x32xf32>
    %175 = math.exp %174 : vector<8x32xf32>
    %cst_41 = arith.constant 1.000000e+00 : f32
    %176 = vector.broadcast %cst_41 : f32 to vector<8x32xf32>
    %177 = arith.addf %176, %175 : vector<8x32xf32>
    %178 = arith.divf %176, %177 : vector<8x32xf32>
    %179 = arith.mulf %170, %152 : vector<8x32xf32>
    %180 = arith.mulf %164, %172 : vector<8x32xf32>
    %181 = arith.addf %179, %180 : vector<8x32xf32>
    %182 = math.tanh %181 : vector<8x32xf32>
    %183 = arith.mulf %178, %182 : vector<8x32xf32>
    %c48 = arith.constant 48 : index
    %c0_42 = arith.constant 0 : index
    %184 = vector.load %arg9[%c48, %c0_42] : memref<64x128xf32, #tpu.memory_space<vmem>>, vector<8x128xf32>
    %185 = arith.truncf %183 : vector<8x32xf32> to vector<8x32xbf16>
    %cst_43 = arith.constant dense<0.000000e+00> : vector<8x128xf32>
    %186 = tpu.matmul %185, %7, %cst_43 {dimension_numbers = #tpu.dot_dimension_numbers<[1], [0], [0], [1], [0, 0, 1, 1], [], []>} : vector<8x32xbf16>, vector<32x128xbf16>, vector<8x128xf32> -> vector<8x128xf32>
    %187 = arith.addf %184, %186 : vector<8x128xf32>
    %188 = vector.extract_strided_slice %187 {offsets = [0, 0], sizes = [8, 32], strides = [1, 1]} : vector<8x128xf32> to vector<8x32xf32>
    %189 = arith.negf %188 : vector<8x32xf32>
    %190 = math.exp %189 : vector<8x32xf32>
    %cst_44 = arith.constant 1.000000e+00 : f32
    %191 = vector.broadcast %cst_44 : f32 to vector<8x32xf32>
    %192 = arith.addf %191, %190 : vector<8x32xf32>
    %193 = arith.divf %191, %192 : vector<8x32xf32>
    %194 = vector.extract_strided_slice %187 {offsets = [0, 32], sizes = [8, 32], strides = [1, 1]} : vector<8x128xf32> to vector<8x32xf32>
    %195 = arith.negf %194 : vector<8x32xf32>
    %196 = math.exp %195 : vector<8x32xf32>
    %cst_45 = arith.constant 1.000000e+00 : f32
    %197 = vector.broadcast %cst_45 : f32 to vector<8x32xf32>
    %198 = arith.addf %197, %196 : vector<8x32xf32>
    %199 = arith.divf %197, %198 : vector<8x32xf32>
    %200 = vector.extract_strided_slice %187 {offsets = [0, 64], sizes = [8, 32], strides = [1, 1]} : vector<8x128xf32> to vector<8x32xf32>
    %201 = math.tanh %200 : vector<8x32xf32>
    %202 = vector.extract_strided_slice %187 {offsets = [0, 96], sizes = [8, 32], strides = [1, 1]} : vector<8x128xf32> to vector<8x32xf32>
    %203 = arith.negf %202 : vector<8x32xf32>
    %204 = math.exp %203 : vector<8x32xf32>
    %cst_46 = arith.constant 1.000000e+00 : f32
    %205 = vector.broadcast %cst_46 : f32 to vector<8x32xf32>
    %206 = arith.addf %205, %204 : vector<8x32xf32>
    %207 = arith.divf %205, %206 : vector<8x32xf32>
    %208 = arith.mulf %199, %181 : vector<8x32xf32>
    %209 = arith.mulf %193, %201 : vector<8x32xf32>
    %210 = arith.addf %208, %209 : vector<8x32xf32>
    %211 = math.tanh %210 : vector<8x32xf32>
    %212 = arith.mulf %207, %211 : vector<8x32xf32>
    %c56 = arith.constant 56 : index
    %c0_47 = arith.constant 0 : index
    %213 = vector.load %arg9[%c56, %c0_47] : memref<64x128xf32, #tpu.memory_space<vmem>>, vector<8x128xf32>
    %214 = arith.truncf %212 : vector<8x32xf32> to vector<8x32xbf16>
    %cst_48 = arith.constant dense<0.000000e+00> : vector<8x128xf32>
    %215 = tpu.matmul %214, %7, %cst_48 {dimension_numbers = #tpu.dot_dimension_numbers<[1], [0], [0], [1], [0, 0, 1, 1], [], []>} : vector<8x32xbf16>, vector<32x128xbf16>, vector<8x128xf32> -> vector<8x128xf32>
    %216 = arith.addf %213, %215 : vector<8x128xf32>
    %217 = vector.extract_strided_slice %216 {offsets = [0, 0], sizes = [8, 32], strides = [1, 1]} : vector<8x128xf32> to vector<8x32xf32>
    %218 = arith.negf %217 : vector<8x32xf32>
    %219 = math.exp %218 : vector<8x32xf32>
    %cst_49 = arith.constant 1.000000e+00 : f32
    %220 = vector.broadcast %cst_49 : f32 to vector<8x32xf32>
    %221 = arith.addf %220, %219 : vector<8x32xf32>
    %222 = arith.divf %220, %221 : vector<8x32xf32>
    %223 = vector.extract_strided_slice %216 {offsets = [0, 32], sizes = [8, 32], strides = [1, 1]} : vector<8x128xf32> to vector<8x32xf32>
    %224 = arith.negf %223 : vector<8x32xf32>
    %225 = math.exp %224 : vector<8x32xf32>
    %cst_50 = arith.constant 1.000000e+00 : f32
    %226 = vector.broadcast %cst_50 : f32 to vector<8x32xf32>
    %227 = arith.addf %226, %225 : vector<8x32xf32>
    %228 = arith.divf %226, %227 : vector<8x32xf32>
    %229 = vector.extract_strided_slice %216 {offsets = [0, 64], sizes = [8, 32], strides = [1, 1]} : vector<8x128xf32> to vector<8x32xf32>
    %230 = math.tanh %229 : vector<8x32xf32>
    %231 = vector.extract_strided_slice %216 {offsets = [0, 96], sizes = [8, 32], strides = [1, 1]} : vector<8x128xf32> to vector<8x32xf32>
    %232 = arith.negf %231 : vector<8x32xf32>
    %233 = math.exp %232 : vector<8x32xf32>
    %cst_51 = arith.constant 1.000000e+00 : f32
    %234 = vector.broadcast %cst_51 : f32 to vector<8x32xf32>
    %235 = arith.addf %234, %233 : vector<8x32xf32>
    %236 = arith.divf %234, %235 : vector<8x32xf32>
    %237 = arith.mulf %228, %210 : vector<8x32xf32>
    %238 = arith.mulf %222, %230 : vector<8x32xf32>
    %239 = arith.addf %237, %238 : vector<8x32xf32>
    %240 = math.tanh %239 : vector<8x32xf32>
    %241 = arith.mulf %236, %240 : vector<8x32xf32>
    %242 = vector.extract_strided_slice %0 {offsets = [56, 0], sizes = [8, 64], strides = [1, 1]} : vector<64x64xbf16> to vector<8x64xbf16>
    %c0_52 = arith.constant 0 : index
    %c0_53 = arith.constant 0 : index
    %243 = vector.load %arg2[%c0_52, %c0_53] : memref<64x128xbf16, #tpu.memory_space<vmem>>, vector<64x128xbf16>
    %cst_54 = arith.constant dense<0.000000e+00> : vector<8x128xf32>
    %244 = tpu.matmul %242, %243, %cst_54 {dimension_numbers = #tpu.dot_dimension_numbers<[1], [0], [0], [1], [0, 0, 1, 1], [], []>} : vector<8x64xbf16>, vector<64x128xbf16>, vector<8x128xf32> -> vector<8x128xf32>
    %c0_55 = arith.constant 0 : index
    %c0_56 = arith.constant 0 : index
    %245 = vector.load %arg5[%c0_55, %c0_56] : memref<1x128xf32, #tpu.memory_space<vmem>>, vector<1x128xf32>
    %246 = vector.broadcast %245 : vector<1x128xf32> to vector<8x128xf32>
    %247 = arith.addf %244, %246 : vector<8x128xf32>
    %cst_57 = arith.constant 0.000000e+00 : f32
    %248 = vector.broadcast %cst_57 : f32 to vector<8x32xf32>
    %249 = vector.extract_strided_slice %247 {offsets = [0, 0], sizes = [8, 32], strides = [1, 1]} : vector<8x128xf32> to vector<8x32xf32>
    %250 = arith.negf %249 : vector<8x32xf32>
    %251 = math.exp %250 : vector<8x32xf32>
    %cst_58 = arith.constant 1.000000e+00 : f32
    %252 = vector.broadcast %cst_58 : f32 to vector<8x32xf32>
    %253 = arith.addf %252, %251 : vector<8x32xf32>
    %254 = arith.divf %252, %253 : vector<8x32xf32>
    %255 = vector.extract_strided_slice %247 {offsets = [0, 32], sizes = [8, 32], strides = [1, 1]} : vector<8x128xf32> to vector<8x32xf32>
    %256 = arith.negf %255 : vector<8x32xf32>
    %257 = math.exp %256 : vector<8x32xf32>
    %cst_59 = arith.constant 1.000000e+00 : f32
    %258 = vector.broadcast %cst_59 : f32 to vector<8x32xf32>
    %259 = arith.addf %258, %257 : vector<8x32xf32>
    %260 = arith.divf %258, %259 : vector<8x32xf32>
    %261 = vector.extract_strided_slice %247 {offsets = [0, 64], sizes = [8, 32], strides = [1, 1]} : vector<8x128xf32> to vector<8x32xf32>
    %262 = math.tanh %261 : vector<8x32xf32>
    %263 = vector.extract_strided_slice %247 {offsets = [0, 96], sizes = [8, 32], strides = [1, 1]} : vector<8x128xf32> to vector<8x32xf32>
    %264 = arith.negf %263 : vector<8x32xf32>
    %265 = math.exp %264 : vector<8x32xf32>
    %cst_60 = arith.constant 1.000000e+00 : f32
    %266 = vector.broadcast %cst_60 : f32 to vector<8x32xf32>
    %267 = arith.addf %266, %265 : vector<8x32xf32>
    %268 = arith.divf %266, %267 : vector<8x32xf32>
    %269 = arith.mulf %260, %248 : vector<8x32xf32>
    %270 = arith.mulf %254, %262 : vector<8x32xf32>
    %271 = arith.addf %269, %270 : vector<8x32xf32>
    %272 = math.tanh %271 : vector<8x32xf32>
    %273 = arith.mulf %268, %272 : vector<8x32xf32>
    %274 = tpu.concatenate %241, %273 in 1 : vector<8x32xf32>, vector<8x32xf32> -> vector<8x64xf32>
    %275 = arith.truncf %274 : vector<8x64xf32> to vector<8x64xbf16>
    %c0_61 = arith.constant 0 : index
    %c0_62 = arith.constant 0 : index
    %276 = vector.load %arg6[%c0_61, %c0_62] : memref<64x128xbf16, #tpu.memory_space<vmem>>, vector<64x128xbf16>
    %cst_63 = arith.constant dense<0.000000e+00> : vector<8x128xf32>
    %277 = tpu.matmul %275, %276, %cst_63 {dimension_numbers = #tpu.dot_dimension_numbers<[1], [0], [0], [1], [0, 0, 1, 1], [], []>} : vector<8x64xbf16>, vector<64x128xbf16>, vector<8x128xf32> -> vector<8x128xf32>
    %c0_64 = arith.constant 0 : index
    %c0_65 = arith.constant 0 : index
    %278 = vector.load %arg7[%c0_64, %c0_65] : memref<1x128xf32, #tpu.memory_space<vmem>>, vector<1x128xf32>
    %279 = vector.broadcast %278 : vector<1x128xf32> to vector<8x128xf32>
    %280 = arith.addf %277, %279 : vector<8x128xf32>
    %c0_66 = arith.constant 0 : index
    %c0_67 = arith.constant 0 : index
    %281 = vector.load %arg8[%c0_66, %c0_67] : memref<8x128xf32, #tpu.memory_space<vmem>>, vector<8x128xf32>
    tpu.vector_store %arg8[%c0_66, %c0_67], %280 {strides = array<i32>} : memref<8x128xf32, #tpu.memory_space<vmem>>, vector<8x128xf32>,
    return
  }
}

module attributes {stable_mosaic.version = 11 : i64} {
  func.func @_bilstm_layer_kernel(%arg0: memref<64x28xf32, #tpu.memory_space<vmem>>, %arg1: memref<28x256xbf16, #tpu.memory_space<vmem>>, %arg2: memref<64x256xbf16, #tpu.memory_space<vmem>>, %arg3: memref<1x256xf32, #tpu.memory_space<vmem>>, %arg4: memref<64x64xbf16, #tpu.memory_space<vmem>>, %arg5: memref<64x128xf32, #tpu.memory_space<vmem>>, %arg6: memref<64x128xf32, #tpu.memory_space<vmem>>, %arg7: memref<64x64xf32, #tpu.memory_space<vmem>>) attributes {dimension_semantics = [], scalar_prefetch = 0 : i64, scratch_operands = 3 : i64, tpu.core_type = #tpu.core_type<tc>} {
    %c0 = arith.constant 0 : index
    %c0_0 = arith.constant 0 : index
    %0 = vector.load %arg0[%c0, %c0_0] : memref<64x28xf32, #tpu.memory_space<vmem>>, vector<64x28xf32>
    %1 = arith.truncf %0 : vector<64x28xf32> to vector<64x28xbf16>
    %c0_1 = arith.constant 0 : index
    %c0_2 = arith.constant 0 : index
    %2 = vector.load %arg1[%c0_1, %c0_2] : memref<28x256xbf16, #tpu.memory_space<vmem>>, vector<28x256xbf16>
    %cst = arith.constant dense<0.000000e+00> : vector<64x256xf32>
    %3 = tpu.matmul %1, %2, %cst {dimension_numbers = #tpu.dot_dimension_numbers<[1], [0], [0], [1], [0, 0, 1, 1], [], []>} : vector<64x28xbf16>, vector<28x256xbf16>, vector<64x256xf32> -> vector<64x256xf32>
    %c0_3 = arith.constant 0 : index
    %c0_4 = arith.constant 0 : index
    %4 = vector.load %arg3[%c0_3, %c0_4] : memref<1x256xf32, #tpu.memory_space<vmem>>, vector<1x256xf32>
    %5 = vector.broadcast %4 : vector<1x256xf32> to vector<64x256xf32>
    %6 = arith.addf %3, %5 : vector<64x256xf32>
    %7 = vector.extract_strided_slice %6 {offsets = [0, 0], sizes = [64, 128], strides = [1, 1]} : vector<64x256xf32> to vector<64x128xf32>
    %c0_5 = arith.constant 0 : index
    %c0_6 = arith.constant 0 : index
    %8 = vector.load %arg5[%c0_5, %c0_6] : memref<64x128xf32, #tpu.memory_space<vmem>>, vector<64x128xf32>
    tpu.vector_store %arg5[%c0_5, %c0_6], %7 {strides = array<i32>} : memref<64x128xf32, #tpu.memory_space<vmem>>, vector<64x128xf32>,
    %9 = vector.extract_strided_slice %6 {offsets = [0, 128], sizes = [64, 128], strides = [1, 1]} : vector<64x256xf32> to vector<64x128xf32>
    %c0_7 = arith.constant 0 : index
    %c0_8 = arith.constant 0 : index
    %10 = vector.load %arg6[%c0_7, %c0_8] : memref<64x128xf32, #tpu.memory_space<vmem>>, vector<64x128xf32>
    tpu.vector_store %arg6[%c0_7, %c0_8], %9 {strides = array<i32>} : memref<64x128xf32, #tpu.memory_space<vmem>>, vector<64x128xf32>,
    %c0_9 = arith.constant 0 : index
    %c0_10 = arith.constant 0 : index
    %11 = vector.load %arg2[%c0_9, %c0_10] : memref<64x256xbf16, #tpu.memory_space<vmem>>, vector<64x256xbf16>
    %cst_11 = arith.constant 0.000000e+00 : f32
    %12 = vector.broadcast %cst_11 : f32 to vector<8x32xf32>
    %cst_12 = arith.constant 0.000000e+00 : f32
    %13 = vector.broadcast %cst_12 : f32 to vector<8x32xf32>
    %cst_13 = arith.constant 0.000000e+00 : f32
    %14 = vector.broadcast %cst_13 : f32 to vector<8x32xf32>
    %cst_14 = arith.constant 0.000000e+00 : f32
    %15 = vector.broadcast %cst_14 : f32 to vector<8x32xf32>
    %16 = tpu.concatenate %12, %14 in 1 : vector<8x32xf32>, vector<8x32xf32> -> vector<8x64xf32>
    %17 = arith.truncf %16 : vector<8x64xf32> to vector<8x64xbf16>
    %cst_15 = arith.constant dense<0.000000e+00> : vector<8x256xf32>
    %18 = tpu.matmul %17, %11, %cst_15 {dimension_numbers = #tpu.dot_dimension_numbers<[1], [0], [0], [1], [0, 0, 1, 1], [], []>} : vector<8x64xbf16>, vector<64x256xbf16>, vector<8x256xf32> -> vector<8x256xf32>
    %c0_16 = arith.constant 0 : index
    %c0_17 = arith.constant 0 : index
    %19 = vector.load %arg5[%c0_16, %c0_17] : memref<64x128xf32, #tpu.memory_space<vmem>>, vector<8x128xf32>
    %20 = vector.extract_strided_slice %18 {offsets = [0, 0], sizes = [8, 128], strides = [1, 1]} : vector<8x256xf32> to vector<8x128xf32>
    %21 = arith.addf %19, %20 : vector<8x128xf32>
    %c56 = arith.constant 56 : index
    %c0_18 = arith.constant 0 : index
    %22 = vector.load %arg6[%c56, %c0_18] : memref<64x128xf32, #tpu.memory_space<vmem>>, vector<8x128xf32>
    %23 = vector.extract_strided_slice %18 {offsets = [0, 128], sizes = [8, 128], strides = [1, 1]} : vector<8x256xf32> to vector<8x128xf32>
    %24 = arith.addf %22, %23 : vector<8x128xf32>
    %25 = vector.extract_strided_slice %21 {offsets = [0, 0], sizes = [8, 32], strides = [1, 1]} : vector<8x128xf32> to vector<8x32xf32>
    %26 = arith.negf %25 : vector<8x32xf32>
    %27 = math.exp %26 : vector<8x32xf32>
    %cst_19 = arith.constant 1.000000e+00 : f32
    %28 = vector.broadcast %cst_19 : f32 to vector<8x32xf32>
    %29 = arith.addf %28, %27 : vector<8x32xf32>
    %30 = arith.divf %28, %29 : vector<8x32xf32>
    %31 = vector.extract_strided_slice %21 {offsets = [0, 32], sizes = [8, 32], strides = [1, 1]} : vector<8x128xf32> to vector<8x32xf32>
    %32 = arith.negf %31 : vector<8x32xf32>
    %33 = math.exp %32 : vector<8x32xf32>
    %cst_20 = arith.constant 1.000000e+00 : f32
    %34 = vector.broadcast %cst_20 : f32 to vector<8x32xf32>
    %35 = arith.addf %34, %33 : vector<8x32xf32>
    %36 = arith.divf %34, %35 : vector<8x32xf32>
    %37 = vector.extract_strided_slice %21 {offsets = [0, 64], sizes = [8, 32], strides = [1, 1]} : vector<8x128xf32> to vector<8x32xf32>
    %38 = math.tanh %37 : vector<8x32xf32>
    %39 = vector.extract_strided_slice %21 {offsets = [0, 96], sizes = [8, 32], strides = [1, 1]} : vector<8x128xf32> to vector<8x32xf32>
    %40 = arith.negf %39 : vector<8x32xf32>
    %41 = math.exp %40 : vector<8x32xf32>
    %cst_21 = arith.constant 1.000000e+00 : f32
    %42 = vector.broadcast %cst_21 : f32 to vector<8x32xf32>
    %43 = arith.addf %42, %41 : vector<8x32xf32>
    %44 = arith.divf %42, %43 : vector<8x32xf32>
    %45 = arith.mulf %36, %13 : vector<8x32xf32>
    %46 = arith.mulf %30, %38 : vector<8x32xf32>
    %47 = arith.addf %45, %46 : vector<8x32xf32>
    %48 = math.tanh %47 : vector<8x32xf32>
    %49 = arith.mulf %44, %48 : vector<8x32xf32>
    %50 = vector.extract_strided_slice %24 {offsets = [0, 0], sizes = [8, 32], strides = [1, 1]} : vector<8x128xf32> to vector<8x32xf32>
    %51 = arith.negf %50 : vector<8x32xf32>
    %52 = math.exp %51 : vector<8x32xf32>
    %cst_22 = arith.constant 1.000000e+00 : f32
    %53 = vector.broadcast %cst_22 : f32 to vector<8x32xf32>
    %54 = arith.addf %53, %52 : vector<8x32xf32>
    %55 = arith.divf %53, %54 : vector<8x32xf32>
    %56 = vector.extract_strided_slice %24 {offsets = [0, 32], sizes = [8, 32], strides = [1, 1]} : vector<8x128xf32> to vector<8x32xf32>
    %57 = arith.negf %56 : vector<8x32xf32>
    %58 = math.exp %57 : vector<8x32xf32>
    %cst_23 = arith.constant 1.000000e+00 : f32
    %59 = vector.broadcast %cst_23 : f32 to vector<8x32xf32>
    %60 = arith.addf %59, %58 : vector<8x32xf32>
    %61 = arith.divf %59, %60 : vector<8x32xf32>
    %62 = vector.extract_strided_slice %24 {offsets = [0, 64], sizes = [8, 32], strides = [1, 1]} : vector<8x128xf32> to vector<8x32xf32>
    %63 = math.tanh %62 : vector<8x32xf32>
    %64 = vector.extract_strided_slice %24 {offsets = [0, 96], sizes = [8, 32], strides = [1, 1]} : vector<8x128xf32> to vector<8x32xf32>
    %65 = arith.negf %64 : vector<8x32xf32>
    %66 = math.exp %65 : vector<8x32xf32>
    %cst_24 = arith.constant 1.000000e+00 : f32
    %67 = vector.broadcast %cst_24 : f32 to vector<8x32xf32>
    %68 = arith.addf %67, %66 : vector<8x32xf32>
    %69 = arith.divf %67, %68 : vector<8x32xf32>
    %70 = arith.mulf %61, %15 : vector<8x32xf32>
    %71 = arith.mulf %55, %63 : vector<8x32xf32>
    %72 = arith.addf %70, %71 : vector<8x32xf32>
    %73 = math.tanh %72 : vector<8x32xf32>
    %74 = arith.mulf %69, %73 : vector<8x32xf32>
    %c0_25 = arith.constant 0 : index
    %c0_26 = arith.constant 0 : index
    %75 = vector.load %arg7[%c0_25, %c0_26] : memref<64x64xf32, #tpu.memory_space<vmem>>, vector<8x32xf32>
    tpu.vector_store %arg7[%c0_25, %c0_26], %49 {strides = array<i32>} : memref<64x64xf32, #tpu.memory_space<vmem>>, vector<8x32xf32>,
    %c56_27 = arith.constant 56 : index
    %c32 = arith.constant 32 : index
    %76 = vector.load %arg7[%c56_27, %c32] : memref<64x64xf32, #tpu.memory_space<vmem>>, vector<8x32xf32>
    tpu.vector_store %arg7[%c56_27, %c32], %74 {strides = array<i32>} : memref<64x64xf32, #tpu.memory_space<vmem>>, vector<8x32xf32>,
    %77 = tpu.concatenate %49, %74 in 1 : vector<8x32xf32>, vector<8x32xf32> -> vector<8x64xf32>
    %78 = arith.truncf %77 : vector<8x64xf32> to vector<8x64xbf16>
    %cst_28 = arith.constant dense<0.000000e+00> : vector<8x256xf32>
    %79 = tpu.matmul %78, %11, %cst_28 {dimension_numbers = #tpu.dot_dimension_numbers<[1], [0], [0], [1], [0, 0, 1, 1], [], []>} : vector<8x64xbf16>, vector<64x256xbf16>, vector<8x256xf32> -> vector<8x256xf32>
    %c8 = arith.constant 8 : index
    %c0_29 = arith.constant 0 : index
    %80 = vector.load %arg5[%c8, %c0_29] : memref<64x128xf32, #tpu.memory_space<vmem>>, vector<8x128xf32>
    %81 = vector.extract_strided_slice %79 {offsets = [0, 0], sizes = [8, 128], strides = [1, 1]} : vector<8x256xf32> to vector<8x128xf32>
    %82 = arith.addf %80, %81 : vector<8x128xf32>
    %c48 = arith.constant 48 : index
    %c0_30 = arith.constant 0 : index
    %83 = vector.load %arg6[%c48, %c0_30] : memref<64x128xf32, #tpu.memory_space<vmem>>, vector<8x128xf32>
    %84 = vector.extract_strided_slice %79 {offsets = [0, 128], sizes = [8, 128], strides = [1, 1]} : vector<8x256xf32> to vector<8x128xf32>
    %85 = arith.addf %83, %84 : vector<8x128xf32>
    %86 = vector.extract_strided_slice %82 {offsets = [0, 0], sizes = [8, 32], strides = [1, 1]} : vector<8x128xf32> to vector<8x32xf32>
    %87 = arith.negf %86 : vector<8x32xf32>
    %88 = math.exp %87 : vector<8x32xf32>
    %cst_31 = arith.constant 1.000000e+00 : f32
    %89 = vector.broadcast %cst_31 : f32 to vector<8x32xf32>
    %90 = arith.addf %89, %88 : vector<8x32xf32>
    %91 = arith.divf %89, %90 : vector<8x32xf32>
    %92 = vector.extract_strided_slice %82 {offsets = [0, 32], sizes = [8, 32], strides = [1, 1]} : vector<8x128xf32> to vector<8x32xf32>
    %93 = arith.negf %92 : vector<8x32xf32>
    %94 = math.exp %93 : vector<8x32xf32>
    %cst_32 = arith.constant 1.000000e+00 : f32
    %95 = vector.broadcast %cst_32 : f32 to vector<8x32xf32>
    %96 = arith.addf %95, %94 : vector<8x32xf32>
    %97 = arith.divf %95, %96 : vector<8x32xf32>
    %98 = vector.extract_strided_slice %82 {offsets = [0, 64], sizes = [8, 32], strides = [1, 1]} : vector<8x128xf32> to vector<8x32xf32>
    %99 = math.tanh %98 : vector<8x32xf32>
    %100 = vector.extract_strided_slice %82 {offsets = [0, 96], sizes = [8, 32], strides = [1, 1]} : vector<8x128xf32> to vector<8x32xf32>
    %101 = arith.negf %100 : vector<8x32xf32>
    %102 = math.exp %101 : vector<8x32xf32>
    %cst_33 = arith.constant 1.000000e+00 : f32
    %103 = vector.broadcast %cst_33 : f32 to vector<8x32xf32>
    %104 = arith.addf %103, %102 : vector<8x32xf32>
    %105 = arith.divf %103, %104 : vector<8x32xf32>
    %106 = arith.mulf %97, %47 : vector<8x32xf32>
    %107 = arith.mulf %91, %99 : vector<8x32xf32>
    %108 = arith.addf %106, %107 : vector<8x32xf32>
    %109 = math.tanh %108 : vector<8x32xf32>
    %110 = arith.mulf %105, %109 : vector<8x32xf32>
    %111 = vector.extract_strided_slice %85 {offsets = [0, 0], sizes = [8, 32], strides = [1, 1]} : vector<8x128xf32> to vector<8x32xf32>
    %112 = arith.negf %111 : vector<8x32xf32>
    %113 = math.exp %112 : vector<8x32xf32>
    %cst_34 = arith.constant 1.000000e+00 : f32
    %114 = vector.broadcast %cst_34 : f32 to vector<8x32xf32>
    %115 = arith.addf %114, %113 : vector<8x32xf32>
    %116 = arith.divf %114, %115 : vector<8x32xf32>
    %117 = vector.extract_strided_slice %85 {offsets = [0, 32], sizes = [8, 32], strides = [1, 1]} : vector<8x128xf32> to vector<8x32xf32>
    %118 = arith.negf %117 : vector<8x32xf32>
    %119 = math.exp %118 : vector<8x32xf32>
    %cst_35 = arith.constant 1.000000e+00 : f32
    %120 = vector.broadcast %cst_35 : f32 to vector<8x32xf32>
    %121 = arith.addf %120, %119 : vector<8x32xf32>
    %122 = arith.divf %120, %121 : vector<8x32xf32>
    %123 = vector.extract_strided_slice %85 {offsets = [0, 64], sizes = [8, 32], strides = [1, 1]} : vector<8x128xf32> to vector<8x32xf32>
    %124 = math.tanh %123 : vector<8x32xf32>
    %125 = vector.extract_strided_slice %85 {offsets = [0, 96], sizes = [8, 32], strides = [1, 1]} : vector<8x128xf32> to vector<8x32xf32>
    %126 = arith.negf %125 : vector<8x32xf32>
    %127 = math.exp %126 : vector<8x32xf32>
    %cst_36 = arith.constant 1.000000e+00 : f32
    %128 = vector.broadcast %cst_36 : f32 to vector<8x32xf32>
    %129 = arith.addf %128, %127 : vector<8x32xf32>
    %130 = arith.divf %128, %129 : vector<8x32xf32>
    %131 = arith.mulf %122, %72 : vector<8x32xf32>
    %132 = arith.mulf %116, %124 : vector<8x32xf32>
    %133 = arith.addf %131, %132 : vector<8x32xf32>
    %134 = math.tanh %133 : vector<8x32xf32>
    %135 = arith.mulf %130, %134 : vector<8x32xf32>
    %c8_37 = arith.constant 8 : index
    %c0_38 = arith.constant 0 : index
    %136 = vector.load %arg7[%c8_37, %c0_38] : memref<64x64xf32, #tpu.memory_space<vmem>>, vector<8x32xf32>
    tpu.vector_store %arg7[%c8_37, %c0_38], %110 {strides = array<i32>} : memref<64x64xf32, #tpu.memory_space<vmem>>, vector<8x32xf32>,
    %c48_39 = arith.constant 48 : index
    %c32_40 = arith.constant 32 : index
    %137 = vector.load %arg7[%c48_39, %c32_40] : memref<64x64xf32, #tpu.memory_space<vmem>>, vector<8x32xf32>
    tpu.vector_store %arg7[%c48_39, %c32_40], %135 {strides = array<i32>} : memref<64x64xf32, #tpu.memory_space<vmem>>, vector<8x32xf32>,
    %138 = tpu.concatenate %110, %135 in 1 : vector<8x32xf32>, vector<8x32xf32> -> vector<8x64xf32>
    %139 = arith.truncf %138 : vector<8x64xf32> to vector<8x64xbf16>
    %cst_41 = arith.constant dense<0.000000e+00> : vector<8x256xf32>
    %140 = tpu.matmul %139, %11, %cst_41 {dimension_numbers = #tpu.dot_dimension_numbers<[1], [0], [0], [1], [0, 0, 1, 1], [], []>} : vector<8x64xbf16>, vector<64x256xbf16>, vector<8x256xf32> -> vector<8x256xf32>
    %c16 = arith.constant 16 : index
    %c0_42 = arith.constant 0 : index
    %141 = vector.load %arg5[%c16, %c0_42] : memref<64x128xf32, #tpu.memory_space<vmem>>, vector<8x128xf32>
    %142 = vector.extract_strided_slice %140 {offsets = [0, 0], sizes = [8, 128], strides = [1, 1]} : vector<8x256xf32> to vector<8x128xf32>
    %143 = arith.addf %141, %142 : vector<8x128xf32>
    %c40 = arith.constant 40 : index
    %c0_43 = arith.constant 0 : index
    %144 = vector.load %arg6[%c40, %c0_43] : memref<64x128xf32, #tpu.memory_space<vmem>>, vector<8x128xf32>
    %145 = vector.extract_strided_slice %140 {offsets = [0, 128], sizes = [8, 128], strides = [1, 1]} : vector<8x256xf32> to vector<8x128xf32>
    %146 = arith.addf %144, %145 : vector<8x128xf32>
    %147 = vector.extract_strided_slice %143 {offsets = [0, 0], sizes = [8, 32], strides = [1, 1]} : vector<8x128xf32> to vector<8x32xf32>
    %148 = arith.negf %147 : vector<8x32xf32>
    %149 = math.exp %148 : vector<8x32xf32>
    %cst_44 = arith.constant 1.000000e+00 : f32
    %150 = vector.broadcast %cst_44 : f32 to vector<8x32xf32>
    %151 = arith.addf %150, %149 : vector<8x32xf32>
    %152 = arith.divf %150, %151 : vector<8x32xf32>
    %153 = vector.extract_strided_slice %143 {offsets = [0, 32], sizes = [8, 32], strides = [1, 1]} : vector<8x128xf32> to vector<8x32xf32>
    %154 = arith.negf %153 : vector<8x32xf32>
    %155 = math.exp %154 : vector<8x32xf32>
    %cst_45 = arith.constant 1.000000e+00 : f32
    %156 = vector.broadcast %cst_45 : f32 to vector<8x32xf32>
    %157 = arith.addf %156, %155 : vector<8x32xf32>
    %158 = arith.divf %156, %157 : vector<8x32xf32>
    %159 = vector.extract_strided_slice %143 {offsets = [0, 64], sizes = [8, 32], strides = [1, 1]} : vector<8x128xf32> to vector<8x32xf32>
    %160 = math.tanh %159 : vector<8x32xf32>
    %161 = vector.extract_strided_slice %143 {offsets = [0, 96], sizes = [8, 32], strides = [1, 1]} : vector<8x128xf32> to vector<8x32xf32>
    %162 = arith.negf %161 : vector<8x32xf32>
    %163 = math.exp %162 : vector<8x32xf32>
    %cst_46 = arith.constant 1.000000e+00 : f32
    %164 = vector.broadcast %cst_46 : f32 to vector<8x32xf32>
    %165 = arith.addf %164, %163 : vector<8x32xf32>
    %166 = arith.divf %164, %165 : vector<8x32xf32>
    %167 = arith.mulf %158, %108 : vector<8x32xf32>
    %168 = arith.mulf %152, %160 : vector<8x32xf32>
    %169 = arith.addf %167, %168 : vector<8x32xf32>
    %170 = math.tanh %169 : vector<8x32xf32>
    %171 = arith.mulf %166, %170 : vector<8x32xf32>
    %172 = vector.extract_strided_slice %146 {offsets = [0, 0], sizes = [8, 32], strides = [1, 1]} : vector<8x128xf32> to vector<8x32xf32>
    %173 = arith.negf %172 : vector<8x32xf32>
    %174 = math.exp %173 : vector<8x32xf32>
    %cst_47 = arith.constant 1.000000e+00 : f32
    %175 = vector.broadcast %cst_47 : f32 to vector<8x32xf32>
    %176 = arith.addf %175, %174 : vector<8x32xf32>
    %177 = arith.divf %175, %176 : vector<8x32xf32>
    %178 = vector.extract_strided_slice %146 {offsets = [0, 32], sizes = [8, 32], strides = [1, 1]} : vector<8x128xf32> to vector<8x32xf32>
    %179 = arith.negf %178 : vector<8x32xf32>
    %180 = math.exp %179 : vector<8x32xf32>
    %cst_48 = arith.constant 1.000000e+00 : f32
    %181 = vector.broadcast %cst_48 : f32 to vector<8x32xf32>
    %182 = arith.addf %181, %180 : vector<8x32xf32>
    %183 = arith.divf %181, %182 : vector<8x32xf32>
    %184 = vector.extract_strided_slice %146 {offsets = [0, 64], sizes = [8, 32], strides = [1, 1]} : vector<8x128xf32> to vector<8x32xf32>
    %185 = math.tanh %184 : vector<8x32xf32>
    %186 = vector.extract_strided_slice %146 {offsets = [0, 96], sizes = [8, 32], strides = [1, 1]} : vector<8x128xf32> to vector<8x32xf32>
    %187 = arith.negf %186 : vector<8x32xf32>
    %188 = math.exp %187 : vector<8x32xf32>
    %cst_49 = arith.constant 1.000000e+00 : f32
    %189 = vector.broadcast %cst_49 : f32 to vector<8x32xf32>
    %190 = arith.addf %189, %188 : vector<8x32xf32>
    %191 = arith.divf %189, %190 : vector<8x32xf32>
    %192 = arith.mulf %183, %133 : vector<8x32xf32>
    %193 = arith.mulf %177, %185 : vector<8x32xf32>
    %194 = arith.addf %192, %193 : vector<8x32xf32>
    %195 = math.tanh %194 : vector<8x32xf32>
    %196 = arith.mulf %191, %195 : vector<8x32xf32>
    %c16_50 = arith.constant 16 : index
    %c0_51 = arith.constant 0 : index
    %197 = vector.load %arg7[%c16_50, %c0_51] : memref<64x64xf32, #tpu.memory_space<vmem>>, vector<8x32xf32>
    tpu.vector_store %arg7[%c16_50, %c0_51], %171 {strides = array<i32>} : memref<64x64xf32, #tpu.memory_space<vmem>>, vector<8x32xf32>,
    %c40_52 = arith.constant 40 : index
    %c32_53 = arith.constant 32 : index
    %198 = vector.load %arg7[%c40_52, %c32_53] : memref<64x64xf32, #tpu.memory_space<vmem>>, vector<8x32xf32>
    tpu.vector_store %arg7[%c40_52, %c32_53], %196 {strides = array<i32>} : memref<64x64xf32, #tpu.memory_space<vmem>>, vector<8x32xf32>,
    %199 = tpu.concatenate %171, %196 in 1 : vector<8x32xf32>, vector<8x32xf32> -> vector<8x64xf32>
    %200 = arith.truncf %199 : vector<8x64xf32> to vector<8x64xbf16>
    %cst_54 = arith.constant dense<0.000000e+00> : vector<8x256xf32>
    %201 = tpu.matmul %200, %11, %cst_54 {dimension_numbers = #tpu.dot_dimension_numbers<[1], [0], [0], [1], [0, 0, 1, 1], [], []>} : vector<8x64xbf16>, vector<64x256xbf16>, vector<8x256xf32> -> vector<8x256xf32>
    %c24 = arith.constant 24 : index
    %c0_55 = arith.constant 0 : index
    %202 = vector.load %arg5[%c24, %c0_55] : memref<64x128xf32, #tpu.memory_space<vmem>>, vector<8x128xf32>
    %203 = vector.extract_strided_slice %201 {offsets = [0, 0], sizes = [8, 128], strides = [1, 1]} : vector<8x256xf32> to vector<8x128xf32>
    %204 = arith.addf %202, %203 : vector<8x128xf32>
    %c32_56 = arith.constant 32 : index
    %c0_57 = arith.constant 0 : index
    %205 = vector.load %arg6[%c32_56, %c0_57] : memref<64x128xf32, #tpu.memory_space<vmem>>, vector<8x128xf32>
    %206 = vector.extract_strided_slice %201 {offsets = [0, 128], sizes = [8, 128], strides = [1, 1]} : vector<8x256xf32> to vector<8x128xf32>
    %207 = arith.addf %205, %206 : vector<8x128xf32>
    %208 = vector.extract_strided_slice %204 {offsets = [0, 0], sizes = [8, 32], strides = [1, 1]} : vector<8x128xf32> to vector<8x32xf32>
    %209 = arith.negf %208 : vector<8x32xf32>
    %210 = math.exp %209 : vector<8x32xf32>
    %cst_58 = arith.constant 1.000000e+00 : f32
    %211 = vector.broadcast %cst_58 : f32 to vector<8x32xf32>
    %212 = arith.addf %211, %210 : vector<8x32xf32>
    %213 = arith.divf %211, %212 : vector<8x32xf32>
    %214 = vector.extract_strided_slice %204 {offsets = [0, 32], sizes = [8, 32], strides = [1, 1]} : vector<8x128xf32> to vector<8x32xf32>
    %215 = arith.negf %214 : vector<8x32xf32>
    %216 = math.exp %215 : vector<8x32xf32>
    %cst_59 = arith.constant 1.000000e+00 : f32
    %217 = vector.broadcast %cst_59 : f32 to vector<8x32xf32>
    %218 = arith.addf %217, %216 : vector<8x32xf32>
    %219 = arith.divf %217, %218 : vector<8x32xf32>
    %220 = vector.extract_strided_slice %204 {offsets = [0, 64], sizes = [8, 32], strides = [1, 1]} : vector<8x128xf32> to vector<8x32xf32>
    %221 = math.tanh %220 : vector<8x32xf32>
    %222 = vector.extract_strided_slice %204 {offsets = [0, 96], sizes = [8, 32], strides = [1, 1]} : vector<8x128xf32> to vector<8x32xf32>
    %223 = arith.negf %222 : vector<8x32xf32>
    %224 = math.exp %223 : vector<8x32xf32>
    %cst_60 = arith.constant 1.000000e+00 : f32
    %225 = vector.broadcast %cst_60 : f32 to vector<8x32xf32>
    %226 = arith.addf %225, %224 : vector<8x32xf32>
    %227 = arith.divf %225, %226 : vector<8x32xf32>
    %228 = arith.mulf %219, %169 : vector<8x32xf32>
    %229 = arith.mulf %213, %221 : vector<8x32xf32>
    %230 = arith.addf %228, %229 : vector<8x32xf32>
    %231 = math.tanh %230 : vector<8x32xf32>
    %232 = arith.mulf %227, %231 : vector<8x32xf32>
    %233 = vector.extract_strided_slice %207 {offsets = [0, 0], sizes = [8, 32], strides = [1, 1]} : vector<8x128xf32> to vector<8x32xf32>
    %234 = arith.negf %233 : vector<8x32xf32>
    %235 = math.exp %234 : vector<8x32xf32>
    %cst_61 = arith.constant 1.000000e+00 : f32
    %236 = vector.broadcast %cst_61 : f32 to vector<8x32xf32>
    %237 = arith.addf %236, %235 : vector<8x32xf32>
    %238 = arith.divf %236, %237 : vector<8x32xf32>
    %239 = vector.extract_strided_slice %207 {offsets = [0, 32], sizes = [8, 32], strides = [1, 1]} : vector<8x128xf32> to vector<8x32xf32>
    %240 = arith.negf %239 : vector<8x32xf32>
    %241 = math.exp %240 : vector<8x32xf32>
    %cst_62 = arith.constant 1.000000e+00 : f32
    %242 = vector.broadcast %cst_62 : f32 to vector<8x32xf32>
    %243 = arith.addf %242, %241 : vector<8x32xf32>
    %244 = arith.divf %242, %243 : vector<8x32xf32>
    %245 = vector.extract_strided_slice %207 {offsets = [0, 64], sizes = [8, 32], strides = [1, 1]} : vector<8x128xf32> to vector<8x32xf32>
    %246 = math.tanh %245 : vector<8x32xf32>
    %247 = vector.extract_strided_slice %207 {offsets = [0, 96], sizes = [8, 32], strides = [1, 1]} : vector<8x128xf32> to vector<8x32xf32>
    %248 = arith.negf %247 : vector<8x32xf32>
    %249 = math.exp %248 : vector<8x32xf32>
    %cst_63 = arith.constant 1.000000e+00 : f32
    %250 = vector.broadcast %cst_63 : f32 to vector<8x32xf32>
    %251 = arith.addf %250, %249 : vector<8x32xf32>
    %252 = arith.divf %250, %251 : vector<8x32xf32>
    %253 = arith.mulf %244, %194 : vector<8x32xf32>
    %254 = arith.mulf %238, %246 : vector<8x32xf32>
    %255 = arith.addf %253, %254 : vector<8x32xf32>
    %256 = math.tanh %255 : vector<8x32xf32>
    %257 = arith.mulf %252, %256 : vector<8x32xf32>
    %c24_64 = arith.constant 24 : index
    %c0_65 = arith.constant 0 : index
    %258 = vector.load %arg7[%c24_64, %c0_65] : memref<64x64xf32, #tpu.memory_space<vmem>>, vector<8x32xf32>
    tpu.vector_store %arg7[%c24_64, %c0_65], %232 {strides = array<i32>} : memref<64x64xf32, #tpu.memory_space<vmem>>, vector<8x32xf32>,
    %c32_66 = arith.constant 32 : index
    %c32_67 = arith.constant 32 : index
    %259 = vector.load %arg7[%c32_66, %c32_67] : memref<64x64xf32, #tpu.memory_space<vmem>>, vector<8x32xf32>
    tpu.vector_store %arg7[%c32_66, %c32_67], %257 {strides = array<i32>} : memref<64x64xf32, #tpu.memory_space<vmem>>, vector<8x32xf32>,
    %260 = tpu.concatenate %232, %257 in 1 : vector<8x32xf32>, vector<8x32xf32> -> vector<8x64xf32>
    %261 = arith.truncf %260 : vector<8x64xf32> to vector<8x64xbf16>
    %cst_68 = arith.constant dense<0.000000e+00> : vector<8x256xf32>
    %262 = tpu.matmul %261, %11, %cst_68 {dimension_numbers = #tpu.dot_dimension_numbers<[1], [0], [0], [1], [0, 0, 1, 1], [], []>} : vector<8x64xbf16>, vector<64x256xbf16>, vector<8x256xf32> -> vector<8x256xf32>
    %c32_69 = arith.constant 32 : index
    %c0_70 = arith.constant 0 : index
    %263 = vector.load %arg5[%c32_69, %c0_70] : memref<64x128xf32, #tpu.memory_space<vmem>>, vector<8x128xf32>
    %264 = vector.extract_strided_slice %262 {offsets = [0, 0], sizes = [8, 128], strides = [1, 1]} : vector<8x256xf32> to vector<8x128xf32>
    %265 = arith.addf %263, %264 : vector<8x128xf32>
    %c24_71 = arith.constant 24 : index
    %c0_72 = arith.constant 0 : index
    %266 = vector.load %arg6[%c24_71, %c0_72] : memref<64x128xf32, #tpu.memory_space<vmem>>, vector<8x128xf32>
    %267 = vector.extract_strided_slice %262 {offsets = [0, 128], sizes = [8, 128], strides = [1, 1]} : vector<8x256xf32> to vector<8x128xf32>
    %268 = arith.addf %266, %267 : vector<8x128xf32>
    %269 = vector.extract_strided_slice %265 {offsets = [0, 0], sizes = [8, 32], strides = [1, 1]} : vector<8x128xf32> to vector<8x32xf32>
    %270 = arith.negf %269 : vector<8x32xf32>
    %271 = math.exp %270 : vector<8x32xf32>
    %cst_73 = arith.constant 1.000000e+00 : f32
    %272 = vector.broadcast %cst_73 : f32 to vector<8x32xf32>
    %273 = arith.addf %272, %271 : vector<8x32xf32>
    %274 = arith.divf %272, %273 : vector<8x32xf32>
    %275 = vector.extract_strided_slice %265 {offsets = [0, 32], sizes = [8, 32], strides = [1, 1]} : vector<8x128xf32> to vector<8x32xf32>
    %276 = arith.negf %275 : vector<8x32xf32>
    %277 = math.exp %276 : vector<8x32xf32>
    %cst_74 = arith.constant 1.000000e+00 : f32
    %278 = vector.broadcast %cst_74 : f32 to vector<8x32xf32>
    %279 = arith.addf %278, %277 : vector<8x32xf32>
    %280 = arith.divf %278, %279 : vector<8x32xf32>
    %281 = vector.extract_strided_slice %265 {offsets = [0, 64], sizes = [8, 32], strides = [1, 1]} : vector<8x128xf32> to vector<8x32xf32>
    %282 = math.tanh %281 : vector<8x32xf32>
    %283 = vector.extract_strided_slice %265 {offsets = [0, 96], sizes = [8, 32], strides = [1, 1]} : vector<8x128xf32> to vector<8x32xf32>
    %284 = arith.negf %283 : vector<8x32xf32>
    %285 = math.exp %284 : vector<8x32xf32>
    %cst_75 = arith.constant 1.000000e+00 : f32
    %286 = vector.broadcast %cst_75 : f32 to vector<8x32xf32>
    %287 = arith.addf %286, %285 : vector<8x32xf32>
    %288 = arith.divf %286, %287 : vector<8x32xf32>
    %289 = arith.mulf %280, %230 : vector<8x32xf32>
    %290 = arith.mulf %274, %282 : vector<8x32xf32>
    %291 = arith.addf %289, %290 : vector<8x32xf32>
    %292 = math.tanh %291 : vector<8x32xf32>
    %293 = arith.mulf %288, %292 : vector<8x32xf32>
    %294 = vector.extract_strided_slice %268 {offsets = [0, 0], sizes = [8, 32], strides = [1, 1]} : vector<8x128xf32> to vector<8x32xf32>
    %295 = arith.negf %294 : vector<8x32xf32>
    %296 = math.exp %295 : vector<8x32xf32>
    %cst_76 = arith.constant 1.000000e+00 : f32
    %297 = vector.broadcast %cst_76 : f32 to vector<8x32xf32>
    %298 = arith.addf %297, %296 : vector<8x32xf32>
    %299 = arith.divf %297, %298 : vector<8x32xf32>
    %300 = vector.extract_strided_slice %268 {offsets = [0, 32], sizes = [8, 32], strides = [1, 1]} : vector<8x128xf32> to vector<8x32xf32>
    %301 = arith.negf %300 : vector<8x32xf32>
    %302 = math.exp %301 : vector<8x32xf32>
    %cst_77 = arith.constant 1.000000e+00 : f32
    %303 = vector.broadcast %cst_77 : f32 to vector<8x32xf32>
    %304 = arith.addf %303, %302 : vector<8x32xf32>
    %305 = arith.divf %303, %304 : vector<8x32xf32>
    %306 = vector.extract_strided_slice %268 {offsets = [0, 64], sizes = [8, 32], strides = [1, 1]} : vector<8x128xf32> to vector<8x32xf32>
    %307 = math.tanh %306 : vector<8x32xf32>
    %308 = vector.extract_strided_slice %268 {offsets = [0, 96], sizes = [8, 32], strides = [1, 1]} : vector<8x128xf32> to vector<8x32xf32>
    %309 = arith.negf %308 : vector<8x32xf32>
    %310 = math.exp %309 : vector<8x32xf32>
    %cst_78 = arith.constant 1.000000e+00 : f32
    %311 = vector.broadcast %cst_78 : f32 to vector<8x32xf32>
    %312 = arith.addf %311, %310 : vector<8x32xf32>
    %313 = arith.divf %311, %312 : vector<8x32xf32>
    %314 = arith.mulf %305, %255 : vector<8x32xf32>
    %315 = arith.mulf %299, %307 : vector<8x32xf32>
    %316 = arith.addf %314, %315 : vector<8x32xf32>
    %317 = math.tanh %316 : vector<8x32xf32>
    %318 = arith.mulf %313, %317 : vector<8x32xf32>
    %c32_79 = arith.constant 32 : index
    %c0_80 = arith.constant 0 : index
    %319 = vector.load %arg7[%c32_79, %c0_80] : memref<64x64xf32, #tpu.memory_space<vmem>>, vector<8x32xf32>
    tpu.vector_store %arg7[%c32_79, %c0_80], %293 {strides = array<i32>} : memref<64x64xf32, #tpu.memory_space<vmem>>, vector<8x32xf32>,
    %c24_81 = arith.constant 24 : index
    %c32_82 = arith.constant 32 : index
    %320 = vector.load %arg7[%c24_81, %c32_82] : memref<64x64xf32, #tpu.memory_space<vmem>>, vector<8x32xf32>
    tpu.vector_store %arg7[%c24_81, %c32_82], %318 {strides = array<i32>} : memref<64x64xf32, #tpu.memory_space<vmem>>, vector<8x32xf32>,
    %321 = tpu.concatenate %293, %318 in 1 : vector<8x32xf32>, vector<8x32xf32> -> vector<8x64xf32>
    %322 = arith.truncf %321 : vector<8x64xf32> to vector<8x64xbf16>
    %cst_83 = arith.constant dense<0.000000e+00> : vector<8x256xf32>
    %323 = tpu.matmul %322, %11, %cst_83 {dimension_numbers = #tpu.dot_dimension_numbers<[1], [0], [0], [1], [0, 0, 1, 1], [], []>} : vector<8x64xbf16>, vector<64x256xbf16>, vector<8x256xf32> -> vector<8x256xf32>
    %c40_84 = arith.constant 40 : index
    %c0_85 = arith.constant 0 : index
    %324 = vector.load %arg5[%c40_84, %c0_85] : memref<64x128xf32, #tpu.memory_space<vmem>>, vector<8x128xf32>
    %325 = vector.extract_strided_slice %323 {offsets = [0, 0], sizes = [8, 128], strides = [1, 1]} : vector<8x256xf32> to vector<8x128xf32>
    %326 = arith.addf %324, %325 : vector<8x128xf32>
    %c16_86 = arith.constant 16 : index
    %c0_87 = arith.constant 0 : index
    %327 = vector.load %arg6[%c16_86, %c0_87] : memref<64x128xf32, #tpu.memory_space<vmem>>, vector<8x128xf32>
    %328 = vector.extract_strided_slice %323 {offsets = [0, 128], sizes = [8, 128], strides = [1, 1]} : vector<8x256xf32> to vector<8x128xf32>
    %329 = arith.addf %327, %328 : vector<8x128xf32>
    %330 = vector.extract_strided_slice %326 {offsets = [0, 0], sizes = [8, 32], strides = [1, 1]} : vector<8x128xf32> to vector<8x32xf32>
    %331 = arith.negf %330 : vector<8x32xf32>
    %332 = math.exp %331 : vector<8x32xf32>
    %cst_88 = arith.constant 1.000000e+00 : f32
    %333 = vector.broadcast %cst_88 : f32 to vector<8x32xf32>
    %334 = arith.addf %333, %332 : vector<8x32xf32>
    %335 = arith.divf %333, %334 : vector<8x32xf32>
    %336 = vector.extract_strided_slice %326 {offsets = [0, 32], sizes = [8, 32], strides = [1, 1]} : vector<8x128xf32> to vector<8x32xf32>
    %337 = arith.negf %336 : vector<8x32xf32>
    %338 = math.exp %337 : vector<8x32xf32>
    %cst_89 = arith.constant 1.000000e+00 : f32
    %339 = vector.broadcast %cst_89 : f32 to vector<8x32xf32>
    %340 = arith.addf %339, %338 : vector<8x32xf32>
    %341 = arith.divf %339, %340 : vector<8x32xf32>
    %342 = vector.extract_strided_slice %326 {offsets = [0, 64], sizes = [8, 32], strides = [1, 1]} : vector<8x128xf32> to vector<8x32xf32>
    %343 = math.tanh %342 : vector<8x32xf32>
    %344 = vector.extract_strided_slice %326 {offsets = [0, 96], sizes = [8, 32], strides = [1, 1]} : vector<8x128xf32> to vector<8x32xf32>
    %345 = arith.negf %344 : vector<8x32xf32>
    %346 = math.exp %345 : vector<8x32xf32>
    %cst_90 = arith.constant 1.000000e+00 : f32
    %347 = vector.broadcast %cst_90 : f32 to vector<8x32xf32>
    %348 = arith.addf %347, %346 : vector<8x32xf32>
    %349 = arith.divf %347, %348 : vector<8x32xf32>
    %350 = arith.mulf %341, %291 : vector<8x32xf32>
    %351 = arith.mulf %335, %343 : vector<8x32xf32>
    %352 = arith.addf %350, %351 : vector<8x32xf32>
    %353 = math.tanh %352 : vector<8x32xf32>
    %354 = arith.mulf %349, %353 : vector<8x32xf32>
    %355 = vector.extract_strided_slice %329 {offsets = [0, 0], sizes = [8, 32], strides = [1, 1]} : vector<8x128xf32> to vector<8x32xf32>
    %356 = arith.negf %355 : vector<8x32xf32>
    %357 = math.exp %356 : vector<8x32xf32>
    %cst_91 = arith.constant 1.000000e+00 : f32
    %358 = vector.broadcast %cst_91 : f32 to vector<8x32xf32>
    %359 = arith.addf %358, %357 : vector<8x32xf32>
    %360 = arith.divf %358, %359 : vector<8x32xf32>
    %361 = vector.extract_strided_slice %329 {offsets = [0, 32], sizes = [8, 32], strides = [1, 1]} : vector<8x128xf32> to vector<8x32xf32>
    %362 = arith.negf %361 : vector<8x32xf32>
    %363 = math.exp %362 : vector<8x32xf32>
    %cst_92 = arith.constant 1.000000e+00 : f32
    %364 = vector.broadcast %cst_92 : f32 to vector<8x32xf32>
    %365 = arith.addf %364, %363 : vector<8x32xf32>
    %366 = arith.divf %364, %365 : vector<8x32xf32>
    %367 = vector.extract_strided_slice %329 {offsets = [0, 64], sizes = [8, 32], strides = [1, 1]} : vector<8x128xf32> to vector<8x32xf32>
    %368 = math.tanh %367 : vector<8x32xf32>
    %369 = vector.extract_strided_slice %329 {offsets = [0, 96], sizes = [8, 32], strides = [1, 1]} : vector<8x128xf32> to vector<8x32xf32>
    %370 = arith.negf %369 : vector<8x32xf32>
    %371 = math.exp %370 : vector<8x32xf32>
    %cst_93 = arith.constant 1.000000e+00 : f32
    %372 = vector.broadcast %cst_93 : f32 to vector<8x32xf32>
    %373 = arith.addf %372, %371 : vector<8x32xf32>
    %374 = arith.divf %372, %373 : vector<8x32xf32>
    %375 = arith.mulf %366, %316 : vector<8x32xf32>
    %376 = arith.mulf %360, %368 : vector<8x32xf32>
    %377 = arith.addf %375, %376 : vector<8x32xf32>
    %378 = math.tanh %377 : vector<8x32xf32>
    %379 = arith.mulf %374, %378 : vector<8x32xf32>
    %c40_94 = arith.constant 40 : index
    %c0_95 = arith.constant 0 : index
    %380 = vector.load %arg7[%c40_94, %c0_95] : memref<64x64xf32, #tpu.memory_space<vmem>>, vector<8x32xf32>
    tpu.vector_store %arg7[%c40_94, %c0_95], %354 {strides = array<i32>} : memref<64x64xf32, #tpu.memory_space<vmem>>, vector<8x32xf32>,
    %c16_96 = arith.constant 16 : index
    %c32_97 = arith.constant 32 : index
    %381 = vector.load %arg7[%c16_96, %c32_97] : memref<64x64xf32, #tpu.memory_space<vmem>>, vector<8x32xf32>
    tpu.vector_store %arg7[%c16_96, %c32_97], %379 {strides = array<i32>} : memref<64x64xf32, #tpu.memory_space<vmem>>, vector<8x32xf32>,
    %382 = tpu.concatenate %354, %379 in 1 : vector<8x32xf32>, vector<8x32xf32> -> vector<8x64xf32>
    %383 = arith.truncf %382 : vector<8x64xf32> to vector<8x64xbf16>
    %cst_98 = arith.constant dense<0.000000e+00> : vector<8x256xf32>
    %384 = tpu.matmul %383, %11, %cst_98 {dimension_numbers = #tpu.dot_dimension_numbers<[1], [0], [0], [1], [0, 0, 1, 1], [], []>} : vector<8x64xbf16>, vector<64x256xbf16>, vector<8x256xf32> -> vector<8x256xf32>
    %c48_99 = arith.constant 48 : index
    %c0_100 = arith.constant 0 : index
    %385 = vector.load %arg5[%c48_99, %c0_100] : memref<64x128xf32, #tpu.memory_space<vmem>>, vector<8x128xf32>
    %386 = vector.extract_strided_slice %384 {offsets = [0, 0], sizes = [8, 128], strides = [1, 1]} : vector<8x256xf32> to vector<8x128xf32>
    %387 = arith.addf %385, %386 : vector<8x128xf32>
    %c8_101 = arith.constant 8 : index
    %c0_102 = arith.constant 0 : index
    %388 = vector.load %arg6[%c8_101, %c0_102] : memref<64x128xf32, #tpu.memory_space<vmem>>, vector<8x128xf32>
    %389 = vector.extract_strided_slice %384 {offsets = [0, 128], sizes = [8, 128], strides = [1, 1]} : vector<8x256xf32> to vector<8x128xf32>
    %390 = arith.addf %388, %389 : vector<8x128xf32>
    %391 = vector.extract_strided_slice %387 {offsets = [0, 0], sizes = [8, 32], strides = [1, 1]} : vector<8x128xf32> to vector<8x32xf32>
    %392 = arith.negf %391 : vector<8x32xf32>
    %393 = math.exp %392 : vector<8x32xf32>
    %cst_103 = arith.constant 1.000000e+00 : f32
    %394 = vector.broadcast %cst_103 : f32 to vector<8x32xf32>
    %395 = arith.addf %394, %393 : vector<8x32xf32>
    %396 = arith.divf %394, %395 : vector<8x32xf32>
    %397 = vector.extract_strided_slice %387 {offsets = [0, 32], sizes = [8, 32], strides = [1, 1]} : vector<8x128xf32> to vector<8x32xf32>
    %398 = arith.negf %397 : vector<8x32xf32>
    %399 = math.exp %398 : vector<8x32xf32>
    %cst_104 = arith.constant 1.000000e+00 : f32
    %400 = vector.broadcast %cst_104 : f32 to vector<8x32xf32>
    %401 = arith.addf %400, %399 : vector<8x32xf32>
    %402 = arith.divf %400, %401 : vector<8x32xf32>
    %403 = vector.extract_strided_slice %387 {offsets = [0, 64], sizes = [8, 32], strides = [1, 1]} : vector<8x128xf32> to vector<8x32xf32>
    %404 = math.tanh %403 : vector<8x32xf32>
    %405 = vector.extract_strided_slice %387 {offsets = [0, 96], sizes = [8, 32], strides = [1, 1]} : vector<8x128xf32> to vector<8x32xf32>
    %406 = arith.negf %405 : vector<8x32xf32>
    %407 = math.exp %406 : vector<8x32xf32>
    %cst_105 = arith.constant 1.000000e+00 : f32
    %408 = vector.broadcast %cst_105 : f32 to vector<8x32xf32>
    %409 = arith.addf %408, %407 : vector<8x32xf32>
    %410 = arith.divf %408, %409 : vector<8x32xf32>
    %411 = arith.mulf %402, %352 : vector<8x32xf32>
    %412 = arith.mulf %396, %404 : vector<8x32xf32>
    %413 = arith.addf %411, %412 : vector<8x32xf32>
    %414 = math.tanh %413 : vector<8x32xf32>
    %415 = arith.mulf %410, %414 : vector<8x32xf32>
    %416 = vector.extract_strided_slice %390 {offsets = [0, 0], sizes = [8, 32], strides = [1, 1]} : vector<8x128xf32> to vector<8x32xf32>
    %417 = arith.negf %416 : vector<8x32xf32>
    %418 = math.exp %417 : vector<8x32xf32>
    %cst_106 = arith.constant 1.000000e+00 : f32
    %419 = vector.broadcast %cst_106 : f32 to vector<8x32xf32>
    %420 = arith.addf %419, %418 : vector<8x32xf32>
    %421 = arith.divf %419, %420 : vector<8x32xf32>
    %422 = vector.extract_strided_slice %390 {offsets = [0, 32], sizes = [8, 32], strides = [1, 1]} : vector<8x128xf32> to vector<8x32xf32>
    %423 = arith.negf %422 : vector<8x32xf32>
    %424 = math.exp %423 : vector<8x32xf32>
    %cst_107 = arith.constant 1.000000e+00 : f32
    %425 = vector.broadcast %cst_107 : f32 to vector<8x32xf32>
    %426 = arith.addf %425, %424 : vector<8x32xf32>
    %427 = arith.divf %425, %426 : vector<8x32xf32>
    %428 = vector.extract_strided_slice %390 {offsets = [0, 64], sizes = [8, 32], strides = [1, 1]} : vector<8x128xf32> to vector<8x32xf32>
    %429 = math.tanh %428 : vector<8x32xf32>
    %430 = vector.extract_strided_slice %390 {offsets = [0, 96], sizes = [8, 32], strides = [1, 1]} : vector<8x128xf32> to vector<8x32xf32>
    %431 = arith.negf %430 : vector<8x32xf32>
    %432 = math.exp %431 : vector<8x32xf32>
    %cst_108 = arith.constant 1.000000e+00 : f32
    %433 = vector.broadcast %cst_108 : f32 to vector<8x32xf32>
    %434 = arith.addf %433, %432 : vector<8x32xf32>
    %435 = arith.divf %433, %434 : vector<8x32xf32>
    %436 = arith.mulf %427, %377 : vector<8x32xf32>
    %437 = arith.mulf %421, %429 : vector<8x32xf32>
    %438 = arith.addf %436, %437 : vector<8x32xf32>
    %439 = math.tanh %438 : vector<8x32xf32>
    %440 = arith.mulf %435, %439 : vector<8x32xf32>
    %c48_109 = arith.constant 48 : index
    %c0_110 = arith.constant 0 : index
    %441 = vector.load %arg7[%c48_109, %c0_110] : memref<64x64xf32, #tpu.memory_space<vmem>>, vector<8x32xf32>
    tpu.vector_store %arg7[%c48_109, %c0_110], %415 {strides = array<i32>} : memref<64x64xf32, #tpu.memory_space<vmem>>, vector<8x32xf32>,
    %c8_111 = arith.constant 8 : index
    %c32_112 = arith.constant 32 : index
    %442 = vector.load %arg7[%c8_111, %c32_112] : memref<64x64xf32, #tpu.memory_space<vmem>>, vector<8x32xf32>
    tpu.vector_store %arg7[%c8_111, %c32_112], %440 {strides = array<i32>} : memref<64x64xf32, #tpu.memory_space<vmem>>, vector<8x32xf32>,
    %443 = tpu.concatenate %415, %440 in 1 : vector<8x32xf32>, vector<8x32xf32> -> vector<8x64xf32>
    %444 = arith.truncf %443 : vector<8x64xf32> to vector<8x64xbf16>
    %cst_113 = arith.constant dense<0.000000e+00> : vector<8x256xf32>
    %445 = tpu.matmul %444, %11, %cst_113 {dimension_numbers = #tpu.dot_dimension_numbers<[1], [0], [0], [1], [0, 0, 1, 1], [], []>} : vector<8x64xbf16>, vector<64x256xbf16>, vector<8x256xf32> -> vector<8x256xf32>
    %c56_114 = arith.constant 56 : index
    %c0_115 = arith.constant 0 : index
    %446 = vector.load %arg5[%c56_114, %c0_115] : memref<64x128xf32, #tpu.memory_space<vmem>>, vector<8x128xf32>
    %447 = vector.extract_strided_slice %445 {offsets = [0, 0], sizes = [8, 128], strides = [1, 1]} : vector<8x256xf32> to vector<8x128xf32>
    %448 = arith.addf %446, %447 : vector<8x128xf32>
    %c0_116 = arith.constant 0 : index
    %c0_117 = arith.constant 0 : index
    %449 = vector.load %arg6[%c0_116, %c0_117] : memref<64x128xf32, #tpu.memory_space<vmem>>, vector<8x128xf32>
    %450 = vector.extract_strided_slice %445 {offsets = [0, 128], sizes = [8, 128], strides = [1, 1]} : vector<8x256xf32> to vector<8x128xf32>
    %451 = arith.addf %449, %450 : vector<8x128xf32>
    %452 = vector.extract_strided_slice %448 {offsets = [0, 0], sizes = [8, 32], strides = [1, 1]} : vector<8x128xf32> to vector<8x32xf32>
    %453 = arith.negf %452 : vector<8x32xf32>
    %454 = math.exp %453 : vector<8x32xf32>
    %cst_118 = arith.constant 1.000000e+00 : f32
    %455 = vector.broadcast %cst_118 : f32 to vector<8x32xf32>
    %456 = arith.addf %455, %454 : vector<8x32xf32>
    %457 = arith.divf %455, %456 : vector<8x32xf32>
    %458 = vector.extract_strided_slice %448 {offsets = [0, 32], sizes = [8, 32], strides = [1, 1]} : vector<8x128xf32> to vector<8x32xf32>
    %459 = arith.negf %458 : vector<8x32xf32>
    %460 = math.exp %459 : vector<8x32xf32>
    %cst_119 = arith.constant 1.000000e+00 : f32
    %461 = vector.broadcast %cst_119 : f32 to vector<8x32xf32>
    %462 = arith.addf %461, %460 : vector<8x32xf32>
    %463 = arith.divf %461, %462 : vector<8x32xf32>
    %464 = vector.extract_strided_slice %448 {offsets = [0, 64], sizes = [8, 32], strides = [1, 1]} : vector<8x128xf32> to vector<8x32xf32>
    %465 = math.tanh %464 : vector<8x32xf32>
    %466 = vector.extract_strided_slice %448 {offsets = [0, 96], sizes = [8, 32], strides = [1, 1]} : vector<8x128xf32> to vector<8x32xf32>
    %467 = arith.negf %466 : vector<8x32xf32>
    %468 = math.exp %467 : vector<8x32xf32>
    %cst_120 = arith.constant 1.000000e+00 : f32
    %469 = vector.broadcast %cst_120 : f32 to vector<8x32xf32>
    %470 = arith.addf %469, %468 : vector<8x32xf32>
    %471 = arith.divf %469, %470 : vector<8x32xf32>
    %472 = arith.mulf %463, %413 : vector<8x32xf32>
    %473 = arith.mulf %457, %465 : vector<8x32xf32>
    %474 = arith.addf %472, %473 : vector<8x32xf32>
    %475 = math.tanh %474 : vector<8x32xf32>
    %476 = arith.mulf %471, %475 : vector<8x32xf32>
    %477 = vector.extract_strided_slice %451 {offsets = [0, 0], sizes = [8, 32], strides = [1, 1]} : vector<8x128xf32> to vector<8x32xf32>
    %478 = arith.negf %477 : vector<8x32xf32>
    %479 = math.exp %478 : vector<8x32xf32>
    %cst_121 = arith.constant 1.000000e+00 : f32
    %480 = vector.broadcast %cst_121 : f32 to vector<8x32xf32>
    %481 = arith.addf %480, %479 : vector<8x32xf32>
    %482 = arith.divf %480, %481 : vector<8x32xf32>
    %483 = vector.extract_strided_slice %451 {offsets = [0, 32], sizes = [8, 32], strides = [1, 1]} : vector<8x128xf32> to vector<8x32xf32>
    %484 = arith.negf %483 : vector<8x32xf32>
    %485 = math.exp %484 : vector<8x32xf32>
    %cst_122 = arith.constant 1.000000e+00 : f32
    %486 = vector.broadcast %cst_122 : f32 to vector<8x32xf32>
    %487 = arith.addf %486, %485 : vector<8x32xf32>
    %488 = arith.divf %486, %487 : vector<8x32xf32>
    %489 = vector.extract_strided_slice %451 {offsets = [0, 64], sizes = [8, 32], strides = [1, 1]} : vector<8x128xf32> to vector<8x32xf32>
    %490 = math.tanh %489 : vector<8x32xf32>
    %491 = vector.extract_strided_slice %451 {offsets = [0, 96], sizes = [8, 32], strides = [1, 1]} : vector<8x128xf32> to vector<8x32xf32>
    %492 = arith.negf %491 : vector<8x32xf32>
    %493 = math.exp %492 : vector<8x32xf32>
    %cst_123 = arith.constant 1.000000e+00 : f32
    %494 = vector.broadcast %cst_123 : f32 to vector<8x32xf32>
    %495 = arith.addf %494, %493 : vector<8x32xf32>
    %496 = arith.divf %494, %495 : vector<8x32xf32>
    %497 = arith.mulf %488, %438 : vector<8x32xf32>
    %498 = arith.mulf %482, %490 : vector<8x32xf32>
    %499 = arith.addf %497, %498 : vector<8x32xf32>
    %500 = math.tanh %499 : vector<8x32xf32>
    %501 = arith.mulf %496, %500 : vector<8x32xf32>
    %c56_124 = arith.constant 56 : index
    %c0_125 = arith.constant 0 : index
    %502 = vector.load %arg7[%c56_124, %c0_125] : memref<64x64xf32, #tpu.memory_space<vmem>>, vector<8x32xf32>
    tpu.vector_store %arg7[%c56_124, %c0_125], %476 {strides = array<i32>} : memref<64x64xf32, #tpu.memory_space<vmem>>, vector<8x32xf32>,
    %c0_126 = arith.constant 0 : index
    %c32_127 = arith.constant 32 : index
    %503 = vector.load %arg7[%c0_126, %c32_127] : memref<64x64xf32, #tpu.memory_space<vmem>>, vector<8x32xf32>
    tpu.vector_store %arg7[%c0_126, %c32_127], %501 {strides = array<i32>} : memref<64x64xf32, #tpu.memory_space<vmem>>, vector<8x32xf32>,
    %c0_128 = arith.constant 0 : index
    %c0_129 = arith.constant 0 : index
    %504 = vector.load %arg7[%c0_128, %c0_129] : memref<64x64xf32, #tpu.memory_space<vmem>>, vector<64x64xf32>
    %505 = arith.truncf %504 : vector<64x64xf32> to vector<64x64xbf16>
    %c0_130 = arith.constant 0 : index
    %c0_131 = arith.constant 0 : index
    %506 = vector.load %arg4[%c0_130, %c0_131] : memref<64x64xbf16, #tpu.memory_space<vmem>>, vector<64x64xbf16>
    tpu.vector_store %arg4[%c0_130, %c0_131], %505 {strides = array<i32>} : memref<64x64xbf16, #tpu.memory_space<vmem>>, vector<64x64xbf16>,
    return
  }
}

</mosaic_0001>

<llo_original>
// kernel: bilstm_forward.2
$region0: #{bilstm_forward.2}
  #allocation0 [shape = 'u32[]', space=smem, size = 0x4, offset = 0x4, fixed_abs, tag = 'smem constant byte address 0x4 - core index']
  #allocation1 [shape = 'u32[72,128]{1,0:T(1,128)}', space=vmem, size = 0x9000, scoped, tag = 'internal scratch']
  #allocation2 [shape = 'f32[64,128]{1,0:T(8,128)}', space=vmem, size = 0x8000, scoped, tag = 'scratch operand']
  #allocation3 [shape = 'f32[64,128]{1,0:T(8,128)}', space=vmem, size = 0x8000, scoped, tag = 'scratch operand']
  #allocation4 [shape = 'f32[64,64]{1,0:T(8,128)}', space=vmem, size = 0x8000, scoped, tag = 'scratch operand']
  %s0 = inlined_call_operand.vmem [shape: f32[64,28], index: 0, kind: input, shape index: {}]
  %s1 = inlined_call_operand.vmem [shape: bf16[28,256], index: 1, kind: input, shape index: {}]
  %s2 = inlined_call_operand.vmem [shape: bf16[64,256], index: 2, kind: input, shape index: {}]
  %s3 = inlined_call_operand.vmem [shape: f32[1,256], index: 3, kind: input, shape index: {}]
  %s4 = inlined_call_operand.vmem [shape: bf16[64,64], index: 4, kind: output, shape index: {}]
  %s5 = sld [smem:[#allocation0]]
  $region26: #{bilstm_forward.2} parent=0
    _
  %s7 = ssub.s32 1, %s5
  %s8 = scalar_select 0, %s7, %s5
  // Predicated region
  $region2: #{bilstm_forward.2} parent=0 // pred_check
    _
  $region3: #{bilstm_forward.2} parent=0 // pred_check_branch
    %10 = sbr.rel (0) target = $region5
  $region4: #{bilstm_forward.2} parent=0 // pred_region
    _
  $region5: #{bilstm_forward.2} parent=0 // pred_fallthru
    _
  // Predicated region
  $region6: #{bilstm_forward.2} parent=0 // pred_check
    _
  $region7: #{bilstm_forward.2} parent=0 // pred_check_branch
    %12 = sbr.rel (0) target = $region9
  $region8: #{bilstm_forward.2} parent=0 // pred_region
    _
  $region9: #{bilstm_forward.2} parent=0 // pred_fallthru
    _
  // Predicated region
  $region10: #{bilstm_forward.2} parent=0 // pred_check
    _
  $region11: #{bilstm_forward.2} parent=0 // pred_check_branch
    %14 = sbr.rel (0) target = $region13
  $region12: #{bilstm_forward.2} parent=0 // pred_region
    _
  $region13: #{bilstm_forward.2} parent=0 // pred_fallthru
    _
  // Predicated region
  $region14: #{bilstm_forward.2} parent=0 // pred_check
    _
  $region15: #{bilstm_forward.2} parent=0 // pred_check_branch
    %16 = sbr.rel (0) target = $region17
  $region16: #{bilstm_forward.2} parent=0 // pred_region
    _
  $region17: #{bilstm_forward.2} parent=0 // pred_fallthru
    _
  %v18 = vld [vmem:[%s0] sm:$0xff]
  %v19 = vld [vmem:[%s0 + $0x8] sm:$0xff]
  %v20 = vld [vmem:[%s0 + $0x10] sm:$0xff]
  %v21 = vld [vmem:[%s0 + $0x18] sm:$0xff]
  %v22 = vld [vmem:[%s0 + $0x20] sm:$0xff]
  %v23 = vld [vmem:[%s0 + $0x28] sm:$0xff]
  %v24 = vld [vmem:[%s0 + $0x30] sm:$0xff]
  %v25 = vld [vmem:[%s0 + $0x38] sm:$0xff]
  %v26 = vpack.c.bf16 %v19, %v18
  %v27 = vpack.c.bf16 %v21, %v20
  %v28 = vpack.c.bf16 %v23, %v22
  %v29 = vpack.c.bf16 %v25, %v24
  %v30 = vld [vmem:[%s1] sm:$0xff]
  %v31 = vld [vmem:[%s1 + $0x8] sm:$0xff]
  %v32 = vld [vmem:[%s1 + $0x10] sm:$0xff]
  %v33 = vld [vmem:[%s1 + $0x18] sm:$0x33]
  %v34 = vld [vmem:[%s3] sm:$0x3]
  %v36 = vperm.slane %v34, 0
  %v37 = vperm.slane %v34, 1
  %v44 = vunpack.c.l.b16 %v30
  %v45 = vunpack.c.h.b16 %v30
  %v46 = vunpack.c.l.b16 %v31
  %v47 = vunpack.c.h.b16 %v31
  %v48 = vunpack.c.l.b16 %v32
  %v49 = vunpack.c.h.b16 %v32
  %v50 = vunpack.c.l.b16 %v33
  %v51 = vunpack.c.h.b16 %v33
  %v52 = vpack.c.b16 %v46, %v44
  %v53 = vpack.c.b16 %v47, %v45
  %v54 = vpack.c.b16 %v50, %v48
  %v55 = vpack.c.b16 %v51, %v49
  %vm58 = vcmask 228352
  %v60 = vsel %vm58, %v26, 0
  %v63 = vsel %vm58, %v27, 0
  %v66 = vsel %vm58, %v28, 0
  %v69 = vsel %vm58, %v29, 0
  %vm71 = vcmask 1045504
  %v73 = vsel %vm71, %v54, 0
  %v76 = vsel %vm71, %v55, 0
  %78 = vmatpush.bf16.msra.mxu0 0
  %79 = vmatpush.bf16.msra.mxu0 0
  %80 = vmatpush.bf16.msra.mxu0 0
  %81 = vmatpush.bf16.msra.mxu0 0
  %82 = vmatpush.bf16.msra.mxu0 0
  %83 = vmatpush.bf16.msra.mxu0 0
  %84 = vmatpush.bf16.msra.mxu0 %v73
  %85 = vmatpush.bf16.msra.mxu0 %v52
  %86 = vmatmul.bf16.gmra.mxu0 %v60
  %v87 = vpop.f32.mrf.mxu0
  %v88 = vadd.f32 %v36, %v87
  %v89 = vpop.f32.mrf.mxu0
  %v90 = vadd.f32 %v36, %v89
  %91 = vmatmul.bf16.gmra.mxu0 %v63
  %v92 = vpop.f32.mrf.mxu0
  %v93 = vadd.f32 %v36, %v92
  %v94 = vpop.f32.mrf.mxu0
  %v95 = vadd.f32 %v36, %v94
  %96 = vmatmul.bf16.gmra.mxu0 %v66
  %v97 = vpop.f32.mrf.mxu0
  %v98 = vadd.f32 %v36, %v97
  %v99 = vpop.f32.mrf.mxu0
  %v100 = vadd.f32 %v36, %v99
  %101 = vmatmul.bf16.gmra.mxu0 %v69
  %v102 = vpop.f32.mrf.mxu0
  %v103 = vadd.f32 %v36, %v102
  %v104 = vpop.f32.mrf.mxu0
  %v105 = vadd.f32 %v36, %v104
  %106 = vdwg.mxu0
  %107 = vmatpush.bf16.msra.mxu0 0
  %108 = vmatpush.bf16.msra.mxu0 0
  %109 = vmatpush.bf16.msra.mxu0 0
  %110 = vmatpush.bf16.msra.mxu0 0
  %111 = vmatpush.bf16.msra.mxu0 0
  %112 = vmatpush.bf16.msra.mxu0 0
  %113 = vmatpush.bf16.msra.mxu0 %v76
  %114 = vmatpush.bf16.msra.mxu0 %v53
  %115 = vmatmul.bf16.gmra.mxu0 %v60
  %v116 = vpop.f32.mrf.mxu0
  %v117 = vadd.f32 %v37, %v116
  %v118 = vpop.f32.mrf.mxu0
  %v119 = vadd.f32 %v37, %v118
  %120 = vmatmul.bf16.gmra.mxu0 %v63
  %v121 = vpop.f32.mrf.mxu0
  %v122 = vadd.f32 %v37, %v121
  %v123 = vpop.f32.mrf.mxu0
  %v124 = vadd.f32 %v37, %v123
  %125 = vmatmul.bf16.gmra.mxu0 %v66
  %v126 = vpop.f32.mrf.mxu0
  %v127 = vadd.f32 %v37, %v126
  %v128 = vpop.f32.mrf.mxu0
  %v129 = vadd.f32 %v37, %v128
  %130 = vmatmul.bf16.gmra.mxu0 %v69
  %v131 = vpop.f32.mrf.mxu0
  %v132 = vadd.f32 %v37, %v131
  %v133 = vpop.f32.mrf.mxu0
  %v134 = vadd.f32 %v37, %v133
  %135 = vdwg.mxu0
  %136 = vst [vmem:[#allocation2] sm:$0xff] %v88
  %137 = vst [vmem:[#allocation2 + $0x8] sm:$0xff] %v90
  %138 = vst [vmem:[#allocation2 + $0x10] sm:$0xff] %v93
  %139 = vst [vmem:[#allocation2 + $0x18] sm:$0xff] %v95
  %140 = vst [vmem:[#allocation2 + $0x20] sm:$0xff] %v98
  %141 = vst [vmem:[#allocation2 + $0x28] sm:$0xff] %v100
  %142 = vst [vmem:[#allocation2 + $0x30] sm:$0xff] %v103
  %143 = vst [vmem:[#allocation2 + $0x38] sm:$0xff] %v105
  %144 = vst [vmem:[#allocation3] sm:$0xff] %v117
  %145 = vst [vmem:[#allocation3 + $0x8] sm:$0xff] %v119
  %146 = vst [vmem:[#allocation3 + $0x10] sm:$0xff] %v122
  %147 = vst [vmem:[#allocation3 + $0x18] sm:$0xff] %v124
  %148 = vst [vmem:[#allocation3 + $0x20] sm:$0xff] %v127
  %149 = vst [vmem:[#allocation3 + $0x28] sm:$0xff] %v129
  %150 = vst [vmem:[#allocation3 + $0x30] sm:$0xff] %v132
  %151 = vst [vmem:[#allocation3 + $0x38] sm:$0xff] %v134
  %v152 = vld [vmem:[%s2] sm:$0xff]
  %v153 = vld [vmem:[%s2 + $0x8] sm:$0xff]
  %v154 = vld [vmem:[%s2 + $0x10] sm:$0xff]
  %v155 = vld [vmem:[%s2 + $0x18] sm:$0xff]
  %v156 = vld [vmem:[%s2 + $0x20] sm:$0xff]
  %v157 = vld [vmem:[%s2 + $0x28] sm:$0xff]
  %v158 = vld [vmem:[%s2 + $0x30] sm:$0xff]
  %v159 = vld [vmem:[%s2 + $0x38] sm:$0xff]
  %v160 = vpack.c.bf16 0.0, 0.0
  %v169 = vunpack.c.l.b16 %v152
  %v170 = vunpack.c.h.b16 %v152
  %v171 = vunpack.c.l.b16 %v153
  %v172 = vunpack.c.h.b16 %v153
  %v173 = vunpack.c.l.b16 %v154
  %v174 = vunpack.c.h.b16 %v154
  %v175 = vunpack.c.l.b16 %v155
  %v176 = vunpack.c.h.b16 %v155
  %v177 = vunpack.c.l.b16 %v156
  %v178 = vunpack.c.h.b16 %v156
  %v179 = vunpack.c.l.b16 %v157
  %v180 = vunpack.c.h.b16 %v157
  %v181 = vunpack.c.l.b16 %v158
  %v182 = vunpack.c.h.b16 %v158
  %v183 = vunpack.c.l.b16 %v159
  %v184 = vunpack.c.h.b16 %v159
  %v185 = vpack.c.b16 %v171, %v169
  %v186 = vpack.c.b16 %v172, %v170
  %v187 = vpack.c.b16 %v175, %v173
  %v188 = vpack.c.b16 %v176, %v174
  %v189 = vpack.c.b16 %v179, %v177
  %v190 = vpack.c.b16 %v180, %v178
  %v191 = vpack.c.b16 %v183, %v181
  %v192 = vpack.c.b16 %v184, %v182
  %vm201 = vcmask 523264
  %v203 = vsel %vm201, %v160, 0
  %205 = vmatpush.bf16.msra.mxu0 0
  %206 = vmatpush.bf16.msra.mxu0 0
  %207 = vmatpush.bf16.msra.mxu0 0
  %208 = vmatpush.bf16.msra.mxu0 0
  %209 = vmatpush.bf16.msra.mxu0 %v191
  %210 = vmatpush.bf16.msra.mxu0 %v189
  %211 = vmatpush.bf16.msra.mxu0 %v187
  %212 = vmatpush.bf16.msra.mxu0 %v185
  %213 = vmatmul.bf16.gmra.mxu0 %v203
  %v214 = vpop.f32.mrf.mxu0
  %v215 = vadd.f32 0.0, %v214
  %v216 = vpop.f32.mrf.mxu0
  %217 = vdwg.mxu0
  %218 = vmatpush.bf16.msra.mxu0 0
  %219 = vmatpush.bf16.msra.mxu0 0
  %220 = vmatpush.bf16.msra.mxu0 0
  %221 = vmatpush.bf16.msra.mxu0 0
  %222 = vmatpush.bf16.msra.mxu0 %v192
  %223 = vmatpush.bf16.msra.mxu0 %v190
  %224 = vmatpush.bf16.msra.mxu0 %v188
  %225 = vmatpush.bf16.msra.mxu0 %v186
  %226 = vmatmul.bf16.gmra.mxu0 %v203
  %v227 = vpop.f32.mrf.mxu0
  %v228 = vadd.f32 0.0, %v227
  %v229 = vpop.f32.mrf.mxu0
  %230 = vdwg.mxu0
  %v231 = vld [vmem:[#allocation2] sm:$0xff]
  %v232 = vadd.f32 %v231, %v215
  %v233 = vld [vmem:[#allocation3 + $0x38] sm:$0xff]
  %v234 = vadd.f32 %v233, %v228
  %v235 = vxor.u32 %v232, 2147483648
  %v236 = vmul.f32 %v235, 1.442695
  %v237 = vpow.pop %v236
  %v238 = vadd.f32 %v237, 1.0
  %v239 = vrcp.pop %v238
  %v240 = vmul.f32 %v238, %v239
  %v241 = vsub.f32 1.0, %v240
  %v242 = vmul.f32 %v239, %v241
  %v243 = vadd.f32 %v239, %v242
  %vm244 = vweird.f32 %v238
  %vm245 = vweird.f32 %v239
  %vm246 = vmor %vm244, %vm245
  %v247 = vsel %vm246, %v239, %v243
  %v248 = vand.u32 2147483647, %v238
  %vm249 = vcmp.eq.f32.partialorder %v248, 8.507059e+37
  %v250 = vand.u32 %v238, 2147483648
  %v251 = vor.u32 1.1754944e-38, %v250
  %v252 = vsel %vm249, %v251, %v247
  %v253 = vmul.f32 1.0, %v252
  %v254 = vtanh.pop %v232
  %v255 = vmul.f32 %v253, 0.0
  %257 = vrot.lane.b32.xlu0 %v254, 64
  %v258 = vpop.permute.xlu0 %257
  %v260 = vmul.f32 %v253, %v258
  %262 = vrot.lane.b32.xlu0 %v260, 32
  %v263 = vpop.permute.xlu0 %262
  %v265 = vadd.f32 %v255, %v263
  %v266 = vtanh.pop %v265
  %268 = vrot.lane.b32.xlu0 %v266, 64
  %v269 = vpop.permute.xlu0 %268
  %v271 = vmul.f32 %v253, %v269
  %v272 = vxor.u32 %v234, 2147483648
  %v273 = vmul.f32 %v272, 1.442695
  %v274 = vpow.pop %v273
  %v275 = vadd.f32 %v274, 1.0
  %v276 = vrcp.pop %v275
  %v277 = vmul.f32 %v275, %v276
  %v278 = vsub.f32 1.0, %v277
  %v279 = vmul.f32 %v276, %v278
  %v280 = vadd.f32 %v276, %v279
  %vm281 = vweird.f32 %v275
  %vm282 = vweird.f32 %v276
  %vm283 = vmor %vm281, %vm282
  %v284 = vsel %vm283, %v276, %v280
  %v285 = vand.u32 2147483647, %v275
  %vm286 = vcmp.eq.f32.partialorder %v285, 8.507059e+37
  %v287 = vand.u32 %v275, 2147483648
  %v288 = vor.u32 1.1754944e-38, %v287
  %v289 = vsel %vm286, %v288, %v284
  %v290 = vmul.f32 1.0, %v289
  %v291 = vtanh.pop %v234
  %v292 = vmul.f32 %v290, 0.0
  %294 = vrot.lane.b32.xlu0 %v291, 64
  %v295 = vpop.permute.xlu0 %294
  %v297 = vmul.f32 %v290, %v295
  %299 = vrot.lane.b32.xlu0 %v297, 32
  %v300 = vpop.permute.xlu0 %299
  %v302 = vadd.f32 %v292, %v300
  %v303 = vtanh.pop %v302
  %305 = vrot.lane.b32.xlu0 %v303, 64
  %v306 = vpop.permute.xlu0 %305
  %v308 = vmul.f32 %v290, %v306
  %310 = vrot.lane.b32.xlu0 %v271, 32
  %v311 = vpop.permute.xlu0 %310
  %vm313 = vcmask 261120
  %314 = vst.msk [vmem:[#allocation4] sm:$0xff] %vm313, %v311
  %316 = vrot.lane.b32.xlu0 %v308, 64
  %v317 = vpop.permute.xlu0 %316
  %vm319 = vcmask 523520
  %320 = vst.msk [vmem:[#allocation4 + $0x38] sm:$0xff] %vm319, %v317
  %v321 = vsel %vm313, %v311, %v317
  %v322 = vpack.c.bf16 %v321, %v321
  %v324 = vsel %vm201, %v322, 0
  %326 = vmatpush.bf16.msra.mxu0 0
  %327 = vmatpush.bf16.msra.mxu0 0
  %328 = vmatpush.bf16.msra.mxu0 0
  %329 = vmatpush.bf16.msra.mxu0 0
  %330 = vmatpush.bf16.msra.mxu0 %v191
  %331 = vmatpush.bf16.msra.mxu0 %v189
  %332 = vmatpush.bf16.msra.mxu0 %v187
  %333 = vmatpush.bf16.msra.mxu0 %v185
  %334 = vmatmul.bf16.gmra.mxu0 %v324
  %v335 = vpop.f32.mrf.mxu0
  %v336 = vadd.f32 0.0, %v335
  %v337 = vpop.f32.mrf.mxu0
  %338 = vdwg.mxu0
  %339 = vmatpush.bf16.msra.mxu0 0
  %340 = vmatpush.bf16.msra.mxu0 0
  %341 = vmatpush.bf16.msra.mxu0 0
  %342 = vmatpush.bf16.msra.mxu0 0
  %343 = vmatpush.bf16.msra.mxu0 %v192
  %344 = vmatpush.bf16.msra.mxu0 %v190
  %345 = vmatpush.bf16.msra.mxu0 %v188
  %346 = vmatpush.bf16.msra.mxu0 %v186
  %347 = vmatmul.bf16.gmra.mxu0 %v324
  %v348 = vpop.f32.mrf.mxu0
  %v349 = vadd.f32 0.0, %v348
  %v350 = vpop.f32.mrf.mxu0
  %351 = vdwg.mxu0
  %v352 = vld [vmem:[#allocation2 + $0x8] sm:$0xff]
  %v353 = vadd.f32 %v352, %v336
  %v354 = vld [vmem:[#allocation3 + $0x30] sm:$0xff]
  %v355 = vadd.f32 %v354, %v349
  %v356 = vxor.u32 %v353, 2147483648
  %v357 = vmul.f32 %v356, 1.442695
  %v358 = vpow.pop %v357
  %v359 = vadd.f32 %v358, 1.0
  %v360 = vrcp.pop %v359
  %v361 = vmul.f32 %v359, %v360
  %v362 = vsub.f32 1.0, %v361
  %v363 = vmul.f32 %v360, %v362
  %v364 = vadd.f32 %v360, %v363
  %vm365 = vweird.f32 %v359
  %vm366 = vweird.f32 %v360
  %vm367 = vmor %vm365, %vm366
  %v368 = vsel %vm367, %v360, %v364
  %v369 = vand.u32 2147483647, %v359
  %vm370 = vcmp.eq.f32.partialorder %v369, 8.507059e+37
  %v371 = vand.u32 %v359, 2147483648
  %v372 = vor.u32 1.1754944e-38, %v371
  %v373 = vsel %vm370, %v372, %v368
  %v374 = vmul.f32 1.0, %v373
  %v375 = vtanh.pop %v353
  %v376 = vmul.f32 %v374, %v265
  %378 = vrot.lane.b32.xlu0 %v375, 64
  %v379 = vpop.permute.xlu0 %378
  %v381 = vmul.f32 %v374, %v379
  %383 = vrot.lane.b32.xlu0 %v381, 32
  %v384 = vpop.permute.xlu0 %383
  %v386 = vadd.f32 %v376, %v384
  %v387 = vtanh.pop %v386
  %389 = vrot.lane.b32.xlu0 %v387, 64
  %v390 = vpop.permute.xlu0 %389
  %v392 = vmul.f32 %v374, %v390
  %v393 = vxor.u32 %v355, 2147483648
  %v394 = vmul.f32 %v393, 1.442695
  %v395 = vpow.pop %v394
  %v396 = vadd.f32 %v395, 1.0
  %v397 = vrcp.pop %v396
  %v398 = vmul.f32 %v396, %v397
  %v399 = vsub.f32 1.0, %v398
  %v400 = vmul.f32 %v397, %v399
  %v401 = vadd.f32 %v397, %v400
  %vm402 = vweird.f32 %v396
  %vm403 = vweird.f32 %v397
  %vm404 = vmor %vm402, %vm403
  %v405 = vsel %vm404, %v397, %v401
  %v406 = vand.u32 2147483647, %v396
  %vm407 = vcmp.eq.f32.partialorder %v406, 8.507059e+37
  %v408 = vand.u32 %v396, 2147483648
  %v409 = vor.u32 1.1754944e-38, %v408
  %v410 = vsel %vm407, %v409, %v405
  %v411 = vmul.f32 1.0, %v410
  %v412 = vtanh.pop %v355
  %v413 = vmul.f32 %v411, %v302
  %415 = vrot.lane.b32.xlu0 %v412, 64
  %v416 = vpop.permute.xlu0 %415
  %v418 = vmul.f32 %v411, %v416
  %420 = vrot.lane.b32.xlu0 %v418, 32
  %v421 = vpop.permute.xlu0 %420
  %v423 = vadd.f32 %v413, %v421
  %v424 = vtanh.pop %v423
  %426 = vrot.lane.b32.xlu0 %v424, 64
  %v427 = vpop.permute.xlu0 %426
  %v429 = vmul.f32 %v411, %v427
  %431 = vrot.lane.b32.xlu0 %v392, 32
  %v432 = vpop.permute.xlu0 %431
  %434 = vst.msk [vmem:[#allocation4 + $0x8] sm:$0xff] %vm313, %v432
  %436 = vrot.lane.b32.xlu0 %v429, 64
  %v437 = vpop.permute.xlu0 %436
  %439 = vst.msk [vmem:[#allocation4 + $0x30] sm:$0xff] %vm319, %v437
  %v440 = vsel %vm313, %v432, %v437
  %v441 = vpack.c.bf16 %v440, %v440
  %v443 = vsel %vm201, %v441, 0
  %445 = vmatpush.bf16.msra.mxu0 0
  %446 = vmatpush.bf16.msra.mxu0 0
  %447 = vmatpush.bf16.msra.mxu0 0
  %448 = vmatpush.bf16.msra.mxu0 0
  %449 = vmatpush.bf16.msra.mxu0 %v191
  %450 = vmatpush.bf16.msra.mxu0 %v189
  %451 = vmatpush.bf16.msra.mxu0 %v187
  %452 = vmatpush.bf16.msra.mxu0 %v185
  %453 = vmatmul.bf16.gmra.mxu0 %v443
  %v454 = vpop.f32.mrf.mxu0
  %v455 = vadd.f32 0.0, %v454
  %v456 = vpop.f32.mrf.mxu0
  %457 = vdwg.mxu0
  %458 = vmatpush.bf16.msra.mxu0 0
  %459 = vmatpush.bf16.msra.mxu0 0
  %460 = vmatpush.bf16.msra.mxu0 0
  %461 = vmatpush.bf16.msra.mxu0 0
  %462 = vmatpush.bf16.msra.mxu0 %v192
  %463 = vmatpush.bf16.msra.mxu0 %v190
  %464 = vmatpush.bf16.msra.mxu0 %v188
  %465 = vmatpush.bf16.msra.mxu0 %v186
  %466 = vmatmul.bf16.gmra.mxu0 %v443
  %v467 = vpop.f32.mrf.mxu0
  %v468 = vadd.f32 0.0, %v467
  %v469 = vpop.f32.mrf.mxu0
  %470 = vdwg.mxu0
  %v471 = vld [vmem:[#allocation2 + $0x10] sm:$0xff]
  %v472 = vadd.f32 %v471, %v455
  %v473 = vld [vmem:[#allocation3 + $0x28] sm:$0xff]
  %v474 = vadd.f32 %v473, %v468
  %v475 = vxor.u32 %v472, 2147483648
  %v476 = vmul.f32 %v475, 1.442695
  %v477 = vpow.pop %v476
  %v478 = vadd.f32 %v477, 1.0
  %v479 = vrcp.pop %v478
  %v480 = vmul.f32 %v478, %v479
  %v481 = vsub.f32 1.0, %v480
  %v482 = vmul.f32 %v479, %v481
  %v483 = vadd.f32 %v479, %v482
  %vm484 = vweird.f32 %v478
  %vm485 = vweird.f32 %v479
  %vm486 = vmor %vm484, %vm485
  %v487 = vsel %vm486, %v479, %v483
  %v488 = vand.u32 2147483647, %v478
  %vm489 = vcmp.eq.f32.partialorder %v488, 8.507059e+37
  %v490 = vand.u32 %v478, 2147483648
  %v491 = vor.u32 1.1754944e-38, %v490
  %v492 = vsel %vm489, %v491, %v487
  %v493 = vmul.f32 1.0, %v492
  %v494 = vtanh.pop %v472
  %v495 = vmul.f32 %v493, %v386
  %497 = vrot.lane.b32.xlu0 %v494, 64
  %v498 = vpop.permute.xlu0 %497
  %v500 = vmul.f32 %v493, %v498
  %502 = vrot.lane.b32.xlu0 %v500, 32
  %v503 = vpop.permute.xlu0 %502
  %v505 = vadd.f32 %v495, %v503
  %v506 = vtanh.pop %v505
  %508 = vrot.lane.b32.xlu0 %v506, 64
  %v509 = vpop.permute.xlu0 %508
  %v511 = vmul.f32 %v493, %v509
  %v512 = vxor.u32 %v474, 2147483648
  %v513 = vmul.f32 %v512, 1.442695
  %v514 = vpow.pop %v513
  %v515 = vadd.f32 %v514, 1.0
  %v516 = vrcp.pop %v515
  %v517 = vmul.f32 %v515, %v516
  %v518 = vsub.f32 1.0, %v517
  %v519 = vmul.f32 %v516, %v518
  %v520 = vadd.f32 %v516, %v519
  %vm521 = vweird.f32 %v515
  %vm522 = vweird.f32 %v516
  %vm523 = vmor %vm521, %vm522
  %v524 = vsel %vm523, %v516, %v520
  %v525 = vand.u32 2147483647, %v515
  %vm526 = vcmp.eq.f32.partialorder %v525, 8.507059e+37
  %v527 = vand.u32 %v515, 2147483648
  %v528 = vor.u32 1.1754944e-38, %v527
  %v529 = vsel %vm526, %v528, %v524
  %v530 = vmul.f32 1.0, %v529
  %v531 = vtanh.pop %v474
  %v532 = vmul.f32 %v530, %v423
  %534 = vrot.lane.b32.xlu0 %v531, 64
  %v535 = vpop.permute.xlu0 %534
  %v537 = vmul.f32 %v530, %v535
  %539 = vrot.lane.b32.xlu0 %v537, 32
  %v540 = vpop.permute.xlu0 %539
  %v542 = vadd.f32 %v532, %v540
  %v543 = vtanh.pop %v542
  %545 = vrot.lane.b32.xlu0 %v543, 64
  %v546 = vpop.permute.xlu0 %545
  %v548 = vmul.f32 %v530, %v546
  %550 = vrot.lane.b32.xlu0 %v511, 32
  %v551 = vpop.permute.xlu0 %550
  %553 = vst.msk [vmem:[#allocation4 + $0x10] sm:$0xff] %vm313, %v551
  %555 = vrot.lane.b32.xlu0 %v548, 64
  %v556 = vpop.permute.xlu0 %555
  %558 = vst.msk [vmem:[#allocation4 + $0x28] sm:$0xff] %vm319, %v556
  %v559 = vsel %vm313, %v551, %v556
  %v560 = vpack.c.bf16 %v559, %v559
  %v562 = vsel %vm201, %v560, 0
  %564 = vmatpush.bf16.msra.mxu0 0
  %565 = vmatpush.bf16.msra.mxu0 0
  %566 = vmatpush.bf16.msra.mxu0 0
  %567 = vmatpush.bf16.msra.mxu0 0
  %568 = vmatpush.bf16.msra.mxu0 %v191
  %569 = vmatpush.bf16.msra.mxu0 %v189
  %570 = vmatpush.bf16.msra.mxu0 %v187
  %571 = vmatpush.bf16.msra.mxu0 %v185
  %572 = vmatmul.bf16.gmra.mxu0 %v562
  %v573 = vpop.f32.mrf.mxu0
  %v574 = vadd.f32 0.0, %v573
  %v575 = vpop.f32.mrf.mxu0
  %576 = vdwg.mxu0
  %577 = vmatpush.bf16.msra.mxu0 0
  %578 = vmatpush.bf16.msra.mxu0 0
  %579 = vmatpush.bf16.msra.mxu0 0
  %580 = vmatpush.bf16.msra.mxu0 0
  %581 = vmatpush.bf16.msra.mxu0 %v192
  %582 = vmatpush.bf16.msra.mxu0 %v190
  %583 = vmatpush.bf16.msra.mxu0 %v188
  %584 = vmatpush.bf16.msra.mxu0 %v186
  %585 = vmatmul.bf16.gmra.mxu0 %v562
  %v586 = vpop.f32.mrf.mxu0
  %v587 = vadd.f32 0.0, %v586
  %v588 = vpop.f32.mrf.mxu0
  %589 = vdwg.mxu0
  %v590 = vld [vmem:[#allocation2 + $0x18] sm:$0xff]
  %v591 = vadd.f32 %v590, %v574
  %v592 = vld [vmem:[#allocation3 + $0x20] sm:$0xff]
  %v593 = vadd.f32 %v592, %v587
  %v594 = vxor.u32 %v591, 2147483648
  %v595 = vmul.f32 %v594, 1.442695
  %v596 = vpow.pop %v595
  %v597 = vadd.f32 %v596, 1.0
  %v598 = vrcp.pop %v597
  %v599 = vmul.f32 %v597, %v598
  %v600 = vsub.f32 1.0, %v599
  %v601 = vmul.f32 %v598, %v600
  %v602 = vadd.f32 %v598, %v601
  %vm603 = vweird.f32 %v597
  %vm604 = vweird.f32 %v598
  %vm605 = vmor %vm603, %vm604
  %v606 = vsel %vm605, %v598, %v602
  %v607 = vand.u32 2147483647, %v597
  %vm608 = vcmp.eq.f32.partialorder %v607, 8.507059e+37
  %v609 = vand.u32 %v597, 2147483648
  %v610 = vor.u32 1.1754944e-38, %v609
  %v611 = vsel %vm608, %v610, %v606
  %v612 = vmul.f32 1.0, %v611
  %v613 = vtanh.pop %v591
  %v614 = vmul.f32 %v612, %v505
  %616 = vrot.lane.b32.xlu0 %v613, 64
  %v617 = vpop.permute.xlu0 %616
  %v619 = vmul.f32 %v612, %v617
  %621 = vrot.lane.b32.xlu0 %v619, 32
  %v622 = vpop.permute.xlu0 %621
  %v624 = vadd.f32 %v614, %v622
  %v625 = vtanh.pop %v624
  %627 = vrot.lane.b32.xlu0 %v625, 64
  %v628 = vpop.permute.xlu0 %627
  %v630 = vmul.f32 %v612, %v628
  %v631 = vxor.u32 %v593, 2147483648
  %v632 = vmul.f32 %v631, 1.442695
  %v633 = vpow.pop %v632
  %v634 = vadd.f32 %v633, 1.0
  %v635 = vrcp.pop %v634
  %v636 = vmul.f32 %v634, %v635
  %v637 = vsub.f32 1.0, %v636
  %v638 = vmul.f32 %v635, %v637
  %v639 = vadd.f32 %v635, %v638
  %vm640 = vweird.f32 %v634
  %vm641 = vweird.f32 %v635
  %vm642 = vmor %vm640, %vm641
  %v643 = vsel %vm642, %v635, %v639
  %v644 = vand.u32 2147483647, %v634
  %vm645 = vcmp.eq.f32.partialorder %v644, 8.507059e+37
  %v646 = vand.u32 %v634, 2147483648
  %v647 = vor.u32 1.1754944e-38, %v646
  %v648 = vsel %vm645, %v647, %v643
  %v649 = vmul.f32 1.0, %v648
  %v650 = vtanh.pop %v593
  %v651 = vmul.f32 %v649, %v542
  %653 = vrot.lane.b32.xlu0 %v650, 64
  %v654 = vpop.permute.xlu0 %653
  %v656 = vmul.f32 %v649, %v654
  %658 = vrot.lane.b32.xlu0 %v656, 32
  %v659 = vpop.permute.xlu0 %658
  %v661 = vadd.f32 %v651, %v659
  %v662 = vtanh.pop %v661
  %664 = vrot.lane.b32.xlu0 %v662, 64
  %v665 = vpop.permute.xlu0 %664
  %v667 = vmul.f32 %v649, %v665
  %669 = vrot.lane.b32.xlu0 %v630, 32
  %v670 = vpop.permute.xlu0 %669
  %672 = vst.msk [vmem:[#allocation4 + $0x18] sm:$0xff] %vm313, %v670
  %674 = vrot.lane.b32.xlu0 %v667, 64
  %v675 = vpop.permute.xlu0 %674
  %677 = vst.msk [vmem:[#allocation4 + $0x20] sm:$0xff] %vm319, %v675
  %v678 = vsel %vm313, %v670, %v675
  %v679 = vpack.c.bf16 %v678, %v678
  %v681 = vsel %vm201, %v679, 0
  %683 = vmatpush.bf16.msra.mxu0 0
  %684 = vmatpush.bf16.msra.mxu0 0
  %685 = vmatpush.bf16.msra.mxu0 0
  %686 = vmatpush.bf16.msra.mxu0 0
  %687 = vmatpush.bf16.msra.mxu0 %v191
  %688 = vmatpush.bf16.msra.mxu0 %v189
  %689 = vmatpush.bf16.msra.mxu0 %v187
  %690 = vmatpush.bf16.msra.mxu0 %v185
  %691 = vmatmul.bf16.gmra.mxu0 %v681
  %v692 = vpop.f32.mrf.mxu0
  %v693 = vadd.f32 0.0, %v692
  %v694 = vpop.f32.mrf.mxu0
  %695 = vdwg.mxu0
  %696 = vmatpush.bf16.msra.mxu0 0
  %697 = vmatpush.bf16.msra.mxu0 0
  %698 = vmatpush.bf16.msra.mxu0 0
  %699 = vmatpush.bf16.msra.mxu0 0
  %700 = vmatpush.bf16.msra.mxu0 %v192
  %701 = vmatpush.bf16.msra.mxu0 %v190
  %702 = vmatpush.bf16.msra.mxu0 %v188
  %703 = vmatpush.bf16.msra.mxu0 %v186
  %704 = vmatmul.bf16.gmra.mxu0 %v681
  %v705 = vpop.f32.mrf.mxu0
  %v706 = vadd.f32 0.0, %v705
  %v707 = vpop.f32.mrf.mxu0
  %708 = vdwg.mxu0
  %v709 = vld [vmem:[#allocation2 + $0x20] sm:$0xff]
  %v710 = vadd.f32 %v709, %v693
  %v711 = vld [vmem:[#allocation3 + $0x18] sm:$0xff]
  %v712 = vadd.f32 %v711, %v706
  %v713 = vxor.u32 %v710, 2147483648
  %v714 = vmul.f32 %v713, 1.442695
  %v715 = vpow.pop %v714
  %v716 = vadd.f32 %v715, 1.0
  %v717 = vrcp.pop %v716
  %v718 = vmul.f32 %v716, %v717
  %v719 = vsub.f32 1.0, %v718
  %v720 = vmul.f32 %v717, %v719
  %v721 = vadd.f32 %v717, %v720
  %vm722 = vweird.f32 %v716
  %vm723 = vweird.f32 %v717
  %vm724 = vmor %vm722, %vm723
  %v725 = vsel %vm724, %v717, %v721
  %v726 = vand.u32 2147483647, %v716
  %vm727 = vcmp.eq.f32.partialorder %v726, 8.507059e+37
  %v728 = vand.u32 %v716, 2147483648
  %v729 = vor.u32 1.1754944e-38, %v728
  %v730 = vsel %vm727, %v729, %v725
  %v731 = vmul.f32 1.0, %v730
  %v732 = vtanh.pop %v710
  %v733 = vmul.f32 %v731, %v624
  %735 = vrot.lane.b32.xlu0 %v732, 64
  %v736 = vpop.permute.xlu0 %735
  %v738 = vmul.f32 %v731, %v736
  %740 = vrot.lane.b32.xlu0 %v738, 32
  %v741 = vpop.permute.xlu0 %740
  %v743 = vadd.f32 %v733, %v741
  %v744 = vtanh.pop %v743
  %746 = vrot.lane.b32.xlu0 %v744, 64
  %v747 = vpop.permute.xlu0 %746
  %v749 = vmul.f32 %v731, %v747
  %v750 = vxor.u32 %v712, 2147483648
  %v751 = vmul.f32 %v750, 1.442695
  %v752 = vpow.pop %v751
  %v753 = vadd.f32 %v752, 1.0
  %v754 = vrcp.pop %v753
  %v755 = vmul.f32 %v753, %v754
  %v756 = vsub.f32 1.0, %v755
  %v757 = vmul.f32 %v754, %v756
  %v758 = vadd.f32 %v754, %v757
  %vm759 = vweird.f32 %v753
  %vm760 = vweird.f32 %v754
  %vm761 = vmor %vm759, %vm760
  %v762 = vsel %vm761, %v754, %v758
  %v763 = vand.u32 2147483647, %v753
  %vm764 = vcmp.eq.f32.partialorder %v763, 8.507059e+37
  %v765 = vand.u32 %v753, 2147483648
  %v766 = vor.u32 1.1754944e-38, %v765
  %v767 = vsel %vm764, %v766, %v762
  %v768 = vmul.f32 1.0, %v767
  %v769 = vtanh.pop %v712
  %v770 = vmul.f32 %v768, %v661
  %772 = vrot.lane.b32.xlu0 %v769, 64
  %v773 = vpop.permute.xlu0 %772
  %v775 = vmul.f32 %v768, %v773
  %777 = vrot.lane.b32.xlu0 %v775, 32
  %v778 = vpop.permute.xlu0 %777
  %v780 = vadd.f32 %v770, %v778
  %v781 = vtanh.pop %v780
  %783 = vrot.lane.b32.xlu0 %v781, 64
  %v784 = vpop.permute.xlu0 %783
  %v786 = vmul.f32 %v768, %v784
  %788 = vrot.lane.b32.xlu0 %v749, 32
  %v789 = vpop.permute.xlu0 %788
  %791 = vst.msk [vmem:[#allocation4 + $0x20] sm:$0xff] %vm313, %v789
  %793 = vrot.lane.b32.xlu0 %v786, 64
  %v794 = vpop.permute.xlu0 %793
  %796 = vst.msk [vmem:[#allocation4 + $0x18] sm:$0xff] %vm319, %v794
  %v797 = vsel %vm313, %v789, %v794
  %v798 = vpack.c.bf16 %v797, %v797
  %v800 = vsel %vm201, %v798, 0
  %802 = vmatpush.bf16.msra.mxu0 0
  %803 = vmatpush.bf16.msra.mxu0 0
  %804 = vmatpush.bf16.msra.mxu0 0
  %805 = vmatpush.bf16.msra.mxu0 0
  %806 = vmatpush.bf16.msra.mxu0 %v191
  %807 = vmatpush.bf16.msra.mxu0 %v189
  %808 = vmatpush.bf16.msra.mxu0 %v187
  %809 = vmatpush.bf16.msra.mxu0 %v185
  %810 = vmatmul.bf16.gmra.mxu0 %v800
  %v811 = vpop.f32.mrf.mxu0
  %v812 = vadd.f32 0.0, %v811
  %v813 = vpop.f32.mrf.mxu0
  %814 = vdwg.mxu0
  %815 = vmatpush.bf16.msra.mxu0 0
  %816 = vmatpush.bf16.msra.mxu0 0
  %817 = vmatpush.bf16.msra.mxu0 0
  %818 = vmatpush.bf16.msra.mxu0 0
  %819 = vmatpush.bf16.msra.mxu0 %v192
  %820 = vmatpush.bf16.msra.mxu0 %v190
  %821 = vmatpush.bf16.msra.mxu0 %v188
  %822 = vmatpush.bf16.msra.mxu0 %v186
  %823 = vmatmul.bf16.gmra.mxu0 %v800
  %v824 = vpop.f32.mrf.mxu0
  %v825 = vadd.f32 0.0, %v824
  %v826 = vpop.f32.mrf.mxu0
  %827 = vdwg.mxu0
  %v828 = vld [vmem:[#allocation2 + $0x28] sm:$0xff]
  %v829 = vadd.f32 %v828, %v812
  %v830 = vld [vmem:[#allocation3 + $0x10] sm:$0xff]
  %v831 = vadd.f32 %v830, %v825
  %v832 = vxor.u32 %v829, 2147483648
  %v833 = vmul.f32 %v832, 1.442695
  %v834 = vpow.pop %v833
  %v835 = vadd.f32 %v834, 1.0
  %v836 = vrcp.pop %v835
  %v837 = vmul.f32 %v835, %v836
  %v838 = vsub.f32 1.0, %v837
  %v839 = vmul.f32 %v836, %v838
  %v840 = vadd.f32 %v836, %v839
  %vm841 = vweird.f32 %v835
  %vm842 = vweird.f32 %v836
  %vm843 = vmor %vm841, %vm842
  %v844 = vsel %vm843, %v836, %v840
  %v845 = vand.u32 2147483647, %v835
  %vm846 = vcmp.eq.f32.partialorder %v845, 8.507059e+37
  %v847 = vand.u32 %v835, 2147483648
  %v848 = vor.u32 1.1754944e-38, %v847
  %v849 = vsel %vm846, %v848, %v844
  %v850 = vmul.f32 1.0, %v849
  %v851 = vtanh.pop %v829
  %v852 = vmul.f32 %v850, %v743
  %854 = vrot.lane.b32.xlu0 %v851, 64
  %v855 = vpop.permute.xlu0 %854
  %v857 = vmul.f32 %v850, %v855
  %859 = vrot.lane.b32.xlu0 %v857, 32
  %v860 = vpop.permute.xlu0 %859
  %v862 = vadd.f32 %v852, %v860
  %v863 = vtanh.pop %v862
  %865 = vrot.lane.b32.xlu0 %v863, 64
  %v866 = vpop.permute.xlu0 %865
  %v868 = vmul.f32 %v850, %v866
  %v869 = vxor.u32 %v831, 2147483648
  %v870 = vmul.f32 %v869, 1.442695
  %v871 = vpow.pop %v870
  %v872 = vadd.f32 %v871, 1.0
  %v873 = vrcp.pop %v872
  %v874 = vmul.f32 %v872, %v873
  %v875 = vsub.f32 1.0, %v874
  %v876 = vmul.f32 %v873, %v875
  %v877 = vadd.f32 %v873, %v876
  %vm878 = vweird.f32 %v872
  %vm879 = vweird.f32 %v873
  %vm880 = vmor %vm878, %vm879
  %v881 = vsel %vm880, %v873, %v877
  %v882 = vand.u32 2147483647, %v872
  %vm883 = vcmp.eq.f32.partialorder %v882, 8.507059e+37
  %v884 = vand.u32 %v872, 2147483648
  %v885 = vor.u32 1.1754944e-38, %v884
  %v886 = vsel %vm883, %v885, %v881
  %v887 = vmul.f32 1.0, %v886
  %v888 = vtanh.pop %v831
  %v889 = vmul.f32 %v887, %v780
  %891 = vrot.lane.b32.xlu0 %v888, 64
  %v892 = vpop.permute.xlu0 %891
  %v894 = vmul.f32 %v887, %v892
  %896 = vrot.lane.b32.xlu0 %v894, 32
  %v897 = vpop.permute.xlu0 %896
  %v899 = vadd.f32 %v889, %v897
  %v900 = vtanh.pop %v899
  %902 = vrot.lane.b32.xlu0 %v900, 64
  %v903 = vpop.permute.xlu0 %902
  %v905 = vmul.f32 %v887, %v903
  %907 = vrot.lane.b32.xlu0 %v868, 32
  %v908 = vpop.permute.xlu0 %907
  %910 = vst.msk [vmem:[#allocation4 + $0x28] sm:$0xff] %vm313, %v908
  %912 = vrot.lane.b32.xlu0 %v905, 64
  %v913 = vpop.permute.xlu0 %912
  %915 = vst.msk [vmem:[#allocation4 + $0x10] sm:$0xff] %vm319, %v913
  %v916 = vsel %vm313, %v908, %v913
  %v917 = vpack.c.bf16 %v916, %v916
  %v919 = vsel %vm201, %v917, 0
  %921 = vmatpush.bf16.msra.mxu0 0
  %922 = vmatpush.bf16.msra.mxu0 0
  %923 = vmatpush.bf16.msra.mxu0 0
  %924 = vmatpush.bf16.msra.mxu0 0
  %925 = vmatpush.bf16.msra.mxu0 %v191
  %926 = vmatpush.bf16.msra.mxu0 %v189
  %927 = vmatpush.bf16.msra.mxu0 %v187
  %928 = vmatpush.bf16.msra.mxu0 %v185
  %929 = vmatmul.bf16.gmra.mxu0 %v919
  %v930 = vpop.f32.mrf.mxu0
  %v931 = vadd.f32 0.0, %v930
  %v932 = vpop.f32.mrf.mxu0
  %933 = vdwg.mxu0
  %934 = vmatpush.bf16.msra.mxu0 0
  %935 = vmatpush.bf16.msra.mxu0 0
  %936 = vmatpush.bf16.msra.mxu0 0
  %937 = vmatpush.bf16.msra.mxu0 0
  %938 = vmatpush.bf16.msra.mxu0 %v192
  %939 = vmatpush.bf16.msra.mxu0 %v190
  %940 = vmatpush.bf16.msra.mxu0 %v188
  %941 = vmatpush.bf16.msra.mxu0 %v186
  %942 = vmatmul.bf16.gmra.mxu0 %v919
  %v943 = vpop.f32.mrf.mxu0
  %v944 = vadd.f32 0.0, %v943
  %v945 = vpop.f32.mrf.mxu0
  %946 = vdwg.mxu0
  %v947 = vld [vmem:[#allocation2 + $0x30] sm:$0xff]
  %v948 = vadd.f32 %v947, %v931
  %v949 = vld [vmem:[#allocation3 + $0x8] sm:$0xff]
  %v950 = vadd.f32 %v949, %v944
  %v951 = vxor.u32 %v948, 2147483648
  %v952 = vmul.f32 %v951, 1.442695
  %v953 = vpow.pop %v952
  %v954 = vadd.f32 %v953, 1.0
  %v955 = vrcp.pop %v954
  %v956 = vmul.f32 %v954, %v955
  %v957 = vsub.f32 1.0, %v956
  %v958 = vmul.f32 %v955, %v957
  %v959 = vadd.f32 %v955, %v958
  %vm960 = vweird.f32 %v954
  %vm961 = vweird.f32 %v955
  %vm962 = vmor %vm960, %vm961
  %v963 = vsel %vm962, %v955, %v959
  %v964 = vand.u32 2147483647, %v954
  %vm965 = vcmp.eq.f32.partialorder %v964, 8.507059e+37
  %v966 = vand.u32 %v954, 2147483648
  %v967 = vor.u32 1.1754944e-38, %v966
  %v968 = vsel %vm965, %v967, %v963
  %v969 = vmul.f32 1.0, %v968
  %v970 = vtanh.pop %v948
  %v971 = vmul.f32 %v969, %v862
  %973 = vrot.lane.b32.xlu0 %v970, 64
  %v974 = vpop.permute.xlu0 %973
  %v976 = vmul.f32 %v969, %v974
  %978 = vrot.lane.b32.xlu0 %v976, 32
  %v979 = vpop.permute.xlu0 %978
  %v981 = vadd.f32 %v971, %v979
  %v982 = vtanh.pop %v981
  %984 = vrot.lane.b32.xlu0 %v982, 64
  %v985 = vpop.permute.xlu0 %984
  %v987 = vmul.f32 %v969, %v985
  %v988 = vxor.u32 %v950, 2147483648
  %v989 = vmul.f32 %v988, 1.442695
  %v990 = vpow.pop %v989
  %v991 = vadd.f32 %v990, 1.0
  %v992 = vrcp.pop %v991
  %v993 = vmul.f32 %v991, %v992
  %v994 = vsub.f32 1.0, %v993
  %v995 = vmul.f32 %v992, %v994
  %v996 = vadd.f32 %v992, %v995
  %vm997 = vweird.f32 %v991
  %vm998 = vweird.f32 %v992
  %vm999 = vmor %vm997, %vm998
  %v1000 = vsel %vm999, %v992, %v996
  %v1001 = vand.u32 2147483647, %v991
  %vm1002 = vcmp.eq.f32.partialorder %v1001, 8.507059e+37
  %v1003 = vand.u32 %v991, 2147483648
  %v1004 = vor.u32 1.1754944e-38, %v1003
  %v1005 = vsel %vm1002, %v1004, %v1000
  %v1006 = vmul.f32 1.0, %v1005
  %v1007 = vtanh.pop %v950
  %v1008 = vmul.f32 %v1006, %v899
  %1010 = vrot.lane.b32.xlu0 %v1007, 64
  %v1011 = vpop.permute.xlu0 %1010
  %v1013 = vmul.f32 %v1006, %v1011
  %1015 = vrot.lane.b32.xlu0 %v1013, 32
  %v1016 = vpop.permute.xlu0 %1015
  %v1018 = vadd.f32 %v1008, %v1016
  %v1019 = vtanh.pop %v1018
  %1021 = vrot.lane.b32.xlu0 %v1019, 64
  %v1022 = vpop.permute.xlu0 %1021
  %v1024 = vmul.f32 %v1006, %v1022
  %1026 = vrot.lane.b32.xlu0 %v987, 32
  %v1027 = vpop.permute.xlu0 %1026
  %1029 = vst.msk [vmem:[#allocation4 + $0x30] sm:$0xff] %vm313, %v1027
  %1031 = vrot.lane.b32.xlu0 %v1024, 64
  %v1032 = vpop.permute.xlu0 %1031
  %1034 = vst.msk [vmem:[#allocation4 + $0x8] sm:$0xff] %vm319, %v1032
  %v1035 = vsel %vm313, %v1027, %v1032
  %v1036 = vpack.c.bf16 %v1035, %v1035
  %v1038 = vsel %vm201, %v1036, 0
  %1040 = vmatpush.bf16.msra.mxu0 0
  %1041 = vmatpush.bf16.msra.mxu0 0
  %1042 = vmatpush.bf16.msra.mxu0 0
  %1043 = vmatpush.bf16.msra.mxu0 0
  %1044 = vmatpush.bf16.msra.mxu0 %v191
  %1045 = vmatpush.bf16.msra.mxu0 %v189
  %1046 = vmatpush.bf16.msra.mxu0 %v187
  %1047 = vmatpush.bf16.msra.mxu0 %v185
  %1048 = vmatmul.bf16.gmra.mxu0 %v1038
  %v1049 = vpop.f32.mrf.mxu0
  %v1050 = vadd.f32 0.0, %v1049
  %v1051 = vpop.f32.mrf.mxu0
  %1052 = vdwg.mxu0
  %1053 = vmatpush.bf16.msra.mxu0 0
  %1054 = vmatpush.bf16.msra.mxu0 0
  %1055 = vmatpush.bf16.msra.mxu0 0
  %1056 = vmatpush.bf16.msra.mxu0 0
  %1057 = vmatpush.bf16.msra.mxu0 %v192
  %1058 = vmatpush.bf16.msra.mxu0 %v190
  %1059 = vmatpush.bf16.msra.mxu0 %v188
  %1060 = vmatpush.bf16.msra.mxu0 %v186
  %1061 = vmatmul.bf16.gmra.mxu0 %v1038
  %v1062 = vpop.f32.mrf.mxu0
  %v1063 = vadd.f32 0.0, %v1062
  %v1064 = vpop.f32.mrf.mxu0
  %1065 = vdwg.mxu0
  %v1066 = vld [vmem:[#allocation2 + $0x38] sm:$0xff]
  %v1067 = vadd.f32 %v1066, %v1050
  %v1068 = vld [vmem:[#allocation3] sm:$0xff]
  %v1069 = vadd.f32 %v1068, %v1063
  %v1070 = vxor.u32 %v1067, 2147483648
  %v1071 = vmul.f32 %v1070, 1.442695
  %v1072 = vpow.pop %v1071
  %v1073 = vadd.f32 %v1072, 1.0
  %v1074 = vrcp.pop %v1073
  %v1075 = vmul.f32 %v1073, %v1074
  %v1076 = vsub.f32 1.0, %v1075
  %v1077 = vmul.f32 %v1074, %v1076
  %v1078 = vadd.f32 %v1074, %v1077
  %vm1079 = vweird.f32 %v1073
  %vm1080 = vweird.f32 %v1074
  %vm1081 = vmor %vm1079, %vm1080
  %v1082 = vsel %vm1081, %v1074, %v1078
  %v1083 = vand.u32 2147483647, %v1073
  %vm1084 = vcmp.eq.f32.partialorder %v1083, 8.507059e+37
  %v1085 = vand.u32 %v1073, 2147483648
  %v1086 = vor.u32 1.1754944e-38, %v1085
  %v1087 = vsel %vm1084, %v1086, %v1082
  %v1088 = vmul.f32 1.0, %v1087
  %v1089 = vtanh.pop %v1067
  %v1090 = vmul.f32 %v1088, %v981
  %1092 = vrot.lane.b32.xlu0 %v1089, 64
  %v1093 = vpop.permute.xlu0 %1092
  %v1095 = vmul.f32 %v1088, %v1093
  %1097 = vrot.lane.b32.xlu0 %v1095, 32
  %v1098 = vpop.permute.xlu0 %1097
  %v1100 = vadd.f32 %v1090, %v1098
  %v1101 = vtanh.pop %v1100
  %1103 = vrot.lane.b32.xlu0 %v1101, 64
  %v1104 = vpop.permute.xlu0 %1103
  %v1106 = vmul.f32 %v1088, %v1104
  %v1107 = vxor.u32 %v1069, 2147483648
  %v1108 = vmul.f32 %v1107, 1.442695
  %v1109 = vpow.pop %v1108
  %v1110 = vadd.f32 %v1109, 1.0
  %v1111 = vrcp.pop %v1110
  %v1112 = vmul.f32 %v1110, %v1111
  %v1113 = vsub.f32 1.0, %v1112
  %v1114 = vmul.f32 %v1111, %v1113
  %v1115 = vadd.f32 %v1111, %v1114
  %vm1116 = vweird.f32 %v1110
  %vm1117 = vweird.f32 %v1111
  %vm1118 = vmor %vm1116, %vm1117
  %v1119 = vsel %vm1118, %v1111, %v1115
  %v1120 = vand.u32 2147483647, %v1110
  %vm1121 = vcmp.eq.f32.partialorder %v1120, 8.507059e+37
  %v1122 = vand.u32 %v1110, 2147483648
  %v1123 = vor.u32 1.1754944e-38, %v1122
  %v1124 = vsel %vm1121, %v1123, %v1119
  %v1125 = vmul.f32 1.0, %v1124
  %v1126 = vtanh.pop %v1069
  %v1127 = vmul.f32 %v1125, %v1018
  %1129 = vrot.lane.b32.xlu0 %v1126, 64
  %v1130 = vpop.permute.xlu0 %1129
  %v1132 = vmul.f32 %v1125, %v1130
  %1134 = vrot.lane.b32.xlu0 %v1132, 32
  %v1135 = vpop.permute.xlu0 %1134
  %v1137 = vadd.f32 %v1127, %v1135
  %v1138 = vtanh.pop %v1137
  %1140 = vrot.lane.b32.xlu0 %v1138, 64
  %v1141 = vpop.permute.xlu0 %1140
  %v1143 = vmul.f32 %v1125, %v1141
  %1145 = vrot.lane.b32.xlu0 %v1106, 32
  %v1146 = vpop.permute.xlu0 %1145
  %1148 = vst.msk [vmem:[#allocation4 + $0x38] sm:$0xff] %vm313, %v1146
  %1150 = vrot.lane.b32.xlu0 %v1143, 64
  %v1151 = vpop.permute.xlu0 %1150
  %1153 = vst.msk [vmem:[#allocation4] sm:$0xff] %vm319, %v1151
  %v1154 = vld [vmem:[#allocation4] sm:$0xff]
  %v1155 = vld [vmem:[#allocation4 + $0x8] sm:$0xff]
  %v1156 = vld [vmem:[#allocation4 + $0x10] sm:$0xff]
  %v1157 = vld [vmem:[#allocation4 + $0x18] sm:$0xff]
  %v1158 = vld [vmem:[#allocation4 + $0x20] sm:$0xff]
  %v1159 = vld [vmem:[#allocation4 + $0x28] sm:$0xff]
  %v1160 = vld [vmem:[#allocation4 + $0x30] sm:$0xff]
  %v1161 = vld [vmem:[#allocation4 + $0x38] sm:$0xff]
  %v1162 = vpack.c.bf16 %v1154, %v1154
  %v1163 = vpack.c.bf16 %v1155, %v1155
  %v1164 = vpack.c.bf16 %v1156, %v1156
  %v1165 = vpack.c.bf16 %v1157, %v1157
  %v1166 = vpack.c.bf16 %v1158, %v1158
  %v1167 = vpack.c.bf16 %v1159, %v1159
  %v1168 = vpack.c.bf16 %v1160, %v1160
  %v1169 = vpack.c.bf16 %v1161, %v1161
  %vm1170 = vcmask 519168
  %1171 = vst.msk [vmem:[%s4] sm:$0xf] %vm1170, %v1162
  %1172 = vst.msk [vmem:[%s4 + $0x4] sm:$0xf] %vm1170, %v1163
  %1173 = vst.msk [vmem:[%s4 + $0x8] sm:$0xf] %vm1170, %v1164
  %1174 = vst.msk [vmem:[%s4 + $0xc] sm:$0xf] %vm1170, %v1165
  %1175 = vst.msk [vmem:[%s4 + $0x10] sm:$0xf] %vm1170, %v1166
  %1176 = vst.msk [vmem:[%s4 + $0x14] sm:$0xf] %vm1170, %v1167
  %1177 = vst.msk [vmem:[%s4 + $0x18] sm:$0xf] %vm1170, %v1168
  %1178 = vst.msk [vmem:[%s4 + $0x1c] sm:$0xf] %vm1170, %v1169
  // Predicated region
  $region18: #{bilstm_forward.2} parent=0 // pred_check
    _
  $region19: #{bilstm_forward.2} parent=0 // pred_check_branch
    %1180 = sbr.rel (0) target = $region21
  $region20: #{bilstm_forward.2} parent=0 // pred_region
    _
  $region21: #{bilstm_forward.2} parent=0 // pred_fallthru
    _
  // Predicated region
  $region22: #{bilstm_forward.2} parent=0 // pred_check
    _
  $region23: #{bilstm_forward.2} parent=0 // pred_check_branch
    %1182 = sbr.rel (0) target = $region25
  $region24: #{bilstm_forward.2} parent=0 // pred_region
    _
  $region25: #{bilstm_forward.2} parent=0 // pred_fallthru
    _

// kernel: bilstm_forward.3
$region0: #{bilstm_forward.3}
  #allocation0 [shape = 'u32[]', space=smem, size = 0x4, offset = 0x4, fixed_abs, tag = 'smem constant byte address 0x4 - core index']
  #allocation1 [shape = 'u32[72,128]{1,0:T(1,128)}', space=vmem, size = 0x9000, scoped, tag = 'internal scratch']
  #allocation2 [shape = 'f32[64,128]{1,0:T(8,128)}', space=vmem, size = 0x8000, scoped, tag = 'scratch operand']
  %s0 = inlined_call_operand.vmem [shape: bf16[64,64], index: 0, kind: input, shape index: {}]
  %s1 = inlined_call_operand.vmem [shape: bf16[64,128], index: 1, kind: input, shape index: {}]
  %s2 = inlined_call_operand.hbm [shape: bf16[64,128], index: 2, kind: input, shape index: {}]
  %s3 = inlined_call_operand.hbm [shape: bf16[32,128], index: 3, kind: input, shape index: {}]
  %s4 = inlined_call_operand.vmem [shape: f32[1,128], index: 4, kind: input, shape index: {}]
  %s5 = inlined_call_operand.vmem [shape: f32[1,128], index: 5, kind: input, shape index: {}]
  %s6 = inlined_call_operand.hbm [shape: bf16[64,128], index: 6, kind: input, shape index: {}]
  %s7 = inlined_call_operand.hbm [shape: f32[1,128], index: 7, kind: input, shape index: {}]
  %s8 = inlined_call_operand.hbm [shape: f32[8,128], index: 8, kind: output, shape index: {}]
  %s9 = sld [smem:[#allocation0]]
  $region58: #{bilstm_forward.3} parent=0
    _
  %s11 = ssub.s32 1, %s9
  %s12 = scalar_select 0, %s11, %s9
  $region1: #{bilstm_forward.3} parent=0
    #allocation3 [shape = 'u8[16384]{0}', space=vmem, size = 0x4000, scoped, tag = 'input window, operand 2, single buffered']
    #allocation4 [shape = 's32[1]{0}', space=sflag, size = 0x4, scoped, tag = 'scoped memory for bilstm_forward.3']
    #allocation5 [shape = 's32[1]{0}', space=sflag, size = 0x4, scoped, tag = 'scoped memory for bilstm_forward.3']
    #allocation6 [shape = 'u8[8192]{0}', space=vmem, size = 0x2000, scoped, tag = 'input window, operand 3, single buffered']
    #allocation7 [shape = 's32[1]{0}', space=sflag, size = 0x4, scoped, tag = 'scoped memory for bilstm_forward.3']
    #allocation8 [shape = 'u8[16384]{0}', space=vmem, size = 0x4000, scoped, tag = 'input window, operand 6, single buffered']
    #allocation9 [shape = 'u8[512]{0}', space=vmem, size = 0x400, scoped, tag = 'input window, operand 7, single buffered']
    #allocation10 [shape = 's32[1]{0}', space=sflag, size = 0x4, scoped, tag = 'scoped memory for bilstm_forward.3']
    #allocation11 [shape = 'u8[4096]{0}', space=vmem, size = 0x1000, scoped, tag = 'output window, operand 0, single buffered']
    %13 = vsyncpa [#allocation4], 0
    %14 = vsyncpa [#allocation7], 0
    %15 = vsyncpa [#allocation10], 0
    %16 = vsyncpa [#allocation5], 0
    // Predicated region
    $region2: #{bilstm_forward.3} parent=1 // pred_check
      _
    $region3: #{bilstm_forward.3} parent=1 // pred_check_branch
      %18 = sbr.rel (0) target = $region5
    $region4: #{bilstm_forward.3} parent=1 // pred_region
      _
    $region5: #{bilstm_forward.3} parent=1 // pred_fallthru
      _
    // Predicated region
    $region6: #{bilstm_forward.3} parent=1 // pred_check
      _
    $region7: #{bilstm_forward.3} parent=1 // pred_check_branch
      %20 = sbr.rel (0) target = $region9
    $region8: #{bilstm_forward.3} parent=1 // pred_region
      _
    $region9: #{bilstm_forward.3} parent=1 // pred_fallthru
      _
    // Predicated region
    $region10: #{bilstm_forward.3} parent=1 // pred_check
      _
    $region11: #{bilstm_forward.3} parent=1 // pred_check_branch
      %22 = sbr.rel (0) target = $region13
    $region12: #{bilstm_forward.3} parent=1 // pred_region
      %24 = vsyncadd [#allocation4], 0
      %s25 = sshll.u32 %s2, 4
      %s26 = int_to_ptr.hbm [resolvable:$true] %s25
      %s27 = sshll.u32 [#allocation3], 4
      %s28 = int_to_ptr.vmem [resolvable:$true] %s27
      %33 = dma.hbm_to_vmem [thread:$0]  %s26, 512, %s28, [#allocation4], 64, 64, 4
    $region13: #{bilstm_forward.3} parent=1 // pred_fallthru
      _
    // Predicated region
    $region14: #{bilstm_forward.3} parent=1 // pred_check
      _
    $region15: #{bilstm_forward.3} parent=1 // pred_check_branch
      %35 = sbr.rel (0) target = $region17
    $region16: #{bilstm_forward.3} parent=1 // pred_region
      %37 = vsyncadd [#allocation7], 0
      %s38 = sshll.u32 %s3, 4
      %s39 = int_to_ptr.hbm [resolvable:$true] %s38
      %s40 = sshll.u32 [#allocation6], 4
      %s41 = int_to_ptr.vmem [resolvable:$true] %s40
      %46 = dma.hbm_to_vmem [thread:$0]  %s39, 256, %s41, [#allocation7], 64, 64, 4
    $region17: #{bilstm_forward.3} parent=1 // pred_fallthru
      _
    // Predicated region
    $region18: #{bilstm_forward.3} parent=1 // pred_check
      _
    $region19: #{bilstm_forward.3} parent=1 // pred_check_branch
      %48 = sbr.rel (0) target = $region21
    $region20: #{bilstm_forward.3} parent=1 // pred_region
      _
    $region21: #{bilstm_forward.3} parent=1 // pred_fallthru
      _
    // Predicated region
    $region22: #{bilstm_forward.3} parent=1 // pred_check
      _
    $region23: #{bilstm_forward.3} parent=1 // pred_check_branch
      %50 = sbr.rel (0) target = $region25
    $region24: #{bilstm_forward.3} parent=1 // pred_region
      _
    $region25: #{bilstm_forward.3} parent=1 // pred_fallthru
      _
    // Predicated region
    $region26: #{bilstm_forward.3} parent=1 // pred_check
      _
    $region27: #{bilstm_forward.3} parent=1 // pred_check_branch
      %52 = sbr.rel (0) target = $region29
    $region28: #{bilstm_forward.3} parent=1 // pred_region
      %54 = vsyncadd [#allocation7], 0
      %s55 = sshll.u32 %s6, 4
      %s56 = int_to_ptr.hbm [resolvable:$true] %s55
      %s57 = sshll.u32 [#allocation8], 4
      %s58 = int_to_ptr.vmem [resolvable:$true] %s57
      %63 = dma.hbm_to_vmem [thread:$0]  %s56, 512, %s58, [#allocation7], 64, 64, 4
    $region29: #{bilstm_forward.3} parent=1 // pred_fallthru
      _
    // Predicated region
    $region30: #{bilstm_forward.3} parent=1 // pred_check
      _
    $region31: #{bilstm_forward.3} parent=1 // pred_check_branch
      %65 = sbr.rel (0) target = $region33
    $region32: #{bilstm_forward.3} parent=1 // pred_region
      %67 = vsyncadd [#allocation10], 0
      %s69 = sshll.u32 %s7, 4
      %s70 = int_to_ptr.hbm [resolvable:$true] %s69
      %s71 = sshll.u32 [#allocation9], 4
      %s72 = int_to_ptr.vmem [resolvable:$true] %s71
      %74 = dma.hbm_to_vmem [thread:$0]  %s70, 16, %s72, [#allocation10]
    $region33: #{bilstm_forward.3} parent=1 // pred_fallthru
      _
    // Predicated region
    $region34: #{bilstm_forward.3} parent=1 // pred_check
      _
    $region35: #{bilstm_forward.3} parent=1 // pred_check_branch
      %76 = sbr.rel (0) target = $region37
    $region36: #{bilstm_forward.3} parent=1 // pred_region
      %78 = dma.done [#allocation4], 512
    $region37: #{bilstm_forward.3} parent=1 // pred_fallthru
      _
    // Predicated region
    $region38: #{bilstm_forward.3} parent=1 // pred_check
      _
    $region39: #{bilstm_forward.3} parent=1 // pred_check_branch
      %80 = sbr.rel (0) target = $region41
    $region40: #{bilstm_forward.3} parent=1 // pred_region
      %82 = dma.done [#allocation7], 256
    $region41: #{bilstm_forward.3} parent=1 // pred_fallthru
      _
    // Predicated region
    $region42: #{bilstm_forward.3} parent=1 // pred_check
      _
    $region43: #{bilstm_forward.3} parent=1 // pred_check_branch
      %84 = sbr.rel (0) target = $region45
    $region44: #{bilstm_forward.3} parent=1 // pred_region
      %86 = dma.done [#allocation7], 512
    $region45: #{bilstm_forward.3} parent=1 // pred_fallthru
      _
    // Predicated region
    $region46: #{bilstm_forward.3} parent=1 // pred_check
      _
    $region47: #{bilstm_forward.3} parent=1 // pred_check_branch
      %88 = sbr.rel (0) target = $region49
    $region48: #{bilstm_forward.3} parent=1 // pred_region
      %90 = dma.done [#allocation10], 16
    $region49: #{bilstm_forward.3} parent=1 // pred_fallthru
      _
    %v92 = vld [vmem:[%s0] sm:$0xf]
    %v93 = vld [vmem:[%s0 + $0x4] sm:$0xf]
    %v94 = vld [vmem:[%s0 + $0x8] sm:$0xf]
    %v95 = vld [vmem:[%s0 + $0xc] sm:$0xf]
    %v96 = vld [vmem:[%s0 + $0x10] sm:$0xf]
    %v97 = vld [vmem:[%s0 + $0x14] sm:$0xf]
    %v98 = vld [vmem:[%s0 + $0x18] sm:$0xf]
    %v99 = vld [vmem:[%s0 + $0x1c] sm:$0xf]
    %v100 = vld [vmem:[%s1] sm:$0xf]
    %v101 = vld [vmem:[%s1 + $0x4] sm:$0xf]
    %v102 = vld [vmem:[%s1 + $0x8] sm:$0xf]
    %v103 = vld [vmem:[%s1 + $0xc] sm:$0xf]
    %v104 = vld [vmem:[%s1 + $0x10] sm:$0xf]
    %v105 = vld [vmem:[%s1 + $0x14] sm:$0xf]
    %v106 = vld [vmem:[%s1 + $0x18] sm:$0xf]
    %v107 = vld [vmem:[%s1 + $0x1c] sm:$0xf]
    %v108 = vld [vmem:[%s4] sm:$0x1]
    %v110 = vperm.slane %v108, 0
    %v120 = vunpack.c.l.b16 %v92
    %v121 = vunpack.c.l.b16 %v93
    %v122 = vunpack.c.l.b16 %v94
    %v123 = vunpack.c.l.b16 %v95
    %v124 = vunpack.c.l.b16 %v96
    %v125 = vunpack.c.l.b16 %v97
    %v126 = vunpack.c.l.b16 %v98
    %v127 = vunpack.c.l.b16 %v99
    %v128 = vpack.c.b16 %v121, %v120
    %v129 = vpack.c.b16 %v123, %v122
    %v130 = vpack.c.b16 %v125, %v124
    %v131 = vpack.c.b16 %v127, %v126
    %v140 = vunpack.c.l.b16 %v100
    %v141 = vunpack.c.l.b16 %v101
    %v142 = vunpack.c.l.b16 %v102
    %v143 = vunpack.c.l.b16 %v103
    %v144 = vunpack.c.l.b16 %v104
    %v145 = vunpack.c.l.b16 %v105
    %v146 = vunpack.c.l.b16 %v106
    %v147 = vunpack.c.l.b16 %v107
    %v148 = vpack.c.b16 %v141, %v140
    %v149 = vpack.c.b16 %v143, %v142
    %v150 = vpack.c.b16 %v145, %v144
    %v151 = vpack.c.b16 %v147, %v146
    %vm156 = vcmask 523264
    %v158 = vsel %vm156, %v128, 0
    %v161 = vsel %vm156, %v129, 0
    %v164 = vsel %vm156, %v130, 0
    %v167 = vsel %vm156, %v131, 0
    %169 = vmatpush.bf16.msra.mxu0 0
    %170 = vmatpush.bf16.msra.mxu0 0
    %171 = vmatpush.bf16.msra.mxu0 0
    %172 = vmatpush.bf16.msra.mxu0 0
    %173 = vmatpush.bf16.msra.mxu0 %v151
    %174 = vmatpush.bf16.msra.mxu0 %v150
    %175 = vmatpush.bf16.msra.mxu0 %v149
    %176 = vmatpush.bf16.msra.mxu0 %v148
    %177 = vmatmul.bf16.gmra.mxu0 %v158
    %v178 = vpop.f32.mrf.mxu0
    %v179 = vadd.f32 %v110, %v178
    %v180 = vpop.f32.mrf.mxu0
    %v181 = vadd.f32 %v110, %v180
    %182 = vmatmul.bf16.gmra.mxu0 %v161
    %v183 = vpop.f32.mrf.mxu0
    %v184 = vadd.f32 %v110, %v183
    %v185 = vpop.f32.mrf.mxu0
    %v186 = vadd.f32 %v110, %v185
    %187 = vmatmul.bf16.gmra.mxu0 %v164
    %v188 = vpop.f32.mrf.mxu0
    %v189 = vadd.f32 %v110, %v188
    %v190 = vpop.f32.mrf.mxu0
    %v191 = vadd.f32 %v110, %v190
    %192 = vmatmul.bf16.gmra.mxu0 %v167
    %v193 = vpop.f32.mrf.mxu0
    %v194 = vadd.f32 %v110, %v193
    %v195 = vpop.f32.mrf.mxu0
    %v196 = vadd.f32 %v110, %v195
    %197 = vdwg.mxu0
    %198 = vst [vmem:[#allocation2] sm:$0xff] %v179
    %199 = vst [vmem:[#allocation2 + $0x8] sm:$0xff] %v181
    %200 = vst [vmem:[#allocation2 + $0x10] sm:$0xff] %v184
    %201 = vst [vmem:[#allocation2 + $0x18] sm:$0xff] %v186
    %202 = vst [vmem:[#allocation2 + $0x20] sm:$0xff] %v189
    %203 = vst [vmem:[#allocation2 + $0x28] sm:$0xff] %v191
    %204 = vst [vmem:[#allocation2 + $0x30] sm:$0xff] %v194
    %205 = vst [vmem:[#allocation2 + $0x38] sm:$0xff] %v196
    %v206 = vld [vmem:[#allocation6] sm:$0xf]
    %v207 = vld [vmem:[#allocation6 + $0x4] sm:$0xf]
    %v208 = vld [vmem:[#allocation6 + $0x8] sm:$0xf]
    %v209 = vld [vmem:[#allocation6 + $0xc] sm:$0xf]
    %v210 = vld [vmem:[#allocation2] sm:$0xff]
    %v215 = vunpack.c.l.b16 %v206
    %v216 = vunpack.c.l.b16 %v207
    %v217 = vunpack.c.l.b16 %v208
    %v218 = vunpack.c.l.b16 %v209
    %v219 = vpack.c.b16 %v216, %v215
    %v220 = vpack.c.b16 %v218, %v217
    %vm223 = vcmask 261120
    %v225 = vsel %vm223, 0, 0
    %227 = vmatpush.bf16.msra.mxu0 0
    %228 = vmatpush.bf16.msra.mxu0 0
    %229 = vmatpush.bf16.msra.mxu0 0
    %230 = vmatpush.bf16.msra.mxu0 0
    %231 = vmatpush.bf16.msra.mxu0 0
    %232 = vmatpush.bf16.msra.mxu0 0
    %233 = vmatpush.bf16.msra.mxu0 %v220
    %234 = vmatpush.bf16.msra.mxu0 %v219
    %235 = vmatmul.bf16.gmra.mxu0 %v225
    %v236 = vpop.f32.mrf.mxu0
    %v237 = vadd.f32 0.0, %v236
    %v238 = vpop.f32.mrf.mxu0
    %239 = vdwg.mxu0
    %v240 = vadd.f32 %v210, %v237
    %v241 = vxor.u32 %v240, 2147483648
    %v242 = vmul.f32 %v241, 1.442695
    %v243 = vpow.pop %v242
    %v244 = vadd.f32 %v243, 1.0
    %v245 = vrcp.pop %v244
    %v246 = vmul.f32 %v244, %v245
    %v247 = vsub.f32 1.0, %v246
    %v248 = vmul.f32 %v245, %v247
    %v249 = vadd.f32 %v245, %v248
    %vm250 = vweird.f32 %v244
    %vm251 = vweird.f32 %v245
    %vm252 = vmor %vm250, %vm251
    %v253 = vsel %vm252, %v245, %v249
    %v254 = vand.u32 2147483647, %v244
    %vm255 = vcmp.eq.f32.partialorder %v254, 8.507059e+37
    %v256 = vand.u32 %v244, 2147483648
    %v257 = vor.u32 1.1754944e-38, %v256
    %v258 = vsel %vm255, %v257, %v253
    %v259 = vmul.f32 1.0, %v258
    %v260 = vtanh.pop %v240
    %v261 = vmul.f32 %v259, 0.0
    %263 = vrot.lane.b32.xlu0 %v260, 64
    %v264 = vpop.permute.xlu0 %263
    %v266 = vmul.f32 %v259, %v264
    %268 = vrot.lane.b32.xlu0 %v266, 32
    %v269 = vpop.permute.xlu0 %268
    %v271 = vadd.f32 %v261, %v269
    %v272 = vtanh.pop %v271
    %274 = vrot.lane.b32.xlu0 %v272, 64
    %v275 = vpop.permute.xlu0 %274
    %v277 = vmul.f32 %v259, %v275
    %v278 = vld [vmem:[#allocation2 + $0x8] sm:$0xff]
    %v279 = vpack.c.bf16 %v277, %v277
    %281 = vrot.lane.b32.xlu0 %v279, 32
    %v282 = vpop.permute.xlu0 %281
    %v284 = vsel %vm223, %v282, 0
    %286 = vmatpush.bf16.msra.mxu0 0
    %287 = vmatpush.bf16.msra.mxu0 0
    %288 = vmatpush.bf16.msra.mxu0 0
    %289 = vmatpush.bf16.msra.mxu0 0
    %290 = vmatpush.bf16.msra.mxu0 0
    %291 = vmatpush.bf16.msra.mxu0 0
    %292 = vmatpush.bf16.msra.mxu0 %v220
    %293 = vmatpush.bf16.msra.mxu0 %v219
    %294 = vmatmul.bf16.gmra.mxu0 %v284
    %v295 = vpop.f32.mrf.mxu0
    %v296 = vadd.f32 0.0, %v295
    %v297 = vpop.f32.mrf.mxu0
    %298 = vdwg.mxu0
    %v299 = vadd.f32 %v278, %v296
    %v300 = vxor.u32 %v299, 2147483648
    %v301 = vmul.f32 %v300, 1.442695
    %v302 = vpow.pop %v301
    %v303 = vadd.f32 %v302, 1.0
    %v304 = vrcp.pop %v303
    %v305 = vmul.f32 %v303, %v304
    %v306 = vsub.f32 1.0, %v305
    %v307 = vmul.f32 %v304, %v306
    %v308 = vadd.f32 %v304, %v307
    %vm309 = vweird.f32 %v303
    %vm310 = vweird.f32 %v304
    %vm311 = vmor %vm309, %vm310
    %v312 = vsel %vm311, %v304, %v308
    %v313 = vand.u32 2147483647, %v303
    %vm314 = vcmp.eq.f32.partialorder %v313, 8.507059e+37
    %v315 = vand.u32 %v303, 2147483648
    %v316 = vor.u32 1.1754944e-38, %v315
    %v317 = vsel %vm314, %v316, %v312
    %v318 = vmul.f32 1.0, %v317
    %v319 = vtanh.pop %v299
    %v320 = vmul.f32 %v318, %v271
    %322 = vrot.lane.b32.xlu0 %v319, 64
    %v323 = vpop.permute.xlu0 %322
    %v325 = vmul.f32 %v318, %v323
    %327 = vrot.lane.b32.xlu0 %v325, 32
    %v328 = vpop.permute.xlu0 %327
    %v330 = vadd.f32 %v320, %v328
    %v331 = vtanh.pop %v330
    %333 = vrot.lane.b32.xlu0 %v331, 64
    %v334 = vpop.permute.xlu0 %333
    %v336 = vmul.f32 %v318, %v334
    %v337 = vld [vmem:[#allocation2 + $0x10] sm:$0xff]
    %v338 = vpack.c.bf16 %v336, %v336
    %340 = vrot.lane.b32.xlu0 %v338, 32
    %v341 = vpop.permute.xlu0 %340
    %v343 = vsel %vm223, %v341, 0
    %345 = vmatpush.bf16.msra.mxu0 0
    %346 = vmatpush.bf16.msra.mxu0 0
    %347 = vmatpush.bf16.msra.mxu0 0
    %348 = vmatpush.bf16.msra.mxu0 0
    %349 = vmatpush.bf16.msra.mxu0 0
    %350 = vmatpush.bf16.msra.mxu0 0
    %351 = vmatpush.bf16.msra.mxu0 %v220
    %352 = vmatpush.bf16.msra.mxu0 %v219
    %353 = vmatmul.bf16.gmra.mxu0 %v343
    %v354 = vpop.f32.mrf.mxu0
    %v355 = vadd.f32 0.0, %v354
    %v356 = vpop.f32.mrf.mxu0
    %357 = vdwg.mxu0
    %v358 = vadd.f32 %v337, %v355
    %v359 = vxor.u32 %v358, 2147483648
    %v360 = vmul.f32 %v359, 1.442695
    %v361 = vpow.pop %v360
    %v362 = vadd.f32 %v361, 1.0
    %v363 = vrcp.pop %v362
    %v364 = vmul.f32 %v362, %v363
    %v365 = vsub.f32 1.0, %v364
    %v366 = vmul.f32 %v363, %v365
    %v367 = vadd.f32 %v363, %v366
    %vm368 = vweird.f32 %v362
    %vm369 = vweird.f32 %v363
    %vm370 = vmor %vm368, %vm369
    %v371 = vsel %vm370, %v363, %v367
    %v372 = vand.u32 2147483647, %v362
    %vm373 = vcmp.eq.f32.partialorder %v372, 8.507059e+37
    %v374 = vand.u32 %v362, 2147483648
    %v375 = vor.u32 1.1754944e-38, %v374
    %v376 = vsel %vm373, %v375, %v371
    %v377 = vmul.f32 1.0, %v376
    %v378 = vtanh.pop %v358
    %v379 = vmul.f32 %v377, %v330
    %381 = vrot.lane.b32.xlu0 %v378, 64
    %v382 = vpop.permute.xlu0 %381
    %v384 = vmul.f32 %v377, %v382
    %386 = vrot.lane.b32.xlu0 %v384, 32
    %v387 = vpop.permute.xlu0 %386
    %v389 = vadd.f32 %v379, %v387
    %v390 = vtanh.pop %v389
    %392 = vrot.lane.b32.xlu0 %v390, 64
    %v393 = vpop.permute.xlu0 %392
    %v395 = vmul.f32 %v377, %v393
    %v396 = vld [vmem:[#allocation2 + $0x18] sm:$0xff]
    %v397 = vpack.c.bf16 %v395, %v395
    %399 = vrot.lane.b32.xlu0 %v397, 32
    %v400 = vpop.permute.xlu0 %399
    %v402 = vsel %vm223, %v400, 0
    %404 = vmatpush.bf16.msra.mxu0 0
    %405 = vmatpush.bf16.msra.mxu0 0
    %406 = vmatpush.bf16.msra.mxu0 0
    %407 = vmatpush.bf16.msra.mxu0 0
    %408 = vmatpush.bf16.msra.mxu0 0
    %409 = vmatpush.bf16.msra.mxu0 0
    %410 = vmatpush.bf16.msra.mxu0 %v220
    %411 = vmatpush.bf16.msra.mxu0 %v219
    %412 = vmatmul.bf16.gmra.mxu0 %v402
    %v413 = vpop.f32.mrf.mxu0
    %v414 = vadd.f32 0.0, %v413
    %v415 = vpop.f32.mrf.mxu0
    %416 = vdwg.mxu0
    %v417 = vadd.f32 %v396, %v414
    %v418 = vxor.u32 %v417, 2147483648
    %v419 = vmul.f32 %v418, 1.442695
    %v420 = vpow.pop %v419
    %v421 = vadd.f32 %v420, 1.0
    %v422 = vrcp.pop %v421
    %v423 = vmul.f32 %v421, %v422
    %v424 = vsub.f32 1.0, %v423
    %v425 = vmul.f32 %v422, %v424
    %v426 = vadd.f32 %v422, %v425
    %vm427 = vweird.f32 %v421
    %vm428 = vweird.f32 %v422
    %vm429 = vmor %vm427, %vm428
    %v430 = vsel %vm429, %v422, %v426
    %v431 = vand.u32 2147483647, %v421
    %vm432 = vcmp.eq.f32.partialorder %v431, 8.507059e+37
    %v433 = vand.u32 %v421, 2147483648
    %v434 = vor.u32 1.1754944e-38, %v433
    %v435 = vsel %vm432, %v434, %v430
    %v436 = vmul.f32 1.0, %v435
    %v437 = vtanh.pop %v417
    %v438 = vmul.f32 %v436, %v389
    %440 = vrot.lane.b32.xlu0 %v437, 64
    %v441 = vpop.permute.xlu0 %440
    %v443 = vmul.f32 %v436, %v441
    %445 = vrot.lane.b32.xlu0 %v443, 32
    %v446 = vpop.permute.xlu0 %445
    %v448 = vadd.f32 %v438, %v446
    %v449 = vtanh.pop %v448
    %451 = vrot.lane.b32.xlu0 %v449, 64
    %v452 = vpop.permute.xlu0 %451
    %v454 = vmul.f32 %v436, %v452
    %v455 = vld [vmem:[#allocation2 + $0x20] sm:$0xff]
    %v456 = vpack.c.bf16 %v454, %v454
    %458 = vrot.lane.b32.xlu0 %v456, 32
    %v459 = vpop.permute.xlu0 %458
    %v461 = vsel %vm223, %v459, 0
    %463 = vmatpush.bf16.msra.mxu0 0
    %464 = vmatpush.bf16.msra.mxu0 0
    %465 = vmatpush.bf16.msra.mxu0 0
    %466 = vmatpush.bf16.msra.mxu0 0
    %467 = vmatpush.bf16.msra.mxu0 0
    %468 = vmatpush.bf16.msra.mxu0 0
    %469 = vmatpush.bf16.msra.mxu0 %v220
    %470 = vmatpush.bf16.msra.mxu0 %v219
    %471 = vmatmul.bf16.gmra.mxu0 %v461
    %v472 = vpop.f32.mrf.mxu0
    %v473 = vadd.f32 0.0, %v472
    %v474 = vpop.f32.mrf.mxu0
    %475 = vdwg.mxu0
    %v476 = vadd.f32 %v455, %v473
    %v477 = vxor.u32 %v476, 2147483648
    %v478 = vmul.f32 %v477, 1.442695
    %v479 = vpow.pop %v478
    %v480 = vadd.f32 %v479, 1.0
    %v481 = vrcp.pop %v480
    %v482 = vmul.f32 %v480, %v481
    %v483 = vsub.f32 1.0, %v482
    %v484 = vmul.f32 %v481, %v483
    %v485 = vadd.f32 %v481, %v484
    %vm486 = vweird.f32 %v480
    %vm487 = vweird.f32 %v481
    %vm488 = vmor %vm486, %vm487
    %v489 = vsel %vm488, %v481, %v485
    %v490 = vand.u32 2147483647, %v480
    %vm491 = vcmp.eq.f32.partialorder %v490, 8.507059e+37
    %v492 = vand.u32 %v480, 2147483648
    %v493 = vor.u32 1.1754944e-38, %v492
    %v494 = vsel %vm491, %v493, %v489
    %v495 = vmul.f32 1.0, %v494
    %v496 = vtanh.pop %v476
    %v497 = vmul.f32 %v495, %v448
    %499 = vrot.lane.b32.xlu0 %v496, 64
    %v500 = vpop.permute.xlu0 %499
    %v502 = vmul.f32 %v495, %v500
    %504 = vrot.lane.b32.xlu0 %v502, 32
    %v505 = vpop.permute.xlu0 %504
    %v507 = vadd.f32 %v497, %v505
    %v508 = vtanh.pop %v507
    %510 = vrot.lane.b32.xlu0 %v508, 64
    %v511 = vpop.permute.xlu0 %510
    %v513 = vmul.f32 %v495, %v511
    %v514 = vld [vmem:[#allocation2 + $0x28] sm:$0xff]
    %v515 = vpack.c.bf16 %v513, %v513
    %517 = vrot.lane.b32.xlu0 %v515, 32
    %v518 = vpop.permute.xlu0 %517
    %v520 = vsel %vm223, %v518, 0
    %522 = vmatpush.bf16.msra.mxu0 0
    %523 = vmatpush.bf16.msra.mxu0 0
    %524 = vmatpush.bf16.msra.mxu0 0
    %525 = vmatpush.bf16.msra.mxu0 0
    %526 = vmatpush.bf16.msra.mxu0 0
    %527 = vmatpush.bf16.msra.mxu0 0
    %528 = vmatpush.bf16.msra.mxu0 %v220
    %529 = vmatpush.bf16.msra.mxu0 %v219
    %530 = vmatmul.bf16.gmra.mxu0 %v520
    %v531 = vpop.f32.mrf.mxu0
    %v532 = vadd.f32 0.0, %v531
    %v533 = vpop.f32.mrf.mxu0
    %534 = vdwg.mxu0
    %v535 = vadd.f32 %v514, %v532
    %v536 = vxor.u32 %v535, 2147483648
    %v537 = vmul.f32 %v536, 1.442695
    %v538 = vpow.pop %v537
    %v539 = vadd.f32 %v538, 1.0
    %v540 = vrcp.pop %v539
    %v541 = vmul.f32 %v539, %v540
    %v542 = vsub.f32 1.0, %v541
    %v543 = vmul.f32 %v540, %v542
    %v544 = vadd.f32 %v540, %v543
    %vm545 = vweird.f32 %v539
    %vm546 = vweird.f32 %v540
    %vm547 = vmor %vm545, %vm546
    %v548 = vsel %vm547, %v540, %v544
    %v549 = vand.u32 2147483647, %v539
    %vm550 = vcmp.eq.f32.partialorder %v549, 8.507059e+37
    %v551 = vand.u32 %v539, 2147483648
    %v552 = vor.u32 1.1754944e-38, %v551
    %v553 = vsel %vm550, %v552, %v548
    %v554 = vmul.f32 1.0, %v553
    %v555 = vtanh.pop %v535
    %v556 = vmul.f32 %v554, %v507
    %558 = vrot.lane.b32.xlu0 %v555, 64
    %v559 = vpop.permute.xlu0 %558
    %v561 = vmul.f32 %v554, %v559
    %563 = vrot.lane.b32.xlu0 %v561, 32
    %v564 = vpop.permute.xlu0 %563
    %v566 = vadd.f32 %v556, %v564
    %v567 = vtanh.pop %v566
    %569 = vrot.lane.b32.xlu0 %v567, 64
    %v570 = vpop.permute.xlu0 %569
    %v572 = vmul.f32 %v554, %v570
    %v573 = vld [vmem:[#allocation2 + $0x30] sm:$0xff]
    %v574 = vpack.c.bf16 %v572, %v572
    %576 = vrot.lane.b32.xlu0 %v574, 32
    %v577 = vpop.permute.xlu0 %576
    %v579 = vsel %vm223, %v577, 0
    %581 = vmatpush.bf16.msra.mxu0 0
    %582 = vmatpush.bf16.msra.mxu0 0
    %583 = vmatpush.bf16.msra.mxu0 0
    %584 = vmatpush.bf16.msra.mxu0 0
    %585 = vmatpush.bf16.msra.mxu0 0
    %586 = vmatpush.bf16.msra.mxu0 0
    %587 = vmatpush.bf16.msra.mxu0 %v220
    %588 = vmatpush.bf16.msra.mxu0 %v219
    %589 = vmatmul.bf16.gmra.mxu0 %v579
    %v590 = vpop.f32.mrf.mxu0
    %v591 = vadd.f32 0.0, %v590
    %v592 = vpop.f32.mrf.mxu0
    %593 = vdwg.mxu0
    %v594 = vadd.f32 %v573, %v591
    %v595 = vxor.u32 %v594, 2147483648
    %v596 = vmul.f32 %v595, 1.442695
    %v597 = vpow.pop %v596
    %v598 = vadd.f32 %v597, 1.0
    %v599 = vrcp.pop %v598
    %v600 = vmul.f32 %v598, %v599
    %v601 = vsub.f32 1.0, %v600
    %v602 = vmul.f32 %v599, %v601
    %v603 = vadd.f32 %v599, %v602
    %vm604 = vweird.f32 %v598
    %vm605 = vweird.f32 %v599
    %vm606 = vmor %vm604, %vm605
    %v607 = vsel %vm606, %v599, %v603
    %v608 = vand.u32 2147483647, %v598
    %vm609 = vcmp.eq.f32.partialorder %v608, 8.507059e+37
    %v610 = vand.u32 %v598, 2147483648
    %v611 = vor.u32 1.1754944e-38, %v610
    %v612 = vsel %vm609, %v611, %v607
    %v613 = vmul.f32 1.0, %v612
    %v614 = vtanh.pop %v594
    %v615 = vmul.f32 %v613, %v566
    %617 = vrot.lane.b32.xlu0 %v614, 64
    %v618 = vpop.permute.xlu0 %617
    %v620 = vmul.f32 %v613, %v618
    %622 = vrot.lane.b32.xlu0 %v620, 32
    %v623 = vpop.permute.xlu0 %622
    %v625 = vadd.f32 %v615, %v623
    %v626 = vtanh.pop %v625
    %628 = vrot.lane.b32.xlu0 %v626, 64
    %v629 = vpop.permute.xlu0 %628
    %v631 = vmul.f32 %v613, %v629
    %v632 = vld [vmem:[#allocation2 + $0x38] sm:$0xff]
    %v633 = vpack.c.bf16 %v631, %v631
    %635 = vrot.lane.b32.xlu0 %v633, 32
    %v636 = vpop.permute.xlu0 %635
    %v638 = vsel %vm223, %v636, 0
    %640 = vmatpush.bf16.msra.mxu0 0
    %641 = vmatpush.bf16.msra.mxu0 0
    %642 = vmatpush.bf16.msra.mxu0 0
    %643 = vmatpush.bf16.msra.mxu0 0
    %644 = vmatpush.bf16.msra.mxu0 0
    %645 = vmatpush.bf16.msra.mxu0 0
    %646 = vmatpush.bf16.msra.mxu0 %v220
    %647 = vmatpush.bf16.msra.mxu0 %v219
    %648 = vmatmul.bf16.gmra.mxu0 %v638
    %v649 = vpop.f32.mrf.mxu0
    %v650 = vadd.f32 0.0, %v649
    %v651 = vpop.f32.mrf.mxu0
    %652 = vdwg.mxu0
    %v653 = vadd.f32 %v632, %v650
    %v654 = vxor.u32 %v653, 2147483648
    %v655 = vmul.f32 %v654, 1.442695
    %v656 = vpow.pop %v655
    %v657 = vadd.f32 %v656, 1.0
    %v658 = vrcp.pop %v657
    %v659 = vmul.f32 %v657, %v658
    %v660 = vsub.f32 1.0, %v659
    %v661 = vmul.f32 %v658, %v660
    %v662 = vadd.f32 %v658, %v661
    %vm663 = vweird.f32 %v657
    %vm664 = vweird.f32 %v658
    %vm665 = vmor %vm663, %vm664
    %v666 = vsel %vm665, %v658, %v662
    %v667 = vand.u32 2147483647, %v657
    %vm668 = vcmp.eq.f32.partialorder %v667, 8.507059e+37
    %v669 = vand.u32 %v657, 2147483648
    %v670 = vor.u32 1.1754944e-38, %v669
    %v671 = vsel %vm668, %v670, %v666
    %v672 = vmul.f32 1.0, %v671
    %v673 = vtanh.pop %v653
    %v674 = vmul.f32 %v672, %v625
    %676 = vrot.lane.b32.xlu0 %v673, 64
    %v677 = vpop.permute.xlu0 %676
    %v679 = vmul.f32 %v672, %v677
    %681 = vrot.lane.b32.xlu0 %v679, 32
    %v682 = vpop.permute.xlu0 %681
    %v684 = vadd.f32 %v674, %v682
    %v685 = vtanh.pop %v684
    %687 = vrot.lane.b32.xlu0 %v685, 64
    %v688 = vpop.permute.xlu0 %687
    %v690 = vmul.f32 %v672, %v688
    %v691 = vld [vmem:[#allocation3] sm:$0xf]
    %v692 = vld [vmem:[#allocation3 + $0x4] sm:$0xf]
    %v693 = vld [vmem:[#allocation3 + $0x8] sm:$0xf]
    %v694 = vld [vmem:[#allocation3 + $0xc] sm:$0xf]
    %v695 = vld [vmem:[#allocation3 + $0x10] sm:$0xf]
    %v696 = vld [vmem:[#allocation3 + $0x14] sm:$0xf]
    %v697 = vld [vmem:[#allocation3 + $0x18] sm:$0xf]
    %v698 = vld [vmem:[#allocation3 + $0x1c] sm:$0xf]
    %v699 = vld [vmem:[%s5] sm:$0x1]
    %v701 = vperm.slane %v699, 0
    %v711 = vunpack.c.l.b16 %v691
    %v712 = vunpack.c.l.b16 %v692
    %v713 = vunpack.c.l.b16 %v693
    %v714 = vunpack.c.l.b16 %v694
    %v715 = vunpack.c.l.b16 %v695
    %v716 = vunpack.c.l.b16 %v696
    %v717 = vunpack.c.l.b16 %v697
    %v718 = vunpack.c.l.b16 %v698
    %v719 = vpack.c.b16 %v712, %v711
    %v720 = vpack.c.b16 %v714, %v713
    %v721 = vpack.c.b16 %v716, %v715
    %v722 = vpack.c.b16 %v718, %v717
    %v728 = vsel %vm156, %v99, 0
    %730 = vmatpush.bf16.msra.mxu0 0
    %731 = vmatpush.bf16.msra.mxu0 0
    %732 = vmatpush.bf16.msra.mxu0 0
    %733 = vmatpush.bf16.msra.mxu0 0
    %734 = vmatpush.bf16.msra.mxu0 %v722
    %735 = vmatpush.bf16.msra.mxu0 %v721
    %736 = vmatpush.bf16.msra.mxu0 %v720
    %737 = vmatpush.bf16.msra.mxu0 %v719
    %738 = vmatmul.bf16.gmra.mxu0 %v728
    %v739 = vpop.f32.mrf.mxu0
    %v740 = vadd.f32 %v701, %v739
    %v741 = vpop.f32.mrf.mxu0
    %742 = vdwg.mxu0
    %v743 = vxor.u32 %v740, 2147483648
    %v744 = vmul.f32 %v743, 1.442695
    %v745 = vpow.pop %v744
    %v746 = vadd.f32 %v745, 1.0
    %v747 = vrcp.pop %v746
    %v748 = vmul.f32 %v746, %v747
    %v749 = vsub.f32 1.0, %v748
    %v750 = vmul.f32 %v747, %v749
    %v751 = vadd.f32 %v747, %v750
    %vm752 = vweird.f32 %v746
    %vm753 = vweird.f32 %v747
    %vm754 = vmor %vm752, %vm753
    %v755 = vsel %vm754, %v747, %v751
    %v756 = vand.u32 2147483647, %v746
    %vm757 = vcmp.eq.f32.partialorder %v756, 8.507059e+37
    %v758 = vand.u32 %v746, 2147483648
    %v759 = vor.u32 1.1754944e-38, %v758
    %v760 = vsel %vm757, %v759, %v755
    %v761 = vmul.f32 1.0, %v760
    %v762 = vtanh.pop %v740
    %v763 = vmul.f32 %v761, 0.0
    %765 = vrot.lane.b32.xlu0 %v762, 64
    %v766 = vpop.permute.xlu0 %765
    %v768 = vmul.f32 %v761, %v766
    %770 = vrot.lane.b32.xlu0 %v768, 32
    %v771 = vpop.permute.xlu0 %770
    %v773 = vadd.f32 %v763, %v771
    %v774 = vtanh.pop %v773
    %776 = vrot.lane.b32.xlu0 %v774, 64
    %v777 = vpop.permute.xlu0 %776
    %v779 = vmul.f32 %v761, %v777
    %781 = vrot.lane.b32.xlu0 %v690, 32
    %v782 = vpop.permute.xlu0 %781
    %785 = vrot.lane.b32.xlu0 %v779, 64
    %v786 = vpop.permute.xlu0 %785
    %v788 = vsel %vm223, %v782, %v786
    %v789 = vpack.c.bf16 %v788, %v788
    %v790 = vld [vmem:[#allocation8] sm:$0xf]
    %v791 = vld [vmem:[#allocation8 + $0x4] sm:$0xf]
    %v792 = vld [vmem:[#allocation8 + $0x8] sm:$0xf]
    %v793 = vld [vmem:[#allocation8 + $0xc] sm:$0xf]
    %v794 = vld [vmem:[#allocation8 + $0x10] sm:$0xf]
    %v795 = vld [vmem:[#allocation8 + $0x14] sm:$0xf]
    %v796 = vld [vmem:[#allocation8 + $0x18] sm:$0xf]
    %v797 = vld [vmem:[#allocation8 + $0x1c] sm:$0xf]
    %v798 = vld [vmem:[#allocation9] sm:$0x1]
    %v800 = vperm.slane %v798, 0
    %v810 = vunpack.c.l.b16 %v790
    %v811 = vunpack.c.l.b16 %v791
    %v812 = vunpack.c.l.b16 %v792
    %v813 = vunpack.c.l.b16 %v793
    %v814 = vunpack.c.l.b16 %v794
    %v815 = vunpack.c.l.b16 %v795
    %v816 = vunpack.c.l.b16 %v796
    %v817 = vunpack.c.l.b16 %v797
    %v818 = vpack.c.b16 %v811, %v810
    %v819 = vpack.c.b16 %v813, %v812
    %v820 = vpack.c.b16 %v815, %v814
    %v821 = vpack.c.b16 %v817, %v816
    %v827 = vsel %vm156, %v789, 0
    %829 = vmatpush.bf16.msra.mxu0 0
    %830 = vmatpush.bf16.msra.mxu0 0
    %831 = vmatpush.bf16.msra.mxu0 0
    %832 = vmatpush.bf16.msra.mxu0 0
    %833 = vmatpush.bf16.msra.mxu0 %v821
    %834 = vmatpush.bf16.msra.mxu0 %v820
    %835 = vmatpush.bf16.msra.mxu0 %v819
    %836 = vmatpush.bf16.msra.mxu0 %v818
    %837 = vmatmul.bf16.gmra.mxu0 %v827
    %v838 = vpop.f32.mrf.mxu0
    %v839 = vadd.f32 %v800, %v838
    %v840 = vpop.f32.mrf.mxu0
    %841 = vdwg.mxu0
    %842 = vst [vmem:[#allocation11] sm:$0xff] %v839
    // Predicated region
    $region50: #{bilstm_forward.3} parent=1 // pred_check
      _
    $region51: #{bilstm_forward.3} parent=1 // pred_check_branch
      %844 = sbr.rel (0) target = $region53
    $region52: #{bilstm_forward.3} parent=1 // pred_region
      %846 = vsyncadd [#allocation5], 0
      %s848 = sshll.u32 [#allocation11], 4
      %s849 = int_to_ptr.vmem [resolvable:$true] %s848
      %s850 = sshll.u32 %s8, 4
      %s851 = int_to_ptr.hbm [resolvable:$true] %s850
      %853 = dma.vmem_to_hbm [thread:$0]  %s849, 128, %s851, [#allocation5]
    $region53: #{bilstm_forward.3} parent=1 // pred_fallthru
      _
    // Predicated region
    $region54: #{bilstm_forward.3} parent=1 // pred_check
      _
    $region55: #{bilstm_forward.3} parent=1 // pred_check_branch
      %855 = sbr.rel (0) target = $region57
    $region56: #{bilstm_forward.3} parent=1 // pred_region
      %857 = dma.done [#allocation5], 128
    $region57: #{bilstm_forward.3} parent=1 // pred_fallthru
      _
    %858 = vsyncpa [#allocation4], 1
    %859 = vsyncpa [#allocation7], 1
    %860 = vsyncpa [#allocation10], 1
    %861 = vsyncpa [#allocation5], 1

</llo_original>
